<compile_context>
chip_gen: v6e
topology: v6e:2x2x1
jax: 0.10.0
libtpu: 0.0.40
codegen_flags: <defaults>
</compile_context>

<pallas_src>
import jax
import jax.numpy as jnp
from jax.experimental import pallas as pl
from jax.experimental.pallas import tpu as pltpu

BN_EPS = 1e-5


def _bn_relu(x, gamma, beta):
    """Training-mode BatchNorm1d (biased batch stats over rows) followed by ReLU."""
    mean = jnp.mean(x, axis=0, keepdims=True)
    var = jnp.mean((x - mean) ** 2, axis=0, keepdims=True)
    y = (x - mean) * jax.lax.rsqrt(var + BN_EPS) * gamma + beta
    return jnp.maximum(y, 0.0)


def decoder_forward(p, last_pos, last_pos_rel, state_tuple, seq_start_end, seq_len):
    """Fused Decoder.forward -> (pred_traj_fake_rel (seq_len,B,2), decoder_h (1,B,H))."""
    seq_start_end = tuple((int(s), int(e)) for (s, e) in seq_start_end)

    hh, ch0 = state_tuple                       # (1, B, H) each (num_layers = 1)
    h0, c0 = hh[0], ch0[0]
    B, H = h0.shape
    E = p["spatial_w"].shape[0]
    P = p["pp1_w"].shape[0]                     # pre-pool hidden (512)
    L = p["pp2_w"].shape[0]                     # bottleneck
    M = p["mlp1_w"].shape[0]                    # mlp_dim
    max_n = max(e - s for (s, e) in seq_start_end)
    max_nn = max_n * max_n
    f32 = jnp.float32

    # ---- one-time weight preprocessing (hoisted out of the decode loop) ----
    sp_wt = p["spatial_w"].T                                     # (2, E)
    sp_b = p["spatial_b"].reshape(1, E)
    wih_g = p["lstm_w_ih"].reshape(4, H, E).transpose(0, 2, 1)   # (4, E, H)
    whh_g = p["lstm_w_hh"].reshape(4, H, H).transpose(0, 2, 1)   # (4, H, H)
    b_g = (p["lstm_b_ih"] + p["lstm_b_hh"]).reshape(4, 1, H)     # (4, 1, H)
    h2p_wt = p["h2p_w"].T                                        # (H, 2)
    h2p_b = p["h2p_b"].reshape(1, 2)
    psp_wt = p["pool_spatial_w"].T                               # (2, E)
    psp_b = p["pool_spatial_b"].reshape(1, E)
    pp1_wt = p["pp1_w"].T                                        # (E+H, P)
    pp1_we, pp1_wh = pp1_wt[:E, :], pp1_wt[E:, :]
    pp1_b = p["pp1_b"].reshape(1, P)
    pp1_g = p["pp1_g"].reshape(1, P)
    pp1_be = p["pp1_be"].reshape(1, P)
    pp2_wt = p["pp2_w"].T                                        # (P, L)
    pp2_b = p["pp2_b"].reshape(1, L)
    pp2_g = p["pp2_g"].reshape(1, L)
    pp2_be = p["pp2_be"].reshape(1, L)
    m1_wt = p["mlp1_w"].T                                        # (H+L, M)
    m1_wh, m1_wp = m1_wt[:H, :], m1_wt[H:, :]
    m1_b = p["mlp1_b"].reshape(1, M)
    m1_g = p["mlp1_g"].reshape(1, M)
    m1_be = p["mlp1_be"].reshape(1, M)
    m2_wt = p["mlp2_w"].T                                        # (M, H)
    m2_b = p["mlp2_b"].reshape(1, H)
    m2_g = p["mlp2_g"].reshape(1, H)
    m2_be = p["mlp2_be"].reshape(1, H)

    operands = (
        last_pos, last_pos_rel, h0, c0,
        sp_wt, sp_b,
        wih_g, whh_g, b_g,
        h2p_wt, h2p_b,
        psp_wt, psp_b,
        pp1_we, pp1_wh, pp1_b, pp1_g, pp1_be,
        pp2_wt, pp2_b, pp2_g, pp2_be,
        m1_wh, m1_wp, m1_b, m1_g, m1_be,
        m2_wt, m2_b, m2_g, m2_be,
    )

    def kernel(last_pos_ref, last_pos_rel_ref, h0_ref, c0_ref,
               sp_wt_ref, sp_b_ref,
               wih_ref, whh_ref, bg_ref,
               h2p_wt_ref, h2p_b_ref,
               psp_wt_ref, psp_b_ref,
               pp1_we_ref, pp1_wh_ref, pp1_b_ref, pp1_g_ref, pp1_be_ref,
               pp2_wt_ref, pp2_b_ref, pp2_g_ref, pp2_be_ref,
               m1_wh_ref, m1_wp_ref, m1_b_ref, m1_g_ref, m1_be_ref,
               m2_wt_ref, m2_b_ref, m2_g_ref, m2_be_ref,
               pred_ref, hout_ref,
               h_s, c_s, lp_s, din_s, rel_s, hid_s, pool_s):
        t = pl.program_id(0)

        # Timestep 0: load initial state into the VMEM carry buffers.
        @pl.when(t == 0)
        def _init():
            h_s[...] = h0_ref[...]
            c_s[...] = c0_ref[...]
            lp_s[...] = last_pos_ref[...]
            din_s[...] = (
                jnp.dot(last_pos_rel_ref[...], sp_wt_ref[...],
                        preferred_element_type=jnp.float32) + sp_b_ref[...])

        x = din_s[...]
        h_prev = h_s[...]
        c_prev = c_s[...]

        # LSTM cell — four per-gate matmuls (gate order i, f, g, o).
        def gate(k):
            return (jnp.dot(x, wih_ref[k], preferred_element_type=jnp.float32)
                    + jnp.dot(h_prev, whh_ref[k], preferred_element_type=jnp.float32)
                    + bg_ref[k])

        i_g = jax.nn.sigmoid(gate(0))
        f_g = jax.nn.sigmoid(gate(1))
        g_g = jnp.tanh(gate(2))
        o_g = jax.nn.sigmoid(gate(3))
        c_new = f_g * c_prev + i_g * g_g
        h_lstm = o_g * jnp.tanh(c_new)
        c_s[...] = c_new

        # hidden2pos + absolute position.
        rel_pos = (jnp.dot(h_lstm, h2p_wt_ref[...], preferred_element_type=jnp.float32)
                   + h2p_b_ref[...])
        curr_pos = rel_pos + lp_s[...]

        # PoolHiddenNet (static groups, unrolled at trace time inside this kernel).
        for (start, end) in seq_start_end:
            n = end - start
            nn = n * n
            grp_h = h_lstm[start:end, :]            # (n, H)
            grp_pos = curr_pos[start:end, :]        # (n, 2)
            for i in range(n):
                # rows (i*n + j): pos[j] - pos[i], h[j]
                rel_s[i * n:(i + 1) * n, :] = grp_pos - grp_pos[i:i + 1, :]
                hid_s[i * n:(i + 1) * n, :] = grp_h
            rel = rel_s[0:nn, :]
            hid = hid_s[0:nn, :]
            rel_emb = (jnp.dot(rel, psp_wt_ref[...], preferred_element_type=jnp.float32)
                       + psp_b_ref[...])
            pre1 = (jnp.dot(rel_emb, pp1_we_ref[...], preferred_element_type=jnp.float32)
                    + jnp.dot(hid, pp1_wh_ref[...], preferred_element_type=jnp.float32)
                    + pp1_b_ref[...])
            y1 = _bn_relu(pre1, pp1_g_ref[...], pp1_be_ref[...])
            pre2 = (jnp.dot(y1, pp2_wt_ref[...], preferred_element_type=jnp.float32)
                    + pp2_b_ref[...])
            y2 = _bn_relu(pre2, pp2_g_ref[...], pp2_be_ref[...])
            for i in range(n):
                pool_s[start + i:start + i + 1, :] = jnp.max(
                    y2[i * n:(i + 1) * n, :], axis=0, keepdims=True)
        pool_h = pool_s[...]                         # (B, L)

        # Decoder mlp: [H + bottleneck] -> mlp_dim -> H (Linear + BN + ReLU twice).
        dpre1 = (jnp.dot(h_lstm, m1_wh_ref[...], preferred_element_type=jnp.float32)
                 + jnp.dot(pool_h, m1_wp_ref[...], preferred_element_type=jnp.float32)
                 + m1_b_ref[...])
        d1 = _bn_relu(dpre1, m1_g_ref[...], m1_be_ref[...])
        dpre2 = (jnp.dot(d1, m2_wt_ref[...], preferred_element_type=jnp.float32)
                 + m2_b_ref[...])
        h_new = _bn_relu(dpre2, m2_g_ref[...], m2_be_ref[...])

        # Carry state to the next timestep.
        h_s[...] = h_new
        lp_s[...] = curr_pos
        din_s[...] = (jnp.dot(rel_pos, sp_wt_ref[...], preferred_element_type=jnp.float32)
                      + sp_b_ref[...])

        # Outputs: resident blocks, single HBM writeback after the last step.
        pred_ref[t, :, :] = rel_pos
        hout_ref[...] = h_new

    def resident_spec(a):
        nd = a.ndim
        return pl.BlockSpec(a.shape, lambda t, _nd=nd: (0,) * _nd)

    pred, h_final = pl.pallas_call(
        kernel,
        grid=(seq_len,),
        in_specs=[resident_spec(a) for a in operands],
        out_specs=(
            pl.BlockSpec((seq_len, B, 2), lambda t: (0, 0, 0)),
            pl.BlockSpec((B, H), lambda t: (0, 0)),
        ),
        out_shape=(
            jax.ShapeDtypeStruct((seq_len, B, 2), f32),
            jax.ShapeDtypeStruct((B, H), f32),
        ),
        scratch_shapes=[
            pltpu.VMEM((B, H), f32),         # h carry
            pltpu.VMEM((B, H), f32),         # c carry
            pltpu.VMEM((B, 2), f32),         # last_pos carry
            pltpu.VMEM((B, E), f32),         # decoder-input carry
            pltpu.VMEM((max_nn, 2), f32),    # ped-pair relative positions
            pltpu.VMEM((max_nn, H), f32),    # tiled hidden states
            pltpu.VMEM((B, L), f32),         # pooled features
        ],
        compiler_params=pltpu.CompilerParams(
            dimension_semantics=("arbitrary",)),
    )(*operands)

    return pred, h_final[None, :, :]


# --------------------------- deterministic params --------------------------- #

def _linear_init(key, out_dim, in_dim):
    k1, k2 = jax.random.split(key)
    bound = 1.0 / (in_dim ** 0.5)
    w = jax.random.uniform(k1, (out_dim, in_dim), jnp.float32, -bound, bound)
    b = jax.random.uniform(k2, (out_dim,), jnp.float32, -bound, bound)
    return w, b


def make_params(key, emb, h_dim, mlp_dim, bottleneck, pre_pool_hidden=512):
    keys = jax.random.split(key, 16)
    p = {}
    # Decoder.spatial_embedding: Linear(2, emb)
    p["spatial_w"], p["spatial_b"] = _linear_init(keys[0], emb, 2)
    # Decoder.decoder: LSTM(emb, h_dim, 1)
    bound = 1.0 / (h_dim ** 0.5)
    p["lstm_w_ih"] = jax.random.uniform(keys[1], (4 * h_dim, emb), jnp.float32, -bound, bound)
    p["lstm_w_hh"] = jax.random.uniform(keys[2], (4 * h_dim, h_dim), jnp.float32, -bound, bound)
    p["lstm_b_ih"] = jax.random.uniform(keys[3], (4 * h_dim,), jnp.float32, -bound, bound)
    p["lstm_b_hh"] = jax.random.uniform(keys[4], (4 * h_dim,), jnp.float32, -bound, bound)
    # Decoder.hidden2pos: Linear(h_dim, 2)
    p["h2p_w"], p["h2p_b"] = _linear_init(keys[5], 2, h_dim)
    # PoolHiddenNet.spatial_embedding: Linear(2, emb)
    p["pool_spatial_w"], p["pool_spatial_b"] = _linear_init(keys[6], emb, 2)
    # PoolHiddenNet.mlp_pre_pool: [emb + h_dim, 512, bottleneck] with BN + ReLU
    p["pp1_w"], p["pp1_b"] = _linear_init(keys[7], pre_pool_hidden, emb + h_dim)
    p["pp1_g"] = jnp.ones((pre_pool_hidden,), jnp.float32)
    p["pp1_be"] = jnp.zeros((pre_pool_hidden,), jnp.float32)
    p["pp2_w"], p["pp2_b"] = _linear_init(keys[8], bottleneck, pre_pool_hidden)
    p["pp2_g"] = jnp.ones((bottleneck,), jnp.float32)
    p["pp2_be"] = jnp.zeros((bottleneck,), jnp.float32)
    # Decoder.mlp: [h_dim + bottleneck, mlp_dim, h_dim] with BN + ReLU
    p["mlp1_w"], p["mlp1_b"] = _linear_init(keys[9], mlp_dim, h_dim + bottleneck)
    p["mlp1_g"] = jnp.ones((mlp_dim,), jnp.float32)
    p["mlp1_be"] = jnp.zeros((mlp_dim,), jnp.float32)
    p["mlp2_w"], p["mlp2_b"] = _linear_init(keys[10], h_dim, mlp_dim)
    p["mlp2_g"] = jnp.ones((h_dim,), jnp.float32)
    p["mlp2_be"] = jnp.zeros((h_dim,), jnp.float32)
    return p


# ---------------------------------- main ----------------------------------- #

if __name__ == "__main__":
    SEQ_LEN = 3
    BATCH = 4
    EMB = 32
    H_DIM = 32
    MLP_DIM = 64
    BOTTLENECK = 64
    # two sequences of 2 pedestrians each (static Python ints, like seq_start_end)
    SEQ_START_END = ((0, 2), (2, 4))

    key = jax.random.PRNGKey(0)
    kp, k1, k2, k3, k4 = jax.random.split(key, 5)
    params = make_params(kp, EMB, H_DIM, MLP_DIM, BOTTLENECK)

    last_pos = jax.random.normal(k1, (BATCH, 2), jnp.float32)
    last_pos_rel = jax.random.normal(k2, (BATCH, 2), jnp.float32)
    hh = jax.random.normal(k3, (1, BATCH, H_DIM), jnp.float32)
    ch = jax.random.normal(k4, (1, BATCH, H_DIM), jnp.float32)

    decoder_fn = jax.jit(decoder_forward, static_argnums=(4, 5))
    pred_traj_rel, final_h = decoder_fn(
        params, last_pos, last_pos_rel, (hh, ch), SEQ_START_END, SEQ_LEN
    )
    jax.block_until_ready((pred_traj_rel, final_h))

    assert pred_traj_rel.shape == (SEQ_LEN, BATCH, 2)
    assert final_h.shape == (1, BATCH, H_DIM)
    assert bool(jnp.all(jnp.isfinite(pred_traj_rel)))
    assert bool(jnp.all(jnp.isfinite(final_h)))
    print("KERNEL_OK")
</pallas_src>

<mosaic_0001>
module attributes {stable_mosaic.version = 11 : i64} {
  func.func @kernel(%arg0: i32, %arg1: memref<4x2xf32, #tpu.memory_space<vmem>>, %arg2: memref<4x2xf32, #tpu.memory_space<vmem>>, %arg3: memref<4x32xf32, #tpu.memory_space<vmem>>, %arg4: memref<4x32xf32, #tpu.memory_space<vmem>>, %arg5: memref<2x32xf32, #tpu.memory_space<vmem>>, %arg6: memref<1x32xf32, #tpu.memory_space<vmem>>, %arg7: memref<4x32x32xf32, #tpu.memory_space<vmem>>, %arg8: memref<4x32x32xf32, #tpu.memory_space<vmem>>, %arg9: memref<4x1x32xf32, #tpu.memory_space<vmem>>, %arg10: memref<32x2xf32, #tpu.memory_space<vmem>>, %arg11: memref<1x2xf32, #tpu.memory_space<vmem>>, %arg12: memref<2x32xf32, #tpu.memory_space<vmem>>, %arg13: memref<1x32xf32, #tpu.memory_space<vmem>>, %arg14: memref<32x512xf32, #tpu.memory_space<vmem>>, %arg15: memref<32x512xf32, #tpu.memory_space<vmem>>, %arg16: memref<1x512xf32, #tpu.memory_space<vmem>>, %arg17: memref<1x512xf32, #tpu.memory_space<vmem>>, %arg18: memref<1x512xf32, #tpu.memory_space<vmem>>, %arg19: memref<512x64xf32, #tpu.memory_space<vmem>>, %arg20: memref<1x64xf32, #tpu.memory_space<vmem>>, %arg21: memref<1x64xf32, #tpu.memory_space<vmem>>, %arg22: memref<1x64xf32, #tpu.memory_space<vmem>>, %arg23: memref<32x64xf32, #tpu.memory_space<vmem>>, %arg24: memref<64x64xf32, #tpu.memory_space<vmem>>, %arg25: memref<1x64xf32, #tpu.memory_space<vmem>>, %arg26: memref<1x64xf32, #tpu.memory_space<vmem>>, %arg27: memref<1x64xf32, #tpu.memory_space<vmem>>, %arg28: memref<64x32xf32, #tpu.memory_space<vmem>>, %arg29: memref<1x32xf32, #tpu.memory_space<vmem>>, %arg30: memref<1x32xf32, #tpu.memory_space<vmem>>, %arg31: memref<1x32xf32, #tpu.memory_space<vmem>>, %arg32: memref<3x4x2xf32, #tpu.memory_space<vmem>>, %arg33: memref<4x32xf32, #tpu.memory_space<vmem>>, %arg34: memref<4x32xf32, #tpu.memory_space<vmem>>, %arg35: memref<4x32xf32, #tpu.memory_space<vmem>>, %arg36: memref<4x2xf32, #tpu.memory_space<vmem>>, %arg37: memref<4x32xf32, #tpu.memory_space<vmem>>, %arg38: memref<4x2xf32, #tpu.memory_space<vmem>>, %arg39: memref<4x32xf32, #tpu.memory_space<vmem>>, %arg40: memref<4x64xf32, #tpu.memory_space<vmem>>) attributes {dimension_semantics = [#tpu.dimension_semantics<arbitrary>], iteration_bounds = array<i64: 3>, scalar_prefetch = 0 : i64, scratch_operands = 7 : i64, tpu.core_type = #tpu.core_type<tc>, window_params = [{pipeline_mode = #tpu.pipeline_mode<synchronous>, transform_indices = @transform_0, window_bounds = array<i64: 4, 2>}, {pipeline_mode = #tpu.pipeline_mode<synchronous>, transform_indices = @transform_1, window_bounds = array<i64: 4, 2>}, {pipeline_mode = #tpu.pipeline_mode<synchronous>, transform_indices = @transform_2, window_bounds = array<i64: 4, 32>}, {pipeline_mode = #tpu.pipeline_mode<synchronous>, transform_indices = @transform_3, window_bounds = array<i64: 4, 32>}, {pipeline_mode = #tpu.pipeline_mode<synchronous>, transform_indices = @transform_4, window_bounds = array<i64: 2, 32>}, {pipeline_mode = #tpu.pipeline_mode<synchronous>, transform_indices = @transform_5, window_bounds = array<i64: 1, 32>}, {pipeline_mode = #tpu.pipeline_mode<synchronous>, transform_indices = @transform_6, window_bounds = array<i64: 4, 32, 32>}, {pipeline_mode = #tpu.pipeline_mode<synchronous>, transform_indices = @transform_7, window_bounds = array<i64: 4, 32, 32>}, {pipeline_mode = #tpu.pipeline_mode<synchronous>, transform_indices = @transform_8, window_bounds = array<i64: 4, 1, 32>}, {pipeline_mode = #tpu.pipeline_mode<synchronous>, transform_indices = @transform_9, window_bounds = array<i64: 32, 2>}, {pipeline_mode = #tpu.pipeline_mode<synchronous>, transform_indices = @transform_10, window_bounds = array<i64: 1, 2>}, {pipeline_mode = #tpu.pipeline_mode<synchronous>, transform_indices = @transform_11, window_bounds = array<i64: 2, 32>}, {pipeline_mode = #tpu.pipeline_mode<synchronous>, transform_indices = @transform_12, window_bounds = array<i64: 1, 32>}, {pipeline_mode = #tpu.pipeline_mode<synchronous>, transform_indices = @transform_13, window_bounds = array<i64: 32, 512>}, {pipeline_mode = #tpu.pipeline_mode<synchronous>, transform_indices = @transform_14, window_bounds = array<i64: 32, 512>}, {pipeline_mode = #tpu.pipeline_mode<synchronous>, transform_indices = @transform_15, window_bounds = array<i64: 1, 512>}, {pipeline_mode = #tpu.pipeline_mode<synchronous>, transform_indices = @transform_16, window_bounds = array<i64: 1, 512>}, {pipeline_mode = #tpu.pipeline_mode<synchronous>, transform_indices = @transform_17, window_bounds = array<i64: 1, 512>}, {pipeline_mode = #tpu.pipeline_mode<synchronous>, transform_indices = @transform_18, window_bounds = array<i64: 512, 64>}, {pipeline_mode = #tpu.pipeline_mode<synchronous>, transform_indices = @transform_19, window_bounds = array<i64: 1, 64>}, {pipeline_mode = #tpu.pipeline_mode<synchronous>, transform_indices = @transform_20, window_bounds = array<i64: 1, 64>}, {pipeline_mode = #tpu.pipeline_mode<synchronous>, transform_indices = @transform_21, window_bounds = array<i64: 1, 64>}, {pipeline_mode = #tpu.pipeline_mode<synchronous>, transform_indices = @transform_22, window_bounds = array<i64: 32, 64>}, {pipeline_mode = #tpu.pipeline_mode<synchronous>, transform_indices = @transform_23, window_bounds = array<i64: 64, 64>}, {pipeline_mode = #tpu.pipeline_mode<synchronous>, transform_indices = @transform_24, window_bounds = array<i64: 1, 64>}, {pipeline_mode = #tpu.pipeline_mode<synchronous>, transform_indices = @transform_25, window_bounds = array<i64: 1, 64>}, {pipeline_mode = #tpu.pipeline_mode<synchronous>, transform_indices = @transform_26, window_bounds = array<i64: 1, 64>}, {pipeline_mode = #tpu.pipeline_mode<synchronous>, transform_indices = @transform_27, window_bounds = array<i64: 64, 32>}, {pipeline_mode = #tpu.pipeline_mode<synchronous>, transform_indices = @transform_28, window_bounds = array<i64: 1, 32>}, {pipeline_mode = #tpu.pipeline_mode<synchronous>, transform_indices = @transform_29, window_bounds = array<i64: 1, 32>}, {pipeline_mode = #tpu.pipeline_mode<synchronous>, transform_indices = @transform_30, window_bounds = array<i64: 1, 32>}, {pipeline_mode = #tpu.pipeline_mode<synchronous>, transform_indices = @transform_31, window_bounds = array<i64: 3, 4, 2>}, {pipeline_mode = #tpu.pipeline_mode<synchronous>, transform_indices = @transform_32, window_bounds = array<i64: 4, 32>}]} {
    %c0_i32 = arith.constant 0 : i32
    %0 = arith.cmpi eq, %arg0, %c0_i32 : i32
    %1 = arith.extui %0 : i1 to i32
    %c0_i32_0 = arith.constant 0 : i32
    %2 = arith.cmpi ne, %1, %c0_i32_0 : i32
    scf.if %2 {
      %c0_220 = arith.constant 0 : index
      %c0_221 = arith.constant 0 : index
      %342 = vector.load %arg3[%c0_220, %c0_221] : memref<4x32xf32, #tpu.memory_space<vmem>>, vector<4x32xf32>
      %c0_222 = arith.constant 0 : index
      %c0_223 = arith.constant 0 : index
      %343 = vector.load %arg34[%c0_222, %c0_223] : memref<4x32xf32, #tpu.memory_space<vmem>>, vector<4x32xf32>
      tpu.vector_store %arg34[%c0_222, %c0_223], %342 {strides = array<i32>} : memref<4x32xf32, #tpu.memory_space<vmem>>, vector<4x32xf32>,
      %c0_224 = arith.constant 0 : index
      %c0_225 = arith.constant 0 : index
      %344 = vector.load %arg4[%c0_224, %c0_225] : memref<4x32xf32, #tpu.memory_space<vmem>>, vector<4x32xf32>
      %c0_226 = arith.constant 0 : index
      %c0_227 = arith.constant 0 : index
      %345 = vector.load %arg35[%c0_226, %c0_227] : memref<4x32xf32, #tpu.memory_space<vmem>>, vector<4x32xf32>
      tpu.vector_store %arg35[%c0_226, %c0_227], %344 {strides = array<i32>} : memref<4x32xf32, #tpu.memory_space<vmem>>, vector<4x32xf32>,
      %c0_228 = arith.constant 0 : index
      %c0_229 = arith.constant 0 : index
      %346 = vector.load %arg1[%c0_228, %c0_229] : memref<4x2xf32, #tpu.memory_space<vmem>>, vector<4x2xf32>
      %c0_230 = arith.constant 0 : index
      %c0_231 = arith.constant 0 : index
      %347 = vector.load %arg36[%c0_230, %c0_231] : memref<4x2xf32, #tpu.memory_space<vmem>>, vector<4x2xf32>
      tpu.vector_store %arg36[%c0_230, %c0_231], %346 {strides = array<i32>} : memref<4x2xf32, #tpu.memory_space<vmem>>, vector<4x2xf32>,
      %c0_232 = arith.constant 0 : index
      %c0_233 = arith.constant 0 : index
      %348 = vector.load %arg2[%c0_232, %c0_233] : memref<4x2xf32, #tpu.memory_space<vmem>>, vector<4x2xf32>
      %c0_234 = arith.constant 0 : index
      %c0_235 = arith.constant 0 : index
      %349 = vector.load %arg5[%c0_234, %c0_235] : memref<2x32xf32, #tpu.memory_space<vmem>>, vector<2x32xf32>
      %cst_236 = arith.constant dense<0.000000e+00> : vector<4x32xf32>
      %350 = tpu.matmul %348, %349, %cst_236 {dimension_numbers = #tpu.dot_dimension_numbers<[1], [0], [0], [1], [0, 0, 1, 1], [], []>} : vector<4x2xf32>, vector<2x32xf32>, vector<4x32xf32> -> vector<4x32xf32>
      %c0_237 = arith.constant 0 : index
      %c0_238 = arith.constant 0 : index
      %351 = vector.load %arg6[%c0_237, %c0_238] : memref<1x32xf32, #tpu.memory_space<vmem>>, vector<1x32xf32>
      %352 = vector.broadcast %351 : vector<1x32xf32> to vector<4x32xf32>
      %353 = arith.addf %350, %352 : vector<4x32xf32>
      %c0_239 = arith.constant 0 : index
      %c0_240 = arith.constant 0 : index
      %354 = vector.load %arg37[%c0_239, %c0_240] : memref<4x32xf32, #tpu.memory_space<vmem>>, vector<4x32xf32>
      tpu.vector_store %arg37[%c0_239, %c0_240], %353 {strides = array<i32>} : memref<4x32xf32, #tpu.memory_space<vmem>>, vector<4x32xf32>,
    } else {
    }
    %c0 = arith.constant 0 : index
    %c0_1 = arith.constant 0 : index
    %3 = vector.load %arg37[%c0, %c0_1] : memref<4x32xf32, #tpu.memory_space<vmem>>, vector<4x32xf32>
    %c0_2 = arith.constant 0 : index
    %c0_3 = arith.constant 0 : index
    %4 = vector.load %arg34[%c0_2, %c0_3] : memref<4x32xf32, #tpu.memory_space<vmem>>, vector<4x32xf32>
    %c0_4 = arith.constant 0 : index
    %c0_5 = arith.constant 0 : index
    %5 = vector.load %arg35[%c0_4, %c0_5] : memref<4x32xf32, #tpu.memory_space<vmem>>, vector<4x32xf32>
    %c0_6 = arith.constant 0 : index
    %c0_7 = arith.constant 0 : index
    %c0_8 = arith.constant 0 : index
    %6 = vector.load %arg7[%c0_6, %c0_7, %c0_8] : memref<4x32x32xf32, #tpu.memory_space<vmem>>, vector<1x32x32xf32>
    %7 = vector.shape_cast %6 : vector<1x32x32xf32> to vector<32x32xf32>
    %cst = arith.constant dense<0.000000e+00> : vector<4x32xf32>
    %8 = tpu.matmul %3, %7, %cst {dimension_numbers = #tpu.dot_dimension_numbers<[1], [0], [0], [1], [0, 0, 1, 1], [], []>} : vector<4x32xf32>, vector<32x32xf32>, vector<4x32xf32> -> vector<4x32xf32>
    %c0_9 = arith.constant 0 : index
    %c0_10 = arith.constant 0 : index
    %c0_11 = arith.constant 0 : index
    %9 = vector.load %arg8[%c0_9, %c0_10, %c0_11] : memref<4x32x32xf32, #tpu.memory_space<vmem>>, vector<1x32x32xf32>
    %10 = vector.shape_cast %9 : vector<1x32x32xf32> to vector<32x32xf32>
    %cst_12 = arith.constant dense<0.000000e+00> : vector<4x32xf32>
    %11 = tpu.matmul %4, %10, %cst_12 {dimension_numbers = #tpu.dot_dimension_numbers<[1], [0], [0], [1], [0, 0, 1, 1], [], []>} : vector<4x32xf32>, vector<32x32xf32>, vector<4x32xf32> -> vector<4x32xf32>
    %12 = arith.addf %8, %11 : vector<4x32xf32>
    %c0_13 = arith.constant 0 : index
    %c0_14 = arith.constant 0 : index
    %c0_15 = arith.constant 0 : index
    %13 = vector.load %arg9[%c0_13, %c0_14, %c0_15] : memref<4x1x32xf32, #tpu.memory_space<vmem>>, vector<1x1x32xf32>
    %14 = vector.shape_cast %13 : vector<1x1x32xf32> to vector<1x32xf32>
    %15 = vector.broadcast %14 : vector<1x32xf32> to vector<4x32xf32>
    %16 = arith.addf %12, %15 : vector<4x32xf32>
    %17 = arith.negf %16 : vector<4x32xf32>
    %18 = math.exp %17 : vector<4x32xf32>
    %cst_16 = arith.constant 1.000000e+00 : f32
    %19 = vector.broadcast %cst_16 : f32 to vector<4x32xf32>
    %20 = arith.addf %19, %18 : vector<4x32xf32>
    %21 = arith.divf %19, %20 : vector<4x32xf32>
    %c1 = arith.constant 1 : index
    %c0_17 = arith.constant 0 : index
    %c0_18 = arith.constant 0 : index
    %22 = vector.load %arg7[%c1, %c0_17, %c0_18] : memref<4x32x32xf32, #tpu.memory_space<vmem>>, vector<1x32x32xf32>
    %23 = vector.shape_cast %22 : vector<1x32x32xf32> to vector<32x32xf32>
    %cst_19 = arith.constant dense<0.000000e+00> : vector<4x32xf32>
    %24 = tpu.matmul %3, %23, %cst_19 {dimension_numbers = #tpu.dot_dimension_numbers<[1], [0], [0], [1], [0, 0, 1, 1], [], []>} : vector<4x32xf32>, vector<32x32xf32>, vector<4x32xf32> -> vector<4x32xf32>
    %c1_20 = arith.constant 1 : index
    %c0_21 = arith.constant 0 : index
    %c0_22 = arith.constant 0 : index
    %25 = vector.load %arg8[%c1_20, %c0_21, %c0_22] : memref<4x32x32xf32, #tpu.memory_space<vmem>>, vector<1x32x32xf32>
    %26 = vector.shape_cast %25 : vector<1x32x32xf32> to vector<32x32xf32>
    %cst_23 = arith.constant dense<0.000000e+00> : vector<4x32xf32>
    %27 = tpu.matmul %4, %26, %cst_23 {dimension_numbers = #tpu.dot_dimension_numbers<[1], [0], [0], [1], [0, 0, 1, 1], [], []>} : vector<4x32xf32>, vector<32x32xf32>, vector<4x32xf32> -> vector<4x32xf32>
    %28 = arith.addf %24, %27 : vector<4x32xf32>
    %c1_24 = arith.constant 1 : index
    %c0_25 = arith.constant 0 : index
    %c0_26 = arith.constant 0 : index
    %29 = vector.load %arg9[%c1_24, %c0_25, %c0_26] : memref<4x1x32xf32, #tpu.memory_space<vmem>>, vector<1x1x32xf32>
    %30 = vector.shape_cast %29 : vector<1x1x32xf32> to vector<1x32xf32>
    %31 = vector.broadcast %30 : vector<1x32xf32> to vector<4x32xf32>
    %32 = arith.addf %28, %31 : vector<4x32xf32>
    %33 = arith.negf %32 : vector<4x32xf32>
    %34 = math.exp %33 : vector<4x32xf32>
    %cst_27 = arith.constant 1.000000e+00 : f32
    %35 = vector.broadcast %cst_27 : f32 to vector<4x32xf32>
    %36 = arith.addf %35, %34 : vector<4x32xf32>
    %37 = arith.divf %35, %36 : vector<4x32xf32>
    %c2 = arith.constant 2 : index
    %c0_28 = arith.constant 0 : index
    %c0_29 = arith.constant 0 : index
    %38 = vector.load %arg7[%c2, %c0_28, %c0_29] : memref<4x32x32xf32, #tpu.memory_space<vmem>>, vector<1x32x32xf32>
    %39 = vector.shape_cast %38 : vector<1x32x32xf32> to vector<32x32xf32>
    %cst_30 = arith.constant dense<0.000000e+00> : vector<4x32xf32>
    %40 = tpu.matmul %3, %39, %cst_30 {dimension_numbers = #tpu.dot_dimension_numbers<[1], [0], [0], [1], [0, 0, 1, 1], [], []>} : vector<4x32xf32>, vector<32x32xf32>, vector<4x32xf32> -> vector<4x32xf32>
    %c2_31 = arith.constant 2 : index
    %c0_32 = arith.constant 0 : index
    %c0_33 = arith.constant 0 : index
    %41 = vector.load %arg8[%c2_31, %c0_32, %c0_33] : memref<4x32x32xf32, #tpu.memory_space<vmem>>, vector<1x32x32xf32>
    %42 = vector.shape_cast %41 : vector<1x32x32xf32> to vector<32x32xf32>
    %cst_34 = arith.constant dense<0.000000e+00> : vector<4x32xf32>
    %43 = tpu.matmul %4, %42, %cst_34 {dimension_numbers = #tpu.dot_dimension_numbers<[1], [0], [0], [1], [0, 0, 1, 1], [], []>} : vector<4x32xf32>, vector<32x32xf32>, vector<4x32xf32> -> vector<4x32xf32>
    %44 = arith.addf %40, %43 : vector<4x32xf32>
    %c2_35 = arith.constant 2 : index
    %c0_36 = arith.constant 0 : index
    %c0_37 = arith.constant 0 : index
    %45 = vector.load %arg9[%c2_35, %c0_36, %c0_37] : memref<4x1x32xf32, #tpu.memory_space<vmem>>, vector<1x1x32xf32>
    %46 = vector.shape_cast %45 : vector<1x1x32xf32> to vector<1x32xf32>
    %47 = vector.broadcast %46 : vector<1x32xf32> to vector<4x32xf32>
    %48 = arith.addf %44, %47 : vector<4x32xf32>
    %49 = math.tanh %48 : vector<4x32xf32>
    %c3 = arith.constant 3 : index
    %c0_38 = arith.constant 0 : index
    %c0_39 = arith.constant 0 : index
    %50 = vector.load %arg7[%c3, %c0_38, %c0_39] : memref<4x32x32xf32, #tpu.memory_space<vmem>>, vector<1x32x32xf32>
    %51 = vector.shape_cast %50 : vector<1x32x32xf32> to vector<32x32xf32>
    %cst_40 = arith.constant dense<0.000000e+00> : vector<4x32xf32>
    %52 = tpu.matmul %3, %51, %cst_40 {dimension_numbers = #tpu.dot_dimension_numbers<[1], [0], [0], [1], [0, 0, 1, 1], [], []>} : vector<4x32xf32>, vector<32x32xf32>, vector<4x32xf32> -> vector<4x32xf32>
    %c3_41 = arith.constant 3 : index
    %c0_42 = arith.constant 0 : index
    %c0_43 = arith.constant 0 : index
    %53 = vector.load %arg8[%c3_41, %c0_42, %c0_43] : memref<4x32x32xf32, #tpu.memory_space<vmem>>, vector<1x32x32xf32>
    %54 = vector.shape_cast %53 : vector<1x32x32xf32> to vector<32x32xf32>
    %cst_44 = arith.constant dense<0.000000e+00> : vector<4x32xf32>
    %55 = tpu.matmul %4, %54, %cst_44 {dimension_numbers = #tpu.dot_dimension_numbers<[1], [0], [0], [1], [0, 0, 1, 1], [], []>} : vector<4x32xf32>, vector<32x32xf32>, vector<4x32xf32> -> vector<4x32xf32>
    %56 = arith.addf %52, %55 : vector<4x32xf32>
    %c3_45 = arith.constant 3 : index
    %c0_46 = arith.constant 0 : index
    %c0_47 = arith.constant 0 : index
    %57 = vector.load %arg9[%c3_45, %c0_46, %c0_47] : memref<4x1x32xf32, #tpu.memory_space<vmem>>, vector<1x1x32xf32>
    %58 = vector.shape_cast %57 : vector<1x1x32xf32> to vector<1x32xf32>
    %59 = vector.broadcast %58 : vector<1x32xf32> to vector<4x32xf32>
    %60 = arith.addf %56, %59 : vector<4x32xf32>
    %61 = arith.negf %60 : vector<4x32xf32>
    %62 = math.exp %61 : vector<4x32xf32>
    %cst_48 = arith.constant 1.000000e+00 : f32
    %63 = vector.broadcast %cst_48 : f32 to vector<4x32xf32>
    %64 = arith.addf %63, %62 : vector<4x32xf32>
    %65 = arith.divf %63, %64 : vector<4x32xf32>
    %66 = arith.mulf %37, %5 : vector<4x32xf32>
    %67 = arith.mulf %21, %49 : vector<4x32xf32>
    %68 = arith.addf %66, %67 : vector<4x32xf32>
    %69 = math.tanh %68 : vector<4x32xf32>
    %70 = arith.mulf %65, %69 : vector<4x32xf32>
    %c0_49 = arith.constant 0 : index
    %c0_50 = arith.constant 0 : index
    %71 = vector.load %arg35[%c0_49, %c0_50] : memref<4x32xf32, #tpu.memory_space<vmem>>, vector<4x32xf32>
    tpu.vector_store %arg35[%c0_49, %c0_50], %68 {strides = array<i32>} : memref<4x32xf32, #tpu.memory_space<vmem>>, vector<4x32xf32>,
    %c0_51 = arith.constant 0 : index
    %c0_52 = arith.constant 0 : index
    %72 = vector.load %arg10[%c0_51, %c0_52] : memref<32x2xf32, #tpu.memory_space<vmem>>, vector<32x2xf32>
    %cst_53 = arith.constant dense<0.000000e+00> : vector<4x2xf32>
    %73 = tpu.matmul %70, %72, %cst_53 {dimension_numbers = #tpu.dot_dimension_numbers<[1], [0], [0], [1], [0, 0, 1, 1], [], []>} : vector<4x32xf32>, vector<32x2xf32>, vector<4x2xf32> -> vector<4x2xf32>
    %c0_54 = arith.constant 0 : index
    %c0_55 = arith.constant 0 : index
    %74 = vector.load %arg11[%c0_54, %c0_55] : memref<1x2xf32, #tpu.memory_space<vmem>>, vector<1x2xf32>
    %75 = vector.broadcast %74 : vector<1x2xf32> to vector<4x2xf32>
    %76 = arith.addf %73, %75 : vector<4x2xf32>
    %c0_56 = arith.constant 0 : index
    %c0_57 = arith.constant 0 : index
    %77 = vector.load %arg36[%c0_56, %c0_57] : memref<4x2xf32, #tpu.memory_space<vmem>>, vector<4x2xf32>
    %78 = arith.addf %76, %77 : vector<4x2xf32>
    %79 = vector.extract_strided_slice %70 {offsets = [0, 0], sizes = [2, 32], strides = [1, 1]} : vector<4x32xf32> to vector<2x32xf32>
    %80 = vector.extract_strided_slice %78 {offsets = [0, 0], sizes = [2, 2], strides = [1, 1]} : vector<4x2xf32> to vector<2x2xf32>
    %81 = vector.extract_strided_slice %80 {offsets = [0, 0], sizes = [1, 2], strides = [1, 1]} : vector<2x2xf32> to vector<1x2xf32>
    %82 = vector.broadcast %81 : vector<1x2xf32> to vector<2x2xf32>
    %83 = arith.subf %80, %82 : vector<2x2xf32>
    %c0_58 = arith.constant 0 : index
    %c0_59 = arith.constant 0 : index
    %84 = vector.load %arg38[%c0_58, %c0_59] : memref<4x2xf32, #tpu.memory_space<vmem>>, vector<2x2xf32>
    tpu.vector_store %arg38[%c0_58, %c0_59], %83 {strides = array<i32>} : memref<4x2xf32, #tpu.memory_space<vmem>>, vector<2x2xf32>,
    %c0_60 = arith.constant 0 : index
    %c0_61 = arith.constant 0 : index
    %85 = vector.load %arg39[%c0_60, %c0_61] : memref<4x32xf32, #tpu.memory_space<vmem>>, vector<2x32xf32>
    tpu.vector_store %arg39[%c0_60, %c0_61], %79 {strides = array<i32>} : memref<4x32xf32, #tpu.memory_space<vmem>>, vector<2x32xf32>,
    %86 = vector.extract_strided_slice %80 {offsets = [1, 0], sizes = [1, 2], strides = [1, 1]} : vector<2x2xf32> to vector<1x2xf32>
    %87 = vector.broadcast %86 : vector<1x2xf32> to vector<2x2xf32>
    %88 = arith.subf %80, %87 : vector<2x2xf32>
    %c2_62 = arith.constant 2 : index
    %c0_63 = arith.constant 0 : index
    %89 = vector.load %arg38[%c2_62, %c0_63] : memref<4x2xf32, #tpu.memory_space<vmem>>, vector<2x2xf32>
    tpu.vector_store %arg38[%c2_62, %c0_63], %88 {strides = array<i32>} : memref<4x2xf32, #tpu.memory_space<vmem>>, vector<2x2xf32>,
    %c2_64 = arith.constant 2 : index
    %c0_65 = arith.constant 0 : index
    %90 = vector.load %arg39[%c2_64, %c0_65] : memref<4x32xf32, #tpu.memory_space<vmem>>, vector<2x32xf32>
    tpu.vector_store %arg39[%c2_64, %c0_65], %79 {strides = array<i32>} : memref<4x32xf32, #tpu.memory_space<vmem>>, vector<2x32xf32>,
    %c0_66 = arith.constant 0 : index
    %c0_67 = arith.constant 0 : index
    %91 = vector.load %arg38[%c0_66, %c0_67] : memref<4x2xf32, #tpu.memory_space<vmem>>, vector<4x2xf32>
    %c0_68 = arith.constant 0 : index
    %c0_69 = arith.constant 0 : index
    %92 = vector.load %arg39[%c0_68, %c0_69] : memref<4x32xf32, #tpu.memory_space<vmem>>, vector<4x32xf32>
    %c0_70 = arith.constant 0 : index
    %c0_71 = arith.constant 0 : index
    %93 = vector.load %arg12[%c0_70, %c0_71] : memref<2x32xf32, #tpu.memory_space<vmem>>, vector<2x32xf32>
    %cst_72 = arith.constant dense<0.000000e+00> : vector<4x32xf32>
    %94 = tpu.matmul %91, %93, %cst_72 {dimension_numbers = #tpu.dot_dimension_numbers<[1], [0], [0], [1], [0, 0, 1, 1], [], []>} : vector<4x2xf32>, vector<2x32xf32>, vector<4x32xf32> -> vector<4x32xf32>
    %c0_73 = arith.constant 0 : index
    %c0_74 = arith.constant 0 : index
    %95 = vector.load %arg13[%c0_73, %c0_74] : memref<1x32xf32, #tpu.memory_space<vmem>>, vector<1x32xf32>
    %96 = vector.broadcast %95 : vector<1x32xf32> to vector<4x32xf32>
    %97 = arith.addf %94, %96 : vector<4x32xf32>
    %c0_75 = arith.constant 0 : index
    %c0_76 = arith.constant 0 : index
    %98 = vector.load %arg14[%c0_75, %c0_76] : memref<32x512xf32, #tpu.memory_space<vmem>>, vector<32x512xf32>
    %cst_77 = arith.constant dense<0.000000e+00> : vector<4x512xf32>
    %99 = tpu.matmul %97, %98, %cst_77 {dimension_numbers = #tpu.dot_dimension_numbers<[1], [0], [0], [1], [0, 0, 1, 1], [], []>} : vector<4x32xf32>, vector<32x512xf32>, vector<4x512xf32> -> vector<4x512xf32>
    %c0_78 = arith.constant 0 : index
    %c0_79 = arith.constant 0 : index
    %100 = vector.load %arg15[%c0_78, %c0_79] : memref<32x512xf32, #tpu.memory_space<vmem>>, vector<32x512xf32>
    %cst_80 = arith.constant dense<0.000000e+00> : vector<4x512xf32>
    %101 = tpu.matmul %92, %100, %cst_80 {dimension_numbers = #tpu.dot_dimension_numbers<[1], [0], [0], [1], [0, 0, 1, 1], [], []>} : vector<4x32xf32>, vector<32x512xf32>, vector<4x512xf32> -> vector<4x512xf32>
    %102 = arith.addf %99, %101 : vector<4x512xf32>
    %c0_81 = arith.constant 0 : index
    %c0_82 = arith.constant 0 : index
    %103 = vector.load %arg16[%c0_81, %c0_82] : memref<1x512xf32, #tpu.memory_space<vmem>>, vector<1x512xf32>
    %104 = vector.broadcast %103 : vector<1x512xf32> to vector<4x512xf32>
    %105 = arith.addf %102, %104 : vector<4x512xf32>
    %c0_83 = arith.constant 0 : index
    %c0_84 = arith.constant 0 : index
    %106 = vector.load %arg17[%c0_83, %c0_84] : memref<1x512xf32, #tpu.memory_space<vmem>>, vector<1x512xf32>
    %c0_85 = arith.constant 0 : index
    %c0_86 = arith.constant 0 : index
    %107 = vector.load %arg18[%c0_85, %c0_86] : memref<1x512xf32, #tpu.memory_space<vmem>>, vector<1x512xf32>
    %cst_87 = arith.constant dense<0.000000e+00> : vector<512xf32>
    %108 = vector.multi_reduction <add>, %105, %cst_87 [0] : vector<4x512xf32> to vector<512xf32>
    %109 = vector.shape_cast %108 : vector<512xf32> to vector<1x512xf32>
    %cst_88 = arith.constant 4.000000e+00 : f32
    %110 = vector.broadcast %cst_88 : f32 to vector<1x512xf32>
    %111 = arith.divf %109, %110 : vector<1x512xf32>
    %112 = vector.broadcast %111 : vector<1x512xf32> to vector<4x512xf32>
    %113 = arith.subf %105, %112 : vector<4x512xf32>
    %114 = arith.mulf %113, %113 : vector<4x512xf32>
    %cst_89 = arith.constant dense<0.000000e+00> : vector<512xf32>
    %115 = vector.multi_reduction <add>, %114, %cst_89 [0] : vector<4x512xf32> to vector<512xf32>
    %116 = vector.shape_cast %115 : vector<512xf32> to vector<1x512xf32>
    %cst_90 = arith.constant 4.000000e+00 : f32
    %117 = vector.broadcast %cst_90 : f32 to vector<1x512xf32>
    %118 = arith.divf %116, %117 : vector<1x512xf32>
    %119 = vector.broadcast %111 : vector<1x512xf32> to vector<4x512xf32>
    %120 = arith.subf %105, %119 : vector<4x512xf32>
    %cst_91 = arith.constant 9.99999974E-6 : f32
    %121 = vector.broadcast %cst_91 : f32 to vector<1x512xf32>
    %122 = arith.addf %118, %121 : vector<1x512xf32>
    %123 = math.rsqrt %122 : vector<1x512xf32>
    %124 = vector.broadcast %123 : vector<1x512xf32> to vector<4x512xf32>
    %125 = arith.mulf %120, %124 : vector<4x512xf32>
    %126 = vector.broadcast %106 : vector<1x512xf32> to vector<4x512xf32>
    %127 = arith.mulf %125, %126 : vector<4x512xf32>
    %128 = vector.broadcast %107 : vector<1x512xf32> to vector<4x512xf32>
    %129 = arith.addf %127, %128 : vector<4x512xf32>
    %cst_92 = arith.constant 0.000000e+00 : f32
    %130 = vector.broadcast %cst_92 : f32 to vector<4x512xf32>
    %131 = arith.maximumf %129, %130 : vector<4x512xf32>
    %c0_93 = arith.constant 0 : index
    %c0_94 = arith.constant 0 : index
    %132 = vector.load %arg19[%c0_93, %c0_94] : memref<512x64xf32, #tpu.memory_space<vmem>>, vector<512x64xf32>
    %cst_95 = arith.constant dense<0.000000e+00> : vector<4x64xf32>
    %133 = tpu.matmul %131, %132, %cst_95 {dimension_numbers = #tpu.dot_dimension_numbers<[1], [0], [0], [1], [0, 0, 1, 1], [], []>} : vector<4x512xf32>, vector<512x64xf32>, vector<4x64xf32> -> vector<4x64xf32>
    %c0_96 = arith.constant 0 : index
    %c0_97 = arith.constant 0 : index
    %134 = vector.load %arg20[%c0_96, %c0_97] : memref<1x64xf32, #tpu.memory_space<vmem>>, vector<1x64xf32>
    %135 = vector.broadcast %134 : vector<1x64xf32> to vector<4x64xf32>
    %136 = arith.addf %133, %135 : vector<4x64xf32>
    %c0_98 = arith.constant 0 : index
    %c0_99 = arith.constant 0 : index
    %137 = vector.load %arg21[%c0_98, %c0_99] : memref<1x64xf32, #tpu.memory_space<vmem>>, vector<1x64xf32>
    %c0_100 = arith.constant 0 : index
    %c0_101 = arith.constant 0 : index
    %138 = vector.load %arg22[%c0_100, %c0_101] : memref<1x64xf32, #tpu.memory_space<vmem>>, vector<1x64xf32>
    %cst_102 = arith.constant dense<0.000000e+00> : vector<64xf32>
    %139 = vector.multi_reduction <add>, %136, %cst_102 [0] : vector<4x64xf32> to vector<64xf32>
    %140 = vector.shape_cast %139 : vector<64xf32> to vector<1x64xf32>
    %cst_103 = arith.constant 4.000000e+00 : f32
    %141 = vector.broadcast %cst_103 : f32 to vector<1x64xf32>
    %142 = arith.divf %140, %141 : vector<1x64xf32>
    %143 = vector.broadcast %142 : vector<1x64xf32> to vector<4x64xf32>
    %144 = arith.subf %136, %143 : vector<4x64xf32>
    %145 = arith.mulf %144, %144 : vector<4x64xf32>
    %cst_104 = arith.constant dense<0.000000e+00> : vector<64xf32>
    %146 = vector.multi_reduction <add>, %145, %cst_104 [0] : vector<4x64xf32> to vector<64xf32>
    %147 = vector.shape_cast %146 : vector<64xf32> to vector<1x64xf32>
    %cst_105 = arith.constant 4.000000e+00 : f32
    %148 = vector.broadcast %cst_105 : f32 to vector<1x64xf32>
    %149 = arith.divf %147, %148 : vector<1x64xf32>
    %150 = vector.broadcast %142 : vector<1x64xf32> to vector<4x64xf32>
    %151 = arith.subf %136, %150 : vector<4x64xf32>
    %cst_106 = arith.constant 9.99999974E-6 : f32
    %152 = vector.broadcast %cst_106 : f32 to vector<1x64xf32>
    %153 = arith.addf %149, %152 : vector<1x64xf32>
    %154 = math.rsqrt %153 : vector<1x64xf32>
    %155 = vector.broadcast %154 : vector<1x64xf32> to vector<4x64xf32>
    %156 = arith.mulf %151, %155 : vector<4x64xf32>
    %157 = vector.broadcast %137 : vector<1x64xf32> to vector<4x64xf32>
    %158 = arith.mulf %156, %157 : vector<4x64xf32>
    %159 = vector.broadcast %138 : vector<1x64xf32> to vector<4x64xf32>
    %160 = arith.addf %158, %159 : vector<4x64xf32>
    %cst_107 = arith.constant 0.000000e+00 : f32
    %161 = vector.broadcast %cst_107 : f32 to vector<4x64xf32>
    %162 = arith.maximumf %160, %161 : vector<4x64xf32>
    %163 = vector.extract_strided_slice %162 {offsets = [0, 0], sizes = [2, 64], strides = [1, 1]} : vector<4x64xf32> to vector<2x64xf32>
    %cst_108 = arith.constant dense<0xFF800000> : vector<64xf32>
    %164 = vector.multi_reduction <maximumf>, %163, %cst_108 [0] : vector<2x64xf32> to vector<64xf32>
    %165 = vector.shape_cast %164 : vector<64xf32> to vector<1x64xf32>
    %c0_109 = arith.constant 0 : index
    %c0_110 = arith.constant 0 : index
    %166 = vector.load %arg40[%c0_109, %c0_110] : memref<4x64xf32, #tpu.memory_space<vmem>>, vector<1x64xf32>
    tpu.vector_store %arg40[%c0_109, %c0_110], %165 {strides = array<i32>} : memref<4x64xf32, #tpu.memory_space<vmem>>, vector<1x64xf32>,
    %167 = vector.extract_strided_slice %162 {offsets = [2, 0], sizes = [2, 64], strides = [1, 1]} : vector<4x64xf32> to vector<2x64xf32>
    %cst_111 = arith.constant dense<0xFF800000> : vector<64xf32>
    %168 = vector.multi_reduction <maximumf>, %167, %cst_111 [0] : vector<2x64xf32> to vector<64xf32>
    %169 = vector.shape_cast %168 : vector<64xf32> to vector<1x64xf32>
    %c1_112 = arith.constant 1 : index
    %c0_113 = arith.constant 0 : index
    %170 = vector.load %arg40[%c1_112, %c0_113] : memref<4x64xf32, #tpu.memory_space<vmem>>, vector<1x64xf32>
    tpu.vector_store %arg40[%c1_112, %c0_113], %169 {strides = array<i32>} : memref<4x64xf32, #tpu.memory_space<vmem>>, vector<1x64xf32>,
    %171 = vector.extract_strided_slice %70 {offsets = [2, 0], sizes = [2, 32], strides = [1, 1]} : vector<4x32xf32> to vector<2x32xf32>
    %172 = vector.extract_strided_slice %78 {offsets = [2, 0], sizes = [2, 2], strides = [1, 1]} : vector<4x2xf32> to vector<2x2xf32>
    %173 = vector.extract_strided_slice %172 {offsets = [0, 0], sizes = [1, 2], strides = [1, 1]} : vector<2x2xf32> to vector<1x2xf32>
    %174 = vector.broadcast %173 : vector<1x2xf32> to vector<2x2xf32>
    %175 = arith.subf %172, %174 : vector<2x2xf32>
    %c0_114 = arith.constant 0 : index
    %c0_115 = arith.constant 0 : index
    %176 = vector.load %arg38[%c0_114, %c0_115] : memref<4x2xf32, #tpu.memory_space<vmem>>, vector<2x2xf32>
    tpu.vector_store %arg38[%c0_114, %c0_115], %175 {strides = array<i32>} : memref<4x2xf32, #tpu.memory_space<vmem>>, vector<2x2xf32>,
    %c0_116 = arith.constant 0 : index
    %c0_117 = arith.constant 0 : index
    %177 = vector.load %arg39[%c0_116, %c0_117] : memref<4x32xf32, #tpu.memory_space<vmem>>, vector<2x32xf32>
    tpu.vector_store %arg39[%c0_116, %c0_117], %171 {strides = array<i32>} : memref<4x32xf32, #tpu.memory_space<vmem>>, vector<2x32xf32>,
    %178 = vector.extract_strided_slice %172 {offsets = [1, 0], sizes = [1, 2], strides = [1, 1]} : vector<2x2xf32> to vector<1x2xf32>
    %179 = vector.broadcast %178 : vector<1x2xf32> to vector<2x2xf32>
    %180 = arith.subf %172, %179 : vector<2x2xf32>
    %c2_118 = arith.constant 2 : index
    %c0_119 = arith.constant 0 : index
    %181 = vector.load %arg38[%c2_118, %c0_119] : memref<4x2xf32, #tpu.memory_space<vmem>>, vector<2x2xf32>
    tpu.vector_store %arg38[%c2_118, %c0_119], %180 {strides = array<i32>} : memref<4x2xf32, #tpu.memory_space<vmem>>, vector<2x2xf32>,
    %c2_120 = arith.constant 2 : index
    %c0_121 = arith.constant 0 : index
    %182 = vector.load %arg39[%c2_120, %c0_121] : memref<4x32xf32, #tpu.memory_space<vmem>>, vector<2x32xf32>
    tpu.vector_store %arg39[%c2_120, %c0_121], %171 {strides = array<i32>} : memref<4x32xf32, #tpu.memory_space<vmem>>, vector<2x32xf32>,
    %c0_122 = arith.constant 0 : index
    %c0_123 = arith.constant 0 : index
    %183 = vector.load %arg38[%c0_122, %c0_123] : memref<4x2xf32, #tpu.memory_space<vmem>>, vector<4x2xf32>
    %c0_124 = arith.constant 0 : index
    %c0_125 = arith.constant 0 : index
    %184 = vector.load %arg39[%c0_124, %c0_125] : memref<4x32xf32, #tpu.memory_space<vmem>>, vector<4x32xf32>
    %c0_126 = arith.constant 0 : index
    %c0_127 = arith.constant 0 : index
    %185 = vector.load %arg12[%c0_126, %c0_127] : memref<2x32xf32, #tpu.memory_space<vmem>>, vector<2x32xf32>
    %cst_128 = arith.constant dense<0.000000e+00> : vector<4x32xf32>
    %186 = tpu.matmul %183, %185, %cst_128 {dimension_numbers = #tpu.dot_dimension_numbers<[1], [0], [0], [1], [0, 0, 1, 1], [], []>} : vector<4x2xf32>, vector<2x32xf32>, vector<4x32xf32> -> vector<4x32xf32>
    %c0_129 = arith.constant 0 : index
    %c0_130 = arith.constant 0 : index
    %187 = vector.load %arg13[%c0_129, %c0_130] : memref<1x32xf32, #tpu.memory_space<vmem>>, vector<1x32xf32>
    %188 = vector.broadcast %187 : vector<1x32xf32> to vector<4x32xf32>
    %189 = arith.addf %186, %188 : vector<4x32xf32>
    %c0_131 = arith.constant 0 : index
    %c0_132 = arith.constant 0 : index
    %190 = vector.load %arg14[%c0_131, %c0_132] : memref<32x512xf32, #tpu.memory_space<vmem>>, vector<32x512xf32>
    %cst_133 = arith.constant dense<0.000000e+00> : vector<4x512xf32>
    %191 = tpu.matmul %189, %190, %cst_133 {dimension_numbers = #tpu.dot_dimension_numbers<[1], [0], [0], [1], [0, 0, 1, 1], [], []>} : vector<4x32xf32>, vector<32x512xf32>, vector<4x512xf32> -> vector<4x512xf32>
    %c0_134 = arith.constant 0 : index
    %c0_135 = arith.constant 0 : index
    %192 = vector.load %arg15[%c0_134, %c0_135] : memref<32x512xf32, #tpu.memory_space<vmem>>, vector<32x512xf32>
    %cst_136 = arith.constant dense<0.000000e+00> : vector<4x512xf32>
    %193 = tpu.matmul %184, %192, %cst_136 {dimension_numbers = #tpu.dot_dimension_numbers<[1], [0], [0], [1], [0, 0, 1, 1], [], []>} : vector<4x32xf32>, vector<32x512xf32>, vector<4x512xf32> -> vector<4x512xf32>
    %194 = arith.addf %191, %193 : vector<4x512xf32>
    %c0_137 = arith.constant 0 : index
    %c0_138 = arith.constant 0 : index
    %195 = vector.load %arg16[%c0_137, %c0_138] : memref<1x512xf32, #tpu.memory_space<vmem>>, vector<1x512xf32>
    %196 = vector.broadcast %195 : vector<1x512xf32> to vector<4x512xf32>
    %197 = arith.addf %194, %196 : vector<4x512xf32>
    %c0_139 = arith.constant 0 : index
    %c0_140 = arith.constant 0 : index
    %198 = vector.load %arg17[%c0_139, %c0_140] : memref<1x512xf32, #tpu.memory_space<vmem>>, vector<1x512xf32>
    %c0_141 = arith.constant 0 : index
    %c0_142 = arith.constant 0 : index
    %199 = vector.load %arg18[%c0_141, %c0_142] : memref<1x512xf32, #tpu.memory_space<vmem>>, vector<1x512xf32>
    %cst_143 = arith.constant dense<0.000000e+00> : vector<512xf32>
    %200 = vector.multi_reduction <add>, %197, %cst_143 [0] : vector<4x512xf32> to vector<512xf32>
    %201 = vector.shape_cast %200 : vector<512xf32> to vector<1x512xf32>
    %cst_144 = arith.constant 4.000000e+00 : f32
    %202 = vector.broadcast %cst_144 : f32 to vector<1x512xf32>
    %203 = arith.divf %201, %202 : vector<1x512xf32>
    %204 = vector.broadcast %203 : vector<1x512xf32> to vector<4x512xf32>
    %205 = arith.subf %197, %204 : vector<4x512xf32>
    %206 = arith.mulf %205, %205 : vector<4x512xf32>
    %cst_145 = arith.constant dense<0.000000e+00> : vector<512xf32>
    %207 = vector.multi_reduction <add>, %206, %cst_145 [0] : vector<4x512xf32> to vector<512xf32>
    %208 = vector.shape_cast %207 : vector<512xf32> to vector<1x512xf32>
    %cst_146 = arith.constant 4.000000e+00 : f32
    %209 = vector.broadcast %cst_146 : f32 to vector<1x512xf32>
    %210 = arith.divf %208, %209 : vector<1x512xf32>
    %211 = vector.broadcast %203 : vector<1x512xf32> to vector<4x512xf32>
    %212 = arith.subf %197, %211 : vector<4x512xf32>
    %cst_147 = arith.constant 9.99999974E-6 : f32
    %213 = vector.broadcast %cst_147 : f32 to vector<1x512xf32>
    %214 = arith.addf %210, %213 : vector<1x512xf32>
    %215 = math.rsqrt %214 : vector<1x512xf32>
    %216 = vector.broadcast %215 : vector<1x512xf32> to vector<4x512xf32>
    %217 = arith.mulf %212, %216 : vector<4x512xf32>
    %218 = vector.broadcast %198 : vector<1x512xf32> to vector<4x512xf32>
    %219 = arith.mulf %217, %218 : vector<4x512xf32>
    %220 = vector.broadcast %199 : vector<1x512xf32> to vector<4x512xf32>
    %221 = arith.addf %219, %220 : vector<4x512xf32>
    %cst_148 = arith.constant 0.000000e+00 : f32
    %222 = vector.broadcast %cst_148 : f32 to vector<4x512xf32>
    %223 = arith.maximumf %221, %222 : vector<4x512xf32>
    %c0_149 = arith.constant 0 : index
    %c0_150 = arith.constant 0 : index
    %224 = vector.load %arg19[%c0_149, %c0_150] : memref<512x64xf32, #tpu.memory_space<vmem>>, vector<512x64xf32>
    %cst_151 = arith.constant dense<0.000000e+00> : vector<4x64xf32>
    %225 = tpu.matmul %223, %224, %cst_151 {dimension_numbers = #tpu.dot_dimension_numbers<[1], [0], [0], [1], [0, 0, 1, 1], [], []>} : vector<4x512xf32>, vector<512x64xf32>, vector<4x64xf32> -> vector<4x64xf32>
    %c0_152 = arith.constant 0 : index
    %c0_153 = arith.constant 0 : index
    %226 = vector.load %arg20[%c0_152, %c0_153] : memref<1x64xf32, #tpu.memory_space<vmem>>, vector<1x64xf32>
    %227 = vector.broadcast %226 : vector<1x64xf32> to vector<4x64xf32>
    %228 = arith.addf %225, %227 : vector<4x64xf32>
    %c0_154 = arith.constant 0 : index
    %c0_155 = arith.constant 0 : index
    %229 = vector.load %arg21[%c0_154, %c0_155] : memref<1x64xf32, #tpu.memory_space<vmem>>, vector<1x64xf32>
    %c0_156 = arith.constant 0 : index
    %c0_157 = arith.constant 0 : index
    %230 = vector.load %arg22[%c0_156, %c0_157] : memref<1x64xf32, #tpu.memory_space<vmem>>, vector<1x64xf32>
    %cst_158 = arith.constant dense<0.000000e+00> : vector<64xf32>
    %231 = vector.multi_reduction <add>, %228, %cst_158 [0] : vector<4x64xf32> to vector<64xf32>
    %232 = vector.shape_cast %231 : vector<64xf32> to vector<1x64xf32>
    %cst_159 = arith.constant 4.000000e+00 : f32
    %233 = vector.broadcast %cst_159 : f32 to vector<1x64xf32>
    %234 = arith.divf %232, %233 : vector<1x64xf32>
    %235 = vector.broadcast %234 : vector<1x64xf32> to vector<4x64xf32>
    %236 = arith.subf %228, %235 : vector<4x64xf32>
    %237 = arith.mulf %236, %236 : vector<4x64xf32>
    %cst_160 = arith.constant dense<0.000000e+00> : vector<64xf32>
    %238 = vector.multi_reduction <add>, %237, %cst_160 [0] : vector<4x64xf32> to vector<64xf32>
    %239 = vector.shape_cast %238 : vector<64xf32> to vector<1x64xf32>
    %cst_161 = arith.constant 4.000000e+00 : f32
    %240 = vector.broadcast %cst_161 : f32 to vector<1x64xf32>
    %241 = arith.divf %239, %240 : vector<1x64xf32>
    %242 = vector.broadcast %234 : vector<1x64xf32> to vector<4x64xf32>
    %243 = arith.subf %228, %242 : vector<4x64xf32>
    %cst_162 = arith.constant 9.99999974E-6 : f32
    %244 = vector.broadcast %cst_162 : f32 to vector<1x64xf32>
    %245 = arith.addf %241, %244 : vector<1x64xf32>
    %246 = math.rsqrt %245 : vector<1x64xf32>
    %247 = vector.broadcast %246 : vector<1x64xf32> to vector<4x64xf32>
    %248 = arith.mulf %243, %247 : vector<4x64xf32>
    %249 = vector.broadcast %229 : vector<1x64xf32> to vector<4x64xf32>
    %250 = arith.mulf %248, %249 : vector<4x64xf32>
    %251 = vector.broadcast %230 : vector<1x64xf32> to vector<4x64xf32>
    %252 = arith.addf %250, %251 : vector<4x64xf32>
    %cst_163 = arith.constant 0.000000e+00 : f32
    %253 = vector.broadcast %cst_163 : f32 to vector<4x64xf32>
    %254 = arith.maximumf %252, %253 : vector<4x64xf32>
    %255 = vector.extract_strided_slice %254 {offsets = [0, 0], sizes = [2, 64], strides = [1, 1]} : vector<4x64xf32> to vector<2x64xf32>
    %cst_164 = arith.constant dense<0xFF800000> : vector<64xf32>
    %256 = vector.multi_reduction <maximumf>, %255, %cst_164 [0] : vector<2x64xf32> to vector<64xf32>
    %257 = vector.shape_cast %256 : vector<64xf32> to vector<1x64xf32>
    %c2_165 = arith.constant 2 : index
    %c0_166 = arith.constant 0 : index
    %258 = vector.load %arg40[%c2_165, %c0_166] : memref<4x64xf32, #tpu.memory_space<vmem>>, vector<1x64xf32>
    tpu.vector_store %arg40[%c2_165, %c0_166], %257 {strides = array<i32>} : memref<4x64xf32, #tpu.memory_space<vmem>>, vector<1x64xf32>,
    %259 = vector.extract_strided_slice %254 {offsets = [2, 0], sizes = [2, 64], strides = [1, 1]} : vector<4x64xf32> to vector<2x64xf32>
    %cst_167 = arith.constant dense<0xFF800000> : vector<64xf32>
    %260 = vector.multi_reduction <maximumf>, %259, %cst_167 [0] : vector<2x64xf32> to vector<64xf32>
    %261 = vector.shape_cast %260 : vector<64xf32> to vector<1x64xf32>
    %c3_168 = arith.constant 3 : index
    %c0_169 = arith.constant 0 : index
    %262 = vector.load %arg40[%c3_168, %c0_169] : memref<4x64xf32, #tpu.memory_space<vmem>>, vector<1x64xf32>
    tpu.vector_store %arg40[%c3_168, %c0_169], %261 {strides = array<i32>} : memref<4x64xf32, #tpu.memory_space<vmem>>, vector<1x64xf32>,
    %c0_170 = arith.constant 0 : index
    %c0_171 = arith.constant 0 : index
    %263 = vector.load %arg40[%c0_170, %c0_171] : memref<4x64xf32, #tpu.memory_space<vmem>>, vector<4x64xf32>
    %c0_172 = arith.constant 0 : index
    %c0_173 = arith.constant 0 : index
    %264 = vector.load %arg23[%c0_172, %c0_173] : memref<32x64xf32, #tpu.memory_space<vmem>>, vector<32x64xf32>
    %cst_174 = arith.constant dense<0.000000e+00> : vector<4x64xf32>
    %265 = tpu.matmul %70, %264, %cst_174 {dimension_numbers = #tpu.dot_dimension_numbers<[1], [0], [0], [1], [0, 0, 1, 1], [], []>} : vector<4x32xf32>, vector<32x64xf32>, vector<4x64xf32> -> vector<4x64xf32>
    %c0_175 = arith.constant 0 : index
    %c0_176 = arith.constant 0 : index
    %266 = vector.load %arg24[%c0_175, %c0_176] : memref<64x64xf32, #tpu.memory_space<vmem>>, vector<64x64xf32>
    %cst_177 = arith.constant dense<0.000000e+00> : vector<4x64xf32>
    %267 = tpu.matmul %263, %266, %cst_177 {dimension_numbers = #tpu.dot_dimension_numbers<[1], [0], [0], [1], [0, 0, 1, 1], [], []>} : vector<4x64xf32>, vector<64x64xf32>, vector<4x64xf32> -> vector<4x64xf32>
    %268 = arith.addf %265, %267 : vector<4x64xf32>
    %c0_178 = arith.constant 0 : index
    %c0_179 = arith.constant 0 : index
    %269 = vector.load %arg25[%c0_178, %c0_179] : memref<1x64xf32, #tpu.memory_space<vmem>>, vector<1x64xf32>
    %270 = vector.broadcast %269 : vector<1x64xf32> to vector<4x64xf32>
    %271 = arith.addf %268, %270 : vector<4x64xf32>
    %c0_180 = arith.constant 0 : index
    %c0_181 = arith.constant 0 : index
    %272 = vector.load %arg26[%c0_180, %c0_181] : memref<1x64xf32, #tpu.memory_space<vmem>>, vector<1x64xf32>
    %c0_182 = arith.constant 0 : index
    %c0_183 = arith.constant 0 : index
    %273 = vector.load %arg27[%c0_182, %c0_183] : memref<1x64xf32, #tpu.memory_space<vmem>>, vector<1x64xf32>
    %cst_184 = arith.constant dense<0.000000e+00> : vector<64xf32>
    %274 = vector.multi_reduction <add>, %271, %cst_184 [0] : vector<4x64xf32> to vector<64xf32>
    %275 = vector.shape_cast %274 : vector<64xf32> to vector<1x64xf32>
    %cst_185 = arith.constant 4.000000e+00 : f32
    %276 = vector.broadcast %cst_185 : f32 to vector<1x64xf32>
    %277 = arith.divf %275, %276 : vector<1x64xf32>
    %278 = vector.broadcast %277 : vector<1x64xf32> to vector<4x64xf32>
    %279 = arith.subf %271, %278 : vector<4x64xf32>
    %280 = arith.mulf %279, %279 : vector<4x64xf32>
    %cst_186 = arith.constant dense<0.000000e+00> : vector<64xf32>
    %281 = vector.multi_reduction <add>, %280, %cst_186 [0] : vector<4x64xf32> to vector<64xf32>
    %282 = vector.shape_cast %281 : vector<64xf32> to vector<1x64xf32>
    %cst_187 = arith.constant 4.000000e+00 : f32
    %283 = vector.broadcast %cst_187 : f32 to vector<1x64xf32>
    %284 = arith.divf %282, %283 : vector<1x64xf32>
    %285 = vector.broadcast %277 : vector<1x64xf32> to vector<4x64xf32>
    %286 = arith.subf %271, %285 : vector<4x64xf32>
    %cst_188 = arith.constant 9.99999974E-6 : f32
    %287 = vector.broadcast %cst_188 : f32 to vector<1x64xf32>
    %288 = arith.addf %284, %287 : vector<1x64xf32>
    %289 = math.rsqrt %288 : vector<1x64xf32>
    %290 = vector.broadcast %289 : vector<1x64xf32> to vector<4x64xf32>
    %291 = arith.mulf %286, %290 : vector<4x64xf32>
    %292 = vector.broadcast %272 : vector<1x64xf32> to vector<4x64xf32>
    %293 = arith.mulf %291, %292 : vector<4x64xf32>
    %294 = vector.broadcast %273 : vector<1x64xf32> to vector<4x64xf32>
    %295 = arith.addf %293, %294 : vector<4x64xf32>
    %cst_189 = arith.constant 0.000000e+00 : f32
    %296 = vector.broadcast %cst_189 : f32 to vector<4x64xf32>
    %297 = arith.maximumf %295, %296 : vector<4x64xf32>
    %c0_190 = arith.constant 0 : index
    %c0_191 = arith.constant 0 : index
    %298 = vector.load %arg28[%c0_190, %c0_191] : memref<64x32xf32, #tpu.memory_space<vmem>>, vector<64x32xf32>
    %cst_192 = arith.constant dense<0.000000e+00> : vector<4x32xf32>
    %299 = tpu.matmul %297, %298, %cst_192 {dimension_numbers = #tpu.dot_dimension_numbers<[1], [0], [0], [1], [0, 0, 1, 1], [], []>} : vector<4x64xf32>, vector<64x32xf32>, vector<4x32xf32> -> vector<4x32xf32>
    %c0_193 = arith.constant 0 : index
    %c0_194 = arith.constant 0 : index
    %300 = vector.load %arg29[%c0_193, %c0_194] : memref<1x32xf32, #tpu.memory_space<vmem>>, vector<1x32xf32>
    %301 = vector.broadcast %300 : vector<1x32xf32> to vector<4x32xf32>
    %302 = arith.addf %299, %301 : vector<4x32xf32>
    %c0_195 = arith.constant 0 : index
    %c0_196 = arith.constant 0 : index
    %303 = vector.load %arg30[%c0_195, %c0_196] : memref<1x32xf32, #tpu.memory_space<vmem>>, vector<1x32xf32>
    %c0_197 = arith.constant 0 : index
    %c0_198 = arith.constant 0 : index
    %304 = vector.load %arg31[%c0_197, %c0_198] : memref<1x32xf32, #tpu.memory_space<vmem>>, vector<1x32xf32>
    %cst_199 = arith.constant dense<0.000000e+00> : vector<32xf32>
    %305 = vector.multi_reduction <add>, %302, %cst_199 [0] : vector<4x32xf32> to vector<32xf32>
    %306 = vector.shape_cast %305 : vector<32xf32> to vector<1x32xf32>
    %cst_200 = arith.constant 4.000000e+00 : f32
    %307 = vector.broadcast %cst_200 : f32 to vector<1x32xf32>
    %308 = arith.divf %306, %307 : vector<1x32xf32>
    %309 = vector.broadcast %308 : vector<1x32xf32> to vector<4x32xf32>
    %310 = arith.subf %302, %309 : vector<4x32xf32>
    %311 = arith.mulf %310, %310 : vector<4x32xf32>
    %cst_201 = arith.constant dense<0.000000e+00> : vector<32xf32>
    %312 = vector.multi_reduction <add>, %311, %cst_201 [0] : vector<4x32xf32> to vector<32xf32>
    %313 = vector.shape_cast %312 : vector<32xf32> to vector<1x32xf32>
    %cst_202 = arith.constant 4.000000e+00 : f32
    %314 = vector.broadcast %cst_202 : f32 to vector<1x32xf32>
    %315 = arith.divf %313, %314 : vector<1x32xf32>
    %316 = vector.broadcast %308 : vector<1x32xf32> to vector<4x32xf32>
    %317 = arith.subf %302, %316 : vector<4x32xf32>
    %cst_203 = arith.constant 9.99999974E-6 : f32
    %318 = vector.broadcast %cst_203 : f32 to vector<1x32xf32>
    %319 = arith.addf %315, %318 : vector<1x32xf32>
    %320 = math.rsqrt %319 : vector<1x32xf32>
    %321 = vector.broadcast %320 : vector<1x32xf32> to vector<4x32xf32>
    %322 = arith.mulf %317, %321 : vector<4x32xf32>
    %323 = vector.broadcast %303 : vector<1x32xf32> to vector<4x32xf32>
    %324 = arith.mulf %322, %323 : vector<4x32xf32>
    %325 = vector.broadcast %304 : vector<1x32xf32> to vector<4x32xf32>
    %326 = arith.addf %324, %325 : vector<4x32xf32>
    %cst_204 = arith.constant 0.000000e+00 : f32
    %327 = vector.broadcast %cst_204 : f32 to vector<4x32xf32>
    %328 = arith.maximumf %326, %327 : vector<4x32xf32>
    %c0_205 = arith.constant 0 : index
    %c0_206 = arith.constant 0 : index
    %329 = vector.load %arg34[%c0_205, %c0_206] : memref<4x32xf32, #tpu.memory_space<vmem>>, vector<4x32xf32>
    tpu.vector_store %arg34[%c0_205, %c0_206], %328 {strides = array<i32>} : memref<4x32xf32, #tpu.memory_space<vmem>>, vector<4x32xf32>,
    %c0_207 = arith.constant 0 : index
    %c0_208 = arith.constant 0 : index
    %330 = vector.load %arg36[%c0_207, %c0_208] : memref<4x2xf32, #tpu.memory_space<vmem>>, vector<4x2xf32>
    tpu.vector_store %arg36[%c0_207, %c0_208], %78 {strides = array<i32>} : memref<4x2xf32, #tpu.memory_space<vmem>>, vector<4x2xf32>,
    %c0_209 = arith.constant 0 : index
    %c0_210 = arith.constant 0 : index
    %331 = vector.load %arg5[%c0_209, %c0_210] : memref<2x32xf32, #tpu.memory_space<vmem>>, vector<2x32xf32>
    %cst_211 = arith.constant dense<0.000000e+00> : vector<4x32xf32>
    %332 = tpu.matmul %76, %331, %cst_211 {dimension_numbers = #tpu.dot_dimension_numbers<[1], [0], [0], [1], [0, 0, 1, 1], [], []>} : vector<4x2xf32>, vector<2x32xf32>, vector<4x32xf32> -> vector<4x32xf32>
    %c0_212 = arith.constant 0 : index
    %c0_213 = arith.constant 0 : index
    %333 = vector.load %arg6[%c0_212, %c0_213] : memref<1x32xf32, #tpu.memory_space<vmem>>, vector<1x32xf32>
    %334 = vector.broadcast %333 : vector<1x32xf32> to vector<4x32xf32>
    %335 = arith.addf %332, %334 : vector<4x32xf32>
    %c0_214 = arith.constant 0 : index
    %c0_215 = arith.constant 0 : index
    %336 = vector.load %arg37[%c0_214, %c0_215] : memref<4x32xf32, #tpu.memory_space<vmem>>, vector<4x32xf32>
    tpu.vector_store %arg37[%c0_214, %c0_215], %335 {strides = array<i32>} : memref<4x32xf32, #tpu.memory_space<vmem>>, vector<4x32xf32>,
    %337 = arith.index_cast %arg0 : i32 to index
    %c0_216 = arith.constant 0 : index
    %c0_217 = arith.constant 0 : index
    %338 = vector.load %arg32[%337, %c0_216, %c0_217] : memref<3x4x2xf32, #tpu.memory_space<vmem>>, vector<1x4x2xf32>
    %339 = vector.shape_cast %338 : vector<1x4x2xf32> to vector<4x2xf32>
    %340 = vector.shape_cast %76 : vector<4x2xf32> to vector<1x4x2xf32>
    tpu.vector_store %arg32[%337, %c0_216, %c0_217], %340 {strides = array<i32>} : memref<3x4x2xf32, #tpu.memory_space<vmem>>, vector<1x4x2xf32>,
    %c0_218 = arith.constant 0 : index
    %c0_219 = arith.constant 0 : index
    %341 = vector.load %arg33[%c0_218, %c0_219] : memref<4x32xf32, #tpu.memory_space<vmem>>, vector<4x32xf32>
    tpu.vector_store %arg33[%c0_218, %c0_219], %328 {strides = array<i32>} : memref<4x32xf32, #tpu.memory_space<vmem>>, vector<4x32xf32>,
    return
  }
  func.func @transform_0(%arg0: i32) -> (i32, i32) {
    %c0_i32 = arith.constant 0 : i32
    %c0_i32_0 = arith.constant 0 : i32
    %c0_i32_1 = arith.constant 0 : i32
    return %c0_i32, %c0_i32_0 : i32, i32
  }
  func.func @transform_1(%arg0: i32) -> (i32, i32) {
    %c0_i32 = arith.constant 0 : i32
    %c0_i32_0 = arith.constant 0 : i32
    %c0_i32_1 = arith.constant 0 : i32
    return %c0_i32, %c0_i32_0 : i32, i32
  }
  func.func @transform_2(%arg0: i32) -> (i32, i32) {
    %c0_i32 = arith.constant 0 : i32
    %c0_i32_0 = arith.constant 0 : i32
    %c0_i32_1 = arith.constant 0 : i32
    return %c0_i32, %c0_i32_0 : i32, i32
  }
  func.func @transform_3(%arg0: i32) -> (i32, i32) {
    %c0_i32 = arith.constant 0 : i32
    %c0_i32_0 = arith.constant 0 : i32
    %c0_i32_1 = arith.constant 0 : i32
    return %c0_i32, %c0_i32_0 : i32, i32
  }
  func.func @transform_4(%arg0: i32) -> (i32, i32) {
    %c0_i32 = arith.constant 0 : i32
    %c0_i32_0 = arith.constant 0 : i32
    %c0_i32_1 = arith.constant 0 : i32
    return %c0_i32, %c0_i32_0 : i32, i32
  }
  func.func @transform_5(%arg0: i32) -> (i32, i32) {
    %c0_i32 = arith.constant 0 : i32
    %c0_i32_0 = arith.constant 0 : i32
    %c0_i32_1 = arith.constant 0 : i32
    return %c0_i32, %c0_i32_0 : i32, i32
  }
  func.func @transform_6(%arg0: i32) -> (i32, i32, i32) {
    %c0_i32 = arith.constant 0 : i32
    %c0_i32_0 = arith.constant 0 : i32
    %c0_i32_1 = arith.constant 0 : i32
    %c0_i32_2 = arith.constant 0 : i32
    return %c0_i32, %c0_i32_0, %c0_i32_1 : i32, i32, i32
  }
  func.func @transform_7(%arg0: i32) -> (i32, i32, i32) {
    %c0_i32 = arith.constant 0 : i32
    %c0_i32_0 = arith.constant 0 : i32
    %c0_i32_1 = arith.constant 0 : i32
    %c0_i32_2 = arith.constant 0 : i32
    return %c0_i32, %c0_i32_0, %c0_i32_1 : i32, i32, i32
  }
  func.func @transform_8(%arg0: i32) -> (i32, i32, i32) {
    %c0_i32 = arith.constant 0 : i32
    %c0_i32_0 = arith.constant 0 : i32
    %c0_i32_1 = arith.constant 0 : i32
    %c0_i32_2 = arith.constant 0 : i32
    return %c0_i32, %c0_i32_0, %c0_i32_1 : i32, i32, i32
  }
  func.func @transform_9(%arg0: i32) -> (i32, i32) {
    %c0_i32 = arith.constant 0 : i32
    %c0_i32_0 = arith.constant 0 : i32
    %c0_i32_1 = arith.constant 0 : i32
    return %c0_i32, %c0_i32_0 : i32, i32
  }
  func.func @transform_10(%arg0: i32) -> (i32, i32) {
    %c0_i32 = arith.constant 0 : i32
    %c0_i32_0 = arith.constant 0 : i32
    %c0_i32_1 = arith.constant 0 : i32
    return %c0_i32, %c0_i32_0 : i32, i32
  }
  func.func @transform_11(%arg0: i32) -> (i32, i32) {
    %c0_i32 = arith.constant 0 : i32
    %c0_i32_0 = arith.constant 0 : i32
    %c0_i32_1 = arith.constant 0 : i32
    return %c0_i32, %c0_i32_0 : i32, i32
  }
  func.func @transform_12(%arg0: i32) -> (i32, i32) {
    %c0_i32 = arith.constant 0 : i32
    %c0_i32_0 = arith.constant 0 : i32
    %c0_i32_1 = arith.constant 0 : i32
    return %c0_i32, %c0_i32_0 : i32, i32
  }
  func.func @transform_13(%arg0: i32) -> (i32, i32) {
    %c0_i32 = arith.constant 0 : i32
    %c0_i32_0 = arith.constant 0 : i32
    %c0_i32_1 = arith.constant 0 : i32
    return %c0_i32, %c0_i32_0 : i32, i32
  }
  func.func @transform_14(%arg0: i32) -> (i32, i32) {
    %c0_i32 = arith.constant 0 : i32
    %c0_i32_0 = arith.constant 0 : i32
    %c0_i32_1 = arith.constant 0 : i32
    return %c0_i32, %c0_i32_0 : i32, i32
  }
  func.func @transform_15(%arg0: i32) -> (i32, i32) {
    %c0_i32 = arith.constant 0 : i32
    %c0_i32_0 = arith.constant 0 : i32
    %c0_i32_1 = arith.constant 0 : i32
    return %c0_i32, %c0_i32_0 : i32, i32
  }
  func.func @transform_16(%arg0: i32) -> (i32, i32) {
    %c0_i32 = arith.constant 0 : i32
    %c0_i32_0 = arith.constant 0 : i32
    %c0_i32_1 = arith.constant 0 : i32
    return %c0_i32, %c0_i32_0 : i32, i32
  }
  func.func @transform_17(%arg0: i32) -> (i32, i32) {
    %c0_i32 = arith.constant 0 : i32
    %c0_i32_0 = arith.constant 0 : i32
    %c0_i32_1 = arith.constant 0 : i32
    return %c0_i32, %c0_i32_0 : i32, i32
  }
  func.func @transform_18(%arg0: i32) -> (i32, i32) {
    %c0_i32 = arith.constant 0 : i32
    %c0_i32_0 = arith.constant 0 : i32
    %c0_i32_1 = arith.constant 0 : i32
    return %c0_i32, %c0_i32_0 : i32, i32
  }
  func.func @transform_19(%arg0: i32) -> (i32, i32) {
    %c0_i32 = arith.constant 0 : i32
    %c0_i32_0 = arith.constant 0 : i32
    %c0_i32_1 = arith.constant 0 : i32
    return %c0_i32, %c0_i32_0 : i32, i32
  }
  func.func @transform_20(%arg0: i32) -> (i32, i32) {
    %c0_i32 = arith.constant 0 : i32
    %c0_i32_0 = arith.constant 0 : i32
    %c0_i32_1 = arith.constant 0 : i32
    return %c0_i32, %c0_i32_0 : i32, i32
  }
  func.func @transform_21(%arg0: i32) -> (i32, i32) {
    %c0_i32 = arith.constant 0 : i32
    %c0_i32_0 = arith.constant 0 : i32
    %c0_i32_1 = arith.constant 0 : i32
    return %c0_i32, %c0_i32_0 : i32, i32
  }
  func.func @transform_22(%arg0: i32) -> (i32, i32) {
    %c0_i32 = arith.constant 0 : i32
    %c0_i32_0 = arith.constant 0 : i32
    %c0_i32_1 = arith.constant 0 : i32
    return %c0_i32, %c0_i32_0 : i32, i32
  }
  func.func @transform_23(%arg0: i32) -> (i32, i32) {
    %c0_i32 = arith.constant 0 : i32
    %c0_i32_0 = arith.constant 0 : i32
    %c0_i32_1 = arith.constant 0 : i32
    return %c0_i32, %c0_i32_0 : i32, i32
  }
  func.func @transform_24(%arg0: i32) -> (i32, i32) {
    %c0_i32 = arith.constant 0 : i32
    %c0_i32_0 = arith.constant 0 : i32
    %c0_i32_1 = arith.constant 0 : i32
    return %c0_i32, %c0_i32_0 : i32, i32
  }
  func.func @transform_25(%arg0: i32) -> (i32, i32) {
    %c0_i32 = arith.constant 0 : i32
    %c0_i32_0 = arith.constant 0 : i32
    %c0_i32_1 = arith.constant 0 : i32
    return %c0_i32, %c0_i32_0 : i32, i32
  }
  func.func @transform_26(%arg0: i32) -> (i32, i32) {
    %c0_i32 = arith.constant 0 : i32
    %c0_i32_0 = arith.constant 0 : i32
    %c0_i32_1 = arith.constant 0 : i32
    return %c0_i32, %c0_i32_0 : i32, i32
  }
  func.func @transform_27(%arg0: i32) -> (i32, i32) {
    %c0_i32 = arith.constant 0 : i32
    %c0_i32_0 = arith.constant 0 : i32
    %c0_i32_1 = arith.constant 0 : i32
    return %c0_i32, %c0_i32_0 : i32, i32
  }
  func.func @transform_28(%arg0: i32) -> (i32, i32) {
    %c0_i32 = arith.constant 0 : i32
    %c0_i32_0 = arith.constant 0 : i32
    %c0_i32_1 = arith.constant 0 : i32
    return %c0_i32, %c0_i32_0 : i32, i32
  }
  func.func @transform_29(%arg0: i32) -> (i32, i32) {
    %c0_i32 = arith.constant 0 : i32
    %c0_i32_0 = arith.constant 0 : i32
    %c0_i32_1 = arith.constant 0 : i32
    return %c0_i32, %c0_i32_0 : i32, i32
  }
  func.func @transform_30(%arg0: i32) -> (i32, i32) {
    %c0_i32 = arith.constant 0 : i32
    %c0_i32_0 = arith.constant 0 : i32
    %c0_i32_1 = arith.constant 0 : i32
    return %c0_i32, %c0_i32_0 : i32, i32
  }
  func.func @transform_31(%arg0: i32) -> (i32, i32, i32) {
    %c0_i32 = arith.constant 0 : i32
    %c0_i32_0 = arith.constant 0 : i32
    %c0_i32_1 = arith.constant 0 : i32
    %c0_i32_2 = arith.constant 0 : i32
    return %c0_i32, %c0_i32_0, %c0_i32_1 : i32, i32, i32
  }
  func.func @transform_32(%arg0: i32) -> (i32, i32) {
    %c0_i32 = arith.constant 0 : i32
    %c0_i32_0 = arith.constant 0 : i32
    %c0_i32_1 = arith.constant 0 : i32
    return %c0_i32, %c0_i32_0 : i32, i32
  }
}

</mosaic_0001>

<llo_original>
// kernel: decoder_forward.1
$region0: #{decoder_forward.1}
  #allocation0 [shape = 'u32[]', space=smem, size = 0x4, offset = 0x4, fixed_abs, tag = 'smem constant byte address 0x4 - core index']
  #allocation1 [shape = 'u32[144,128]{1,0:T(1,128)}', space=vmem, size = 0x12000, scoped, tag = 'internal scratch']
  #allocation2 [shape = 'f32[4,32]{1,0:T(4,128)}', space=vmem, size = 0x800, scoped, tag = 'scratch operand']
  #allocation3 [shape = 'f32[4,32]{1,0:T(4,128)}', space=vmem, size = 0x800, scoped, tag = 'scratch operand']
  #allocation4 [shape = 'f32[4,2]{1,0:T(4,128)}', space=vmem, size = 0x800, scoped, tag = 'scratch operand']
  #allocation5 [shape = 'f32[4,32]{1,0:T(4,128)}', space=vmem, size = 0x800, scoped, tag = 'scratch operand']
  #allocation6 [shape = 'f32[4,2]{1,0:T(4,128)}', space=vmem, size = 0x800, scoped, tag = 'scratch operand']
  #allocation7 [shape = 'f32[4,32]{1,0:T(4,128)}', space=vmem, size = 0x800, scoped, tag = 'scratch operand']
  #allocation8 [shape = 'f32[4,64]{1,0:T(4,128)}', space=vmem, size = 0x800, scoped, tag = 'scratch operand']
  %s0 = inlined_call_operand.smem [shape: u32[33], index: -1, kind: input, shape index: {}]
  %s1 = sld [smem:[%s0]]
  %s2 = scalar_lea.smem %s0, 1
  %s3 = sld [smem:[%s2]]
  %s4 = scalar_lea.smem %s0, 2
  %s5 = sld [smem:[%s4]]
  %s6 = scalar_lea.smem %s0, 3
  %s7 = sld [smem:[%s6]]
  %s8 = scalar_lea.smem %s0, 4
  %s9 = sld [smem:[%s8]]
  %s10 = scalar_lea.smem %s0, 5
  %s11 = sld [smem:[%s10]]
  %s12 = scalar_lea.smem %s0, 6
  %s13 = sld [smem:[%s12]]
  %s14 = scalar_lea.smem %s0, 7
  %s15 = sld [smem:[%s14]]
  %s16 = scalar_lea.smem %s0, 8
  %s17 = sld [smem:[%s16]]
  %s18 = scalar_lea.smem %s0, 9
  %s19 = sld [smem:[%s18]]
  %s20 = scalar_lea.smem %s0, 10
  %s21 = sld [smem:[%s20]]
  %s22 = scalar_lea.smem %s0, 11
  %s23 = sld [smem:[%s22]]
  %s24 = scalar_lea.smem %s0, 12
  %s25 = sld [smem:[%s24]]
  %s26 = scalar_lea.smem %s0, 13
  %s27 = sld [smem:[%s26]]
  %s28 = scalar_lea.smem %s0, 14
  %s29 = sld [smem:[%s28]]
  %s30 = scalar_lea.smem %s0, 15
  %s31 = sld [smem:[%s30]]
  %s32 = scalar_lea.smem %s0, 16
  %s33 = sld [smem:[%s32]]
  %s34 = scalar_lea.smem %s0, 17
  %s35 = sld [smem:[%s34]]
  %s36 = scalar_lea.smem %s0, 18
  %s37 = sld [smem:[%s36]]
  %s38 = scalar_lea.smem %s0, 19
  %s39 = sld [smem:[%s38]]
  %s40 = scalar_lea.smem %s0, 20
  %s41 = sld [smem:[%s40]]
  %s42 = scalar_lea.smem %s0, 21
  %s43 = sld [smem:[%s42]]
  %s44 = scalar_lea.smem %s0, 22
  %s45 = sld [smem:[%s44]]
  %s46 = scalar_lea.smem %s0, 23
  %s47 = sld [smem:[%s46]]
  %s48 = scalar_lea.smem %s0, 24
  %s49 = sld [smem:[%s48]]
  %s50 = scalar_lea.smem %s0, 25
  %s51 = sld [smem:[%s50]]
  %s52 = scalar_lea.smem %s0, 26
  %s53 = sld [smem:[%s52]]
  %s54 = scalar_lea.smem %s0, 27
  %s55 = sld [smem:[%s54]]
  %s56 = scalar_lea.smem %s0, 28
  %s57 = sld [smem:[%s56]]
  %s58 = scalar_lea.smem %s0, 29
  %s59 = sld [smem:[%s58]]
  %s60 = scalar_lea.smem %s0, 30
  %s61 = sld [smem:[%s60]]
  %s62 = scalar_lea.smem %s0, 31
  %s63 = sld [smem:[%s62]]
  %s64 = scalar_lea.smem %s0, 32
  %s65 = sld [smem:[%s64]]
  %66 = xla_tuple %s63, %s65
  %s67 = sld [smem:[#allocation0]]
  $region169: #{decoder_forward.1} parent=0
    _
  %s69 = ssub.s32 1, %s67
  %s70 = scalar_select 0, %s69, %s67
  $region1: #{decoder_forward.1} parent=0
    #allocation9 [shape = 'u8[2048]{0}', space=vmem, size = 0x800, scoped, tag = 'output window, operand 1, single buffered']
    #allocation10 [shape = 's32[2]{0}', space=sflag, size = 0x8, scoped, tag = 'scoped memory for decoder_forward.1']
    %71 = vsyncpa [#allocation10], 0
    loop: start=0, step=1, limit=5
    $region2: #{decoder_forward.1} parent=1 // loop_pre_header
      _
    $region3: #{decoder_forward.1} parent=1 // loop_header
      %s73 = sphi 0, %s77
      %p74 = scmp.ge.s32.totalorder %s73, 5
      %s81 = sphi 0, %s81
      %s83 = sphi 0, %s81
      %s84 = sphi 0, %s83
      %s98 = sphi 0, %s84
      %s102 = sphi 0, %s102
      %s104 = sphi 0, %s102
      %s105 = sphi 0, %s104
      %s119 = sphi 0, %s105
      %s123 = sphi 0, %s123
      %s125 = sphi 0, %s123
      %s126 = sphi 0, %s125
      %s140 = sphi 0, %s126
      %s144 = sphi 0, %s144
      %s146 = sphi 0, %s144
      %s147 = sphi 0, %s146
      %s161 = sphi 0, %s147
      %s165 = sphi 0, %s165
      %s167 = sphi 0, %s165
      %s168 = sphi 0, %s167
      %s182 = sphi 0, %s168
      %s186 = sphi 0, %s186
      %s188 = sphi 0, %s186
      %s189 = sphi 0, %s188
      %s203 = sphi 0, %s189
      %s207 = sphi 0, %s207
      %s209 = sphi 0, %s207
      %s210 = sphi 0, %s209
      %s224 = sphi 0, %s210
      %s228 = sphi 0, %s228
      %s230 = sphi 0, %s228
      %s231 = sphi 0, %s230
      %s245 = sphi 0, %s231
      %s249 = sphi 0, %s249
      %s251 = sphi 0, %s249
      %s252 = sphi 0, %s251
      %s266 = sphi 0, %s252
      %s270 = sphi 0, %s270
      %s272 = sphi 0, %s270
      %s273 = sphi 0, %s272
      %s287 = sphi 0, %s273
      %s291 = sphi 0, %s291
      %s293 = sphi 0, %s291
      %s294 = sphi 0, %s293
      %s308 = sphi 0, %s294
      %s312 = sphi 0, %s312
      %s314 = sphi 0, %s312
      %s315 = sphi 0, %s314
      %s329 = sphi 0, %s315
      %s333 = sphi 0, %s333
      %s335 = sphi 0, %s333
      %s336 = sphi 0, %s335
      %s350 = sphi 0, %s336
      %s354 = sphi 0, %s354
      %s356 = sphi 0, %s354
      %s357 = sphi 0, %s356
      %s371 = sphi 0, %s357
      %s375 = sphi 0, %s375
      %s377 = sphi 0, %s375
      %s378 = sphi 0, %s377
      %s392 = sphi 0, %s378
      %s396 = sphi 0, %s396
      %s398 = sphi 0, %s396
      %s399 = sphi 0, %s398
      %s413 = sphi 0, %s399
      %s417 = sphi 0, %s417
      %s419 = sphi 0, %s417
      %s420 = sphi 0, %s419
      %s434 = sphi 0, %s420
      %s438 = sphi 0, %s438
      %s440 = sphi 0, %s438
      %s441 = sphi 0, %s440
      %s455 = sphi 0, %s441
      %s459 = sphi 0, %s459
      %s461 = sphi 0, %s459
      %s462 = sphi 0, %s461
      %s476 = sphi 0, %s462
      %s480 = sphi 0, %s480
      %s482 = sphi 0, %s480
      %s483 = sphi 0, %s482
      %s497 = sphi 0, %s483
      %s501 = sphi 0, %s501
      %s503 = sphi 0, %s501
      %s504 = sphi 0, %s503
      %s518 = sphi 0, %s504
      %s522 = sphi 0, %s522
      %s524 = sphi 0, %s522
      %s525 = sphi 0, %s524
      %s539 = sphi 0, %s525
      %s543 = sphi 0, %s543
      %s545 = sphi 0, %s543
      %s546 = sphi 0, %s545
      %s560 = sphi 0, %s546
      %s564 = sphi 0, %s564
      %s566 = sphi 0, %s564
      %s567 = sphi 0, %s566
      %s581 = sphi 0, %s567
      %s585 = sphi 0, %s585
      %s587 = sphi 0, %s585
      %s588 = sphi 0, %s587
      %s602 = sphi 0, %s588
      %s606 = sphi 0, %s606
      %s608 = sphi 0, %s606
      %s609 = sphi 0, %s608
      %s623 = sphi 0, %s609
      %s627 = sphi 0, %s627
      %s629 = sphi 0, %s627
      %s630 = sphi 0, %s629
      %s644 = sphi 0, %s630
      %s648 = sphi 0, %s648
      %s650 = sphi 0, %s648
      %s651 = sphi 0, %s650
      %s665 = sphi 0, %s651
      %s669 = sphi 0, %s669
      %s671 = sphi 0, %s669
      %s672 = sphi 0, %s671
      %s686 = sphi 0, %s672
      %s690 = sphi 0, %s690
      %s692 = sphi 0, %s690
      %s693 = sphi 0, %s692
      %s707 = sphi 0, %s693
      %s711 = sphi 0, %s711
      %s713 = sphi 0, %s711
      %s714 = sphi 0, %s713
      %s728 = sphi 0, %s714
      %s732 = sphi 0, %s732
      %s734 = sphi 0, %s732
      %s735 = sphi 0, %s734
      %s749 = sphi 0, %s735
      %s753 = sphi 0, %s753
      %s755 = sphi 0, %s753
      %s756 = sphi 0, %s755
      %s770 = sphi 0, %s756
    $region4: #{decoder_forward.1} parent=1 // loop_header_branch
      %76 = sbr.rel (%p74) target = $region8
    $region5: #{decoder_forward.1} parent=1 // loop_body
      %s78 = ssub.s32 %s73, 1
      %s79 = ssub.s32 %s73, 2
      %s80 = sadd.s32 %s73, 1
      %s82 = sadd.s32 %s81, 1
      %p85 = scmp.eq.s32.totalorder %s73, 2
      %p86 = scmp.ne.s32.totalorder %s81, %s83
      %p87 = scmp.eq.s32.totalorder %s73, 0
      %p88 = por %p86, %p87
      %p89 = scmp.ne.s32.totalorder %s81, %s83
      %p90 = scmp.eq.s32.totalorder %s78, 2
      %p91 = por %p89, %p90
      %p92 = scmp.ne.s32.totalorder %s83, %s84
      %p93 = scmp.eq.s32.totalorder %s78, 0
      %p94 = por %p92, %p93
      %p95 = scmp.ne.s32.totalorder %s83, %s84
      %p96 = scmp.eq.s32.totalorder %s79, 2
      %p97 = por %p95, %p96
      %p99 = scmp.ne.s32.totalorder %s84, %s98
      %p100 = scmp.eq.s32.totalorder %s79, 0
      %p101 = por %p99, %p100
      %s103 = sadd.s32 %s102, 1
      %p106 = scmp.eq.s32.totalorder %s73, 2
      %p107 = scmp.ne.s32.totalorder %s102, %s104
      %p108 = scmp.eq.s32.totalorder %s73, 0
      %p109 = por %p107, %p108
      %p110 = scmp.ne.s32.totalorder %s102, %s104
      %p111 = scmp.eq.s32.totalorder %s78, 2
      %p112 = por %p110, %p111
      %p113 = scmp.ne.s32.totalorder %s104, %s105
      %p114 = scmp.eq.s32.totalorder %s78, 0
      %p115 = por %p113, %p114
      %p116 = scmp.ne.s32.totalorder %s104, %s105
      %p117 = scmp.eq.s32.totalorder %s79, 2
      %p118 = por %p116, %p117
      %p120 = scmp.ne.s32.totalorder %s105, %s119
      %p121 = scmp.eq.s32.totalorder %s79, 0
      %p122 = por %p120, %p121
      %s124 = sadd.s32 %s123, 1
      %p127 = scmp.eq.s32.totalorder %s73, 2
      %p128 = scmp.ne.s32.totalorder %s123, %s125
      %p129 = scmp.eq.s32.totalorder %s73, 0
      %p130 = por %p128, %p129
      %p131 = scmp.ne.s32.totalorder %s123, %s125
      %p132 = scmp.eq.s32.totalorder %s78, 2
      %p133 = por %p131, %p132
      %p134 = scmp.ne.s32.totalorder %s125, %s126
      %p135 = scmp.eq.s32.totalorder %s78, 0
      %p136 = por %p134, %p135
      %p137 = scmp.ne.s32.totalorder %s125, %s126
      %p138 = scmp.eq.s32.totalorder %s79, 2
      %p139 = por %p137, %p138
      %p141 = scmp.ne.s32.totalorder %s126, %s140
      %p142 = scmp.eq.s32.totalorder %s79, 0
      %p143 = por %p141, %p142
      %s145 = sadd.s32 %s144, 1
      %p148 = scmp.eq.s32.totalorder %s73, 2
      %p149 = scmp.ne.s32.totalorder %s144, %s146
      %p150 = scmp.eq.s32.totalorder %s73, 0
      %p151 = por %p149, %p150
      %p152 = scmp.ne.s32.totalorder %s144, %s146
      %p153 = scmp.eq.s32.totalorder %s78, 2
      %p154 = por %p152, %p153
      %p155 = scmp.ne.s32.totalorder %s146, %s147
      %p156 = scmp.eq.s32.totalorder %s78, 0
      %p157 = por %p155, %p156
      %p158 = scmp.ne.s32.totalorder %s146, %s147
      %p159 = scmp.eq.s32.totalorder %s79, 2
      %p160 = por %p158, %p159
      %p162 = scmp.ne.s32.totalorder %s147, %s161
      %p163 = scmp.eq.s32.totalorder %s79, 0
      %p164 = por %p162, %p163
      %s166 = sadd.s32 %s165, 1
      %p169 = scmp.eq.s32.totalorder %s73, 2
      %p170 = scmp.ne.s32.totalorder %s165, %s167
      %p171 = scmp.eq.s32.totalorder %s73, 0
      %p172 = por %p170, %p171
      %p173 = scmp.ne.s32.totalorder %s165, %s167
      %p174 = scmp.eq.s32.totalorder %s78, 2
      %p175 = por %p173, %p174
      %p176 = scmp.ne.s32.totalorder %s167, %s168
      %p177 = scmp.eq.s32.totalorder %s78, 0
      %p178 = por %p176, %p177
      %p179 = scmp.ne.s32.totalorder %s167, %s168
      %p180 = scmp.eq.s32.totalorder %s79, 2
      %p181 = por %p179, %p180
      %p183 = scmp.ne.s32.totalorder %s168, %s182
      %p184 = scmp.eq.s32.totalorder %s79, 0
      %p185 = por %p183, %p184
      %s187 = sadd.s32 %s186, 1
      %p190 = scmp.eq.s32.totalorder %s73, 2
      %p191 = scmp.ne.s32.totalorder %s186, %s188
      %p192 = scmp.eq.s32.totalorder %s73, 0
      %p193 = por %p191, %p192
      %p194 = scmp.ne.s32.totalorder %s186, %s188
      %p195 = scmp.eq.s32.totalorder %s78, 2
      %p196 = por %p194, %p195
      %p197 = scmp.ne.s32.totalorder %s188, %s189
      %p198 = scmp.eq.s32.totalorder %s78, 0
      %p199 = por %p197, %p198
      %p200 = scmp.ne.s32.totalorder %s188, %s189
      %p201 = scmp.eq.s32.totalorder %s79, 2
      %p202 = por %p200, %p201
      %p204 = scmp.ne.s32.totalorder %s189, %s203
      %p205 = scmp.eq.s32.totalorder %s79, 0
      %p206 = por %p204, %p205
      %s208 = sadd.s32 %s207, 1
      %p211 = scmp.eq.s32.totalorder %s73, 2
      %p212 = scmp.ne.s32.totalorder %s207, %s209
      %p213 = scmp.eq.s32.totalorder %s73, 0
      %p214 = por %p212, %p213
      %p215 = scmp.ne.s32.totalorder %s207, %s209
      %p216 = scmp.eq.s32.totalorder %s78, 2
      %p217 = por %p215, %p216
      %p218 = scmp.ne.s32.totalorder %s209, %s210
      %p219 = scmp.eq.s32.totalorder %s78, 0
      %p220 = por %p218, %p219
      %p221 = scmp.ne.s32.totalorder %s209, %s210
      %p222 = scmp.eq.s32.totalorder %s79, 2
      %p223 = por %p221, %p222
      %p225 = scmp.ne.s32.totalorder %s210, %s224
      %p226 = scmp.eq.s32.totalorder %s79, 0
      %p227 = por %p225, %p226
      %s229 = sadd.s32 %s228, 1
      %p232 = scmp.eq.s32.totalorder %s73, 2
      %p233 = scmp.ne.s32.totalorder %s228, %s230
      %p234 = scmp.eq.s32.totalorder %s73, 0
      %p235 = por %p233, %p234
      %p236 = scmp.ne.s32.totalorder %s228, %s230
      %p237 = scmp.eq.s32.totalorder %s78, 2
      %p238 = por %p236, %p237
      %p239 = scmp.ne.s32.totalorder %s230, %s231
      %p240 = scmp.eq.s32.totalorder %s78, 0
      %p241 = por %p239, %p240
      %p242 = scmp.ne.s32.totalorder %s230, %s231
      %p243 = scmp.eq.s32.totalorder %s79, 2
      %p244 = por %p242, %p243
      %p246 = scmp.ne.s32.totalorder %s231, %s245
      %p247 = scmp.eq.s32.totalorder %s79, 0
      %p248 = por %p246, %p247
      %s250 = sadd.s32 %s249, 1
      %p253 = scmp.eq.s32.totalorder %s73, 2
      %p254 = scmp.ne.s32.totalorder %s249, %s251
      %p255 = scmp.eq.s32.totalorder %s73, 0
      %p256 = por %p254, %p255
      %p257 = scmp.ne.s32.totalorder %s249, %s251
      %p258 = scmp.eq.s32.totalorder %s78, 2
      %p259 = por %p257, %p258
      %p260 = scmp.ne.s32.totalorder %s251, %s252
      %p261 = scmp.eq.s32.totalorder %s78, 0
      %p262 = por %p260, %p261
      %p263 = scmp.ne.s32.totalorder %s251, %s252
      %p264 = scmp.eq.s32.totalorder %s79, 2
      %p265 = por %p263, %p264
      %p267 = scmp.ne.s32.totalorder %s252, %s266
      %p268 = scmp.eq.s32.totalorder %s79, 0
      %p269 = por %p267, %p268
      %s271 = sadd.s32 %s270, 1
      %p274 = scmp.eq.s32.totalorder %s73, 2
      %p275 = scmp.ne.s32.totalorder %s270, %s272
      %p276 = scmp.eq.s32.totalorder %s73, 0
      %p277 = por %p275, %p276
      %p278 = scmp.ne.s32.totalorder %s270, %s272
      %p279 = scmp.eq.s32.totalorder %s78, 2
      %p280 = por %p278, %p279
      %p281 = scmp.ne.s32.totalorder %s272, %s273
      %p282 = scmp.eq.s32.totalorder %s78, 0
      %p283 = por %p281, %p282
      %p284 = scmp.ne.s32.totalorder %s272, %s273
      %p285 = scmp.eq.s32.totalorder %s79, 2
      %p286 = por %p284, %p285
      %p288 = scmp.ne.s32.totalorder %s273, %s287
      %p289 = scmp.eq.s32.totalorder %s79, 0
      %p290 = por %p288, %p289
      %s292 = sadd.s32 %s291, 1
      %p295 = scmp.eq.s32.totalorder %s73, 2
      %p296 = scmp.ne.s32.totalorder %s291, %s293
      %p297 = scmp.eq.s32.totalorder %s73, 0
      %p298 = por %p296, %p297
      %p299 = scmp.ne.s32.totalorder %s291, %s293
      %p300 = scmp.eq.s32.totalorder %s78, 2
      %p301 = por %p299, %p300
      %p302 = scmp.ne.s32.totalorder %s293, %s294
      %p303 = scmp.eq.s32.totalorder %s78, 0
      %p304 = por %p302, %p303
      %p305 = scmp.ne.s32.totalorder %s293, %s294
      %p306 = scmp.eq.s32.totalorder %s79, 2
      %p307 = por %p305, %p306
      %p309 = scmp.ne.s32.totalorder %s294, %s308
      %p310 = scmp.eq.s32.totalorder %s79, 0
      %p311 = por %p309, %p310
      %s313 = sadd.s32 %s312, 1
      %p316 = scmp.eq.s32.totalorder %s73, 2
      %p317 = scmp.ne.s32.totalorder %s312, %s314
      %p318 = scmp.eq.s32.totalorder %s73, 0
      %p319 = por %p317, %p318
      %p320 = scmp.ne.s32.totalorder %s312, %s314
      %p321 = scmp.eq.s32.totalorder %s78, 2
      %p322 = por %p320, %p321
      %p323 = scmp.ne.s32.totalorder %s314, %s315
      %p324 = scmp.eq.s32.totalorder %s78, 0
      %p325 = por %p323, %p324
      %p326 = scmp.ne.s32.totalorder %s314, %s315
      %p327 = scmp.eq.s32.totalorder %s79, 2
      %p328 = por %p326, %p327
      %p330 = scmp.ne.s32.totalorder %s315, %s329
      %p331 = scmp.eq.s32.totalorder %s79, 0
      %p332 = por %p330, %p331
      %s334 = sadd.s32 %s333, 1
      %p337 = scmp.eq.s32.totalorder %s73, 2
      %p338 = scmp.ne.s32.totalorder %s333, %s335
      %p339 = scmp.eq.s32.totalorder %s73, 0
      %p340 = por %p338, %p339
      %p341 = scmp.ne.s32.totalorder %s333, %s335
      %p342 = scmp.eq.s32.totalorder %s78, 2
      %p343 = por %p341, %p342
      %p344 = scmp.ne.s32.totalorder %s335, %s336
      %p345 = scmp.eq.s32.totalorder %s78, 0
      %p346 = por %p344, %p345
      %p347 = scmp.ne.s32.totalorder %s335, %s336
      %p348 = scmp.eq.s32.totalorder %s79, 2
      %p349 = por %p347, %p348
      %p351 = scmp.ne.s32.totalorder %s336, %s350
      %p352 = scmp.eq.s32.totalorder %s79, 0
      %p353 = por %p351, %p352
      %s355 = sadd.s32 %s354, 1
      %p358 = scmp.eq.s32.totalorder %s73, 2
      %p359 = scmp.ne.s32.totalorder %s354, %s356
      %p360 = scmp.eq.s32.totalorder %s73, 0
      %p361 = por %p359, %p360
      %p362 = scmp.ne.s32.totalorder %s354, %s356
      %p363 = scmp.eq.s32.totalorder %s78, 2
      %p364 = por %p362, %p363
      %p365 = scmp.ne.s32.totalorder %s356, %s357
      %p366 = scmp.eq.s32.totalorder %s78, 0
      %p367 = por %p365, %p366
      %p368 = scmp.ne.s32.totalorder %s356, %s357
      %p369 = scmp.eq.s32.totalorder %s79, 2
      %p370 = por %p368, %p369
      %p372 = scmp.ne.s32.totalorder %s357, %s371
      %p373 = scmp.eq.s32.totalorder %s79, 0
      %p374 = por %p372, %p373
      %s376 = sadd.s32 %s375, 1
      %p379 = scmp.eq.s32.totalorder %s73, 2
      %p380 = scmp.ne.s32.totalorder %s375, %s377
      %p381 = scmp.eq.s32.totalorder %s73, 0
      %p382 = por %p380, %p381
      %p383 = scmp.ne.s32.totalorder %s375, %s377
      %p384 = scmp.eq.s32.totalorder %s78, 2
      %p385 = por %p383, %p384
      %p386 = scmp.ne.s32.totalorder %s377, %s378
      %p387 = scmp.eq.s32.totalorder %s78, 0
      %p388 = por %p386, %p387
      %p389 = scmp.ne.s32.totalorder %s377, %s378
      %p390 = scmp.eq.s32.totalorder %s79, 2
      %p391 = por %p389, %p390
      %p393 = scmp.ne.s32.totalorder %s378, %s392
      %p394 = scmp.eq.s32.totalorder %s79, 0
      %p395 = por %p393, %p394
      %s397 = sadd.s32 %s396, 1
      %p400 = scmp.eq.s32.totalorder %s73, 2
      %p401 = scmp.ne.s32.totalorder %s396, %s398
      %p402 = scmp.eq.s32.totalorder %s73, 0
      %p403 = por %p401, %p402
      %p404 = scmp.ne.s32.totalorder %s396, %s398
      %p405 = scmp.eq.s32.totalorder %s78, 2
      %p406 = por %p404, %p405
      %p407 = scmp.ne.s32.totalorder %s398, %s399
      %p408 = scmp.eq.s32.totalorder %s78, 0
      %p409 = por %p407, %p408
      %p410 = scmp.ne.s32.totalorder %s398, %s399
      %p411 = scmp.eq.s32.totalorder %s79, 2
      %p412 = por %p410, %p411
      %p414 = scmp.ne.s32.totalorder %s399, %s413
      %p415 = scmp.eq.s32.totalorder %s79, 0
      %p416 = por %p414, %p415
      %s418 = sadd.s32 %s417, 1
      %p421 = scmp.eq.s32.totalorder %s73, 2
      %p422 = scmp.ne.s32.totalorder %s417, %s419
      %p423 = scmp.eq.s32.totalorder %s73, 0
      %p424 = por %p422, %p423
      %p425 = scmp.ne.s32.totalorder %s417, %s419
      %p426 = scmp.eq.s32.totalorder %s78, 2
      %p427 = por %p425, %p426
      %p428 = scmp.ne.s32.totalorder %s419, %s420
      %p429 = scmp.eq.s32.totalorder %s78, 0
      %p430 = por %p428, %p429
      %p431 = scmp.ne.s32.totalorder %s419, %s420
      %p432 = scmp.eq.s32.totalorder %s79, 2
      %p433 = por %p431, %p432
      %p435 = scmp.ne.s32.totalorder %s420, %s434
      %p436 = scmp.eq.s32.totalorder %s79, 0
      %p437 = por %p435, %p436
      %s439 = sadd.s32 %s438, 1
      %p442 = scmp.eq.s32.totalorder %s73, 2
      %p443 = scmp.ne.s32.totalorder %s438, %s440
      %p444 = scmp.eq.s32.totalorder %s73, 0
      %p445 = por %p443, %p444
      %p446 = scmp.ne.s32.totalorder %s438, %s440
      %p447 = scmp.eq.s32.totalorder %s78, 2
      %p448 = por %p446, %p447
      %p449 = scmp.ne.s32.totalorder %s440, %s441
      %p450 = scmp.eq.s32.totalorder %s78, 0
      %p451 = por %p449, %p450
      %p452 = scmp.ne.s32.totalorder %s440, %s441
      %p453 = scmp.eq.s32.totalorder %s79, 2
      %p454 = por %p452, %p453
      %p456 = scmp.ne.s32.totalorder %s441, %s455
      %p457 = scmp.eq.s32.totalorder %s79, 0
      %p458 = por %p456, %p457
      %s460 = sadd.s32 %s459, 1
      %p463 = scmp.eq.s32.totalorder %s73, 2
      %p464 = scmp.ne.s32.totalorder %s459, %s461
      %p465 = scmp.eq.s32.totalorder %s73, 0
      %p466 = por %p464, %p465
      %p467 = scmp.ne.s32.totalorder %s459, %s461
      %p468 = scmp.eq.s32.totalorder %s78, 2
      %p469 = por %p467, %p468
      %p470 = scmp.ne.s32.totalorder %s461, %s462
      %p471 = scmp.eq.s32.totalorder %s78, 0
      %p472 = por %p470, %p471
      %p473 = scmp.ne.s32.totalorder %s461, %s462
      %p474 = scmp.eq.s32.totalorder %s79, 2
      %p475 = por %p473, %p474
      %p477 = scmp.ne.s32.totalorder %s462, %s476
      %p478 = scmp.eq.s32.totalorder %s79, 0
      %p479 = por %p477, %p478
      %s481 = sadd.s32 %s480, 1
      %p484 = scmp.eq.s32.totalorder %s73, 2
      %p485 = scmp.ne.s32.totalorder %s480, %s482
      %p486 = scmp.eq.s32.totalorder %s73, 0
      %p487 = por %p485, %p486
      %p488 = scmp.ne.s32.totalorder %s480, %s482
      %p489 = scmp.eq.s32.totalorder %s78, 2
      %p490 = por %p488, %p489
      %p491 = scmp.ne.s32.totalorder %s482, %s483
      %p492 = scmp.eq.s32.totalorder %s78, 0
      %p493 = por %p491, %p492
      %p494 = scmp.ne.s32.totalorder %s482, %s483
      %p495 = scmp.eq.s32.totalorder %s79, 2
      %p496 = por %p494, %p495
      %p498 = scmp.ne.s32.totalorder %s483, %s497
      %p499 = scmp.eq.s32.totalorder %s79, 0
      %p500 = por %p498, %p499
      %s502 = sadd.s32 %s501, 1
      %p505 = scmp.eq.s32.totalorder %s73, 2
      %p506 = scmp.ne.s32.totalorder %s501, %s503
      %p507 = scmp.eq.s32.totalorder %s73, 0
      %p508 = por %p506, %p507
      %p509 = scmp.ne.s32.totalorder %s501, %s503
      %p510 = scmp.eq.s32.totalorder %s78, 2
      %p511 = por %p509, %p510
      %p512 = scmp.ne.s32.totalorder %s503, %s504
      %p513 = scmp.eq.s32.totalorder %s78, 0
      %p514 = por %p512, %p513
      %p515 = scmp.ne.s32.totalorder %s503, %s504
      %p516 = scmp.eq.s32.totalorder %s79, 2
      %p517 = por %p515, %p516
      %p519 = scmp.ne.s32.totalorder %s504, %s518
      %p520 = scmp.eq.s32.totalorder %s79, 0
      %p521 = por %p519, %p520
      %s523 = sadd.s32 %s522, 1
      %p526 = scmp.eq.s32.totalorder %s73, 2
      %p527 = scmp.ne.s32.totalorder %s522, %s524
      %p528 = scmp.eq.s32.totalorder %s73, 0
      %p529 = por %p527, %p528
      %p530 = scmp.ne.s32.totalorder %s522, %s524
      %p531 = scmp.eq.s32.totalorder %s78, 2
      %p532 = por %p530, %p531
      %p533 = scmp.ne.s32.totalorder %s524, %s525
      %p534 = scmp.eq.s32.totalorder %s78, 0
      %p535 = por %p533, %p534
      %p536 = scmp.ne.s32.totalorder %s524, %s525
      %p537 = scmp.eq.s32.totalorder %s79, 2
      %p538 = por %p536, %p537
      %p540 = scmp.ne.s32.totalorder %s525, %s539
      %p541 = scmp.eq.s32.totalorder %s79, 0
      %p542 = por %p540, %p541
      %s544 = sadd.s32 %s543, 1
      %p547 = scmp.eq.s32.totalorder %s73, 2
      %p548 = scmp.ne.s32.totalorder %s543, %s545
      %p549 = scmp.eq.s32.totalorder %s73, 0
      %p550 = por %p548, %p549
      %p551 = scmp.ne.s32.totalorder %s543, %s545
      %p552 = scmp.eq.s32.totalorder %s78, 2
      %p553 = por %p551, %p552
      %p554 = scmp.ne.s32.totalorder %s545, %s546
      %p555 = scmp.eq.s32.totalorder %s78, 0
      %p556 = por %p554, %p555
      %p557 = scmp.ne.s32.totalorder %s545, %s546
      %p558 = scmp.eq.s32.totalorder %s79, 2
      %p559 = por %p557, %p558
      %p561 = scmp.ne.s32.totalorder %s546, %s560
      %p562 = scmp.eq.s32.totalorder %s79, 0
      %p563 = por %p561, %p562
      %s565 = sadd.s32 %s564, 1
      %p568 = scmp.eq.s32.totalorder %s73, 2
      %p569 = scmp.ne.s32.totalorder %s564, %s566
      %p570 = scmp.eq.s32.totalorder %s73, 0
      %p571 = por %p569, %p570
      %p572 = scmp.ne.s32.totalorder %s564, %s566
      %p573 = scmp.eq.s32.totalorder %s78, 2
      %p574 = por %p572, %p573
      %p575 = scmp.ne.s32.totalorder %s566, %s567
      %p576 = scmp.eq.s32.totalorder %s78, 0
      %p577 = por %p575, %p576
      %p578 = scmp.ne.s32.totalorder %s566, %s567
      %p579 = scmp.eq.s32.totalorder %s79, 2
      %p580 = por %p578, %p579
      %p582 = scmp.ne.s32.totalorder %s567, %s581
      %p583 = scmp.eq.s32.totalorder %s79, 0
      %p584 = por %p582, %p583
      %s586 = sadd.s32 %s585, 1
      %p589 = scmp.eq.s32.totalorder %s73, 2
      %p590 = scmp.ne.s32.totalorder %s585, %s587
      %p591 = scmp.eq.s32.totalorder %s73, 0
      %p592 = por %p590, %p591
      %p593 = scmp.ne.s32.totalorder %s585, %s587
      %p594 = scmp.eq.s32.totalorder %s78, 2
      %p595 = por %p593, %p594
      %p596 = scmp.ne.s32.totalorder %s587, %s588
      %p597 = scmp.eq.s32.totalorder %s78, 0
      %p598 = por %p596, %p597
      %p599 = scmp.ne.s32.totalorder %s587, %s588
      %p600 = scmp.eq.s32.totalorder %s79, 2
      %p601 = por %p599, %p600
      %p603 = scmp.ne.s32.totalorder %s588, %s602
      %p604 = scmp.eq.s32.totalorder %s79, 0
      %p605 = por %p603, %p604
      %s607 = sadd.s32 %s606, 1
      %p610 = scmp.eq.s32.totalorder %s73, 2
      %p611 = scmp.ne.s32.totalorder %s606, %s608
      %p612 = scmp.eq.s32.totalorder %s73, 0
      %p613 = por %p611, %p612
      %p614 = scmp.ne.s32.totalorder %s606, %s608
      %p615 = scmp.eq.s32.totalorder %s78, 2
      %p616 = por %p614, %p615
      %p617 = scmp.ne.s32.totalorder %s608, %s609
      %p618 = scmp.eq.s32.totalorder %s78, 0
      %p619 = por %p617, %p618
      %p620 = scmp.ne.s32.totalorder %s608, %s609
      %p621 = scmp.eq.s32.totalorder %s79, 2
      %p622 = por %p620, %p621
      %p624 = scmp.ne.s32.totalorder %s609, %s623
      %p625 = scmp.eq.s32.totalorder %s79, 0
      %p626 = por %p624, %p625
      %s628 = sadd.s32 %s627, 1
      %p631 = scmp.eq.s32.totalorder %s73, 2
      %p632 = scmp.ne.s32.totalorder %s627, %s629
      %p633 = scmp.eq.s32.totalorder %s73, 0
      %p634 = por %p632, %p633
      %p635 = scmp.ne.s32.totalorder %s627, %s629
      %p636 = scmp.eq.s32.totalorder %s78, 2
      %p637 = por %p635, %p636
      %p638 = scmp.ne.s32.totalorder %s629, %s630
      %p639 = scmp.eq.s32.totalorder %s78, 0
      %p640 = por %p638, %p639
      %p641 = scmp.ne.s32.totalorder %s629, %s630
      %p642 = scmp.eq.s32.totalorder %s79, 2
      %p643 = por %p641, %p642
      %p645 = scmp.ne.s32.totalorder %s630, %s644
      %p646 = scmp.eq.s32.totalorder %s79, 0
      %p647 = por %p645, %p646
      %s649 = sadd.s32 %s648, 1
      %p652 = scmp.eq.s32.totalorder %s73, 2
      %p653 = scmp.ne.s32.totalorder %s648, %s650
      %p654 = scmp.eq.s32.totalorder %s73, 0
      %p655 = por %p653, %p654
      %p656 = scmp.ne.s32.totalorder %s648, %s650
      %p657 = scmp.eq.s32.totalorder %s78, 2
      %p658 = por %p656, %p657
      %p659 = scmp.ne.s32.totalorder %s650, %s651
      %p660 = scmp.eq.s32.totalorder %s78, 0
      %p661 = por %p659, %p660
      %p662 = scmp.ne.s32.totalorder %s650, %s651
      %p663 = scmp.eq.s32.totalorder %s79, 2
      %p664 = por %p662, %p663
      %p666 = scmp.ne.s32.totalorder %s651, %s665
      %p667 = scmp.eq.s32.totalorder %s79, 0
      %p668 = por %p666, %p667
      %s670 = sadd.s32 %s669, 1
      %p673 = scmp.eq.s32.totalorder %s73, 2
      %p674 = scmp.ne.s32.totalorder %s669, %s671
      %p675 = scmp.eq.s32.totalorder %s73, 0
      %p676 = por %p674, %p675
      %p677 = scmp.ne.s32.totalorder %s669, %s671
      %p678 = scmp.eq.s32.totalorder %s78, 2
      %p679 = por %p677, %p678
      %p680 = scmp.ne.s32.totalorder %s671, %s672
      %p681 = scmp.eq.s32.totalorder %s78, 0
      %p682 = por %p680, %p681
      %p683 = scmp.ne.s32.totalorder %s671, %s672
      %p684 = scmp.eq.s32.totalorder %s79, 2
      %p685 = por %p683, %p684
      %p687 = scmp.ne.s32.totalorder %s672, %s686
      %p688 = scmp.eq.s32.totalorder %s79, 0
      %p689 = por %p687, %p688
      %s691 = sadd.s32 %s690, 1
      %p694 = scmp.eq.s32.totalorder %s73, 2
      %p695 = scmp.ne.s32.totalorder %s690, %s692
      %p696 = scmp.eq.s32.totalorder %s73, 0
      %p697 = por %p695, %p696
      %p698 = scmp.ne.s32.totalorder %s690, %s692
      %p699 = scmp.eq.s32.totalorder %s78, 2
      %p700 = por %p698, %p699
      %p701 = scmp.ne.s32.totalorder %s692, %s693
      %p702 = scmp.eq.s32.totalorder %s78, 0
      %p703 = por %p701, %p702
      %p704 = scmp.ne.s32.totalorder %s692, %s693
      %p705 = scmp.eq.s32.totalorder %s79, 2
      %p706 = por %p704, %p705
      %p708 = scmp.ne.s32.totalorder %s693, %s707
      %p709 = scmp.eq.s32.totalorder %s79, 0
      %p710 = por %p708, %p709
      %s712 = sadd.s32 %s711, 1
      %p715 = scmp.eq.s32.totalorder %s73, 2
      %p716 = scmp.ne.s32.totalorder %s711, %s713
      %p717 = scmp.eq.s32.totalorder %s73, 0
      %p718 = por %p716, %p717
      %p719 = scmp.ne.s32.totalorder %s711, %s713
      %p720 = scmp.eq.s32.totalorder %s78, 2
      %p721 = por %p719, %p720
      %p722 = scmp.ne.s32.totalorder %s713, %s714
      %p723 = scmp.eq.s32.totalorder %s78, 0
      %p724 = por %p722, %p723
      %p725 = scmp.ne.s32.totalorder %s713, %s714
      %p726 = scmp.eq.s32.totalorder %s79, 2
      %p727 = por %p725, %p726
      %p729 = scmp.ne.s32.totalorder %s714, %s728
      %p730 = scmp.eq.s32.totalorder %s79, 0
      %p731 = por %p729, %p730
      %s733 = sadd.s32 %s732, 1
      %p736 = scmp.eq.s32.totalorder %s73, 2
      %p737 = scmp.ne.s32.totalorder %s732, %s734
      %p738 = scmp.eq.s32.totalorder %s73, 0
      %p739 = por %p737, %p738
      %p740 = scmp.ne.s32.totalorder %s732, %s734
      %p741 = scmp.eq.s32.totalorder %s78, 2
      %p742 = por %p740, %p741
      %p743 = scmp.ne.s32.totalorder %s734, %s735
      %p744 = scmp.eq.s32.totalorder %s78, 0
      %p745 = por %p743, %p744
      %p746 = scmp.ne.s32.totalorder %s734, %s735
      %p747 = scmp.eq.s32.totalorder %s79, 2
      %p748 = por %p746, %p747
      %p750 = scmp.ne.s32.totalorder %s735, %s749
      %p751 = scmp.eq.s32.totalorder %s79, 0
      %p752 = por %p750, %p751
      %s754 = sadd.s32 %s753, 1
      %p757 = scmp.eq.s32.totalorder %s73, 2
      %p758 = scmp.ne.s32.totalorder %s753, %s755
      %p759 = scmp.eq.s32.totalorder %s73, 0
      %p760 = por %p758, %p759
      %p761 = scmp.ne.s32.totalorder %s753, %s755
      %p762 = scmp.eq.s32.totalorder %s78, 2
      %p763 = por %p761, %p762
      %p764 = scmp.ne.s32.totalorder %s755, %s756
      %p765 = scmp.eq.s32.totalorder %s78, 0
      %p766 = por %p764, %p765
      %p767 = scmp.ne.s32.totalorder %s755, %s756
      %p768 = scmp.eq.s32.totalorder %s79, 2
      %p769 = por %p767, %p768
      %p771 = scmp.ne.s32.totalorder %s756, %s770
      %p772 = scmp.eq.s32.totalorder %s79, 0
      %p773 = por %p771, %p772
      %p774 = scmp.le.s32.totalorder 1, %s73
      %p775 = scmp.lt.s32.totalorder %s73, 4
      %p776 = pnand %p774, %p775
      %p777 = pneg %p776
      // Predicated region
      $region9: #{decoder_forward.1} parent=5 // pred_check
        _
      $region10: #{decoder_forward.1} parent=5 // pred_check_branch
        %779 = sbr.rel (%p776) target = $region12
      $region11: #{decoder_forward.1} parent=5 // pred_region
        %s780 = ssub.s32 %s73, 1
        // Predicated region
        $region13: #{decoder_forward.1} parent=11 // pred_check
          %p781 = pneg %p94
        $region14: #{decoder_forward.1} parent=11 // pred_check_branch
          %783 = sbr.rel (%p781) target = $region16
        $region15: #{decoder_forward.1} parent=11 // pred_region
          _
        $region16: #{decoder_forward.1} parent=11 // pred_fallthru
          _
        // Predicated region
        $region17: #{decoder_forward.1} parent=11 // pred_check
          %p784 = pneg %p115
        $region18: #{decoder_forward.1} parent=11 // pred_check_branch
          %786 = sbr.rel (%p784) target = $region20
        $region19: #{decoder_forward.1} parent=11 // pred_region
          _
        $region20: #{decoder_forward.1} parent=11 // pred_fallthru
          _
        // Predicated region
        $region21: #{decoder_forward.1} parent=11 // pred_check
          %p787 = pneg %p136
        $region22: #{decoder_forward.1} parent=11 // pred_check_branch
          %789 = sbr.rel (%p787) target = $region24
        $region23: #{decoder_forward.1} parent=11 // pred_region
          _
        $region24: #{decoder_forward.1} parent=11 // pred_fallthru
          _
        // Predicated region
        $region25: #{decoder_forward.1} parent=11 // pred_check
          %p790 = pneg %p157
        $region26: #{decoder_forward.1} parent=11 // pred_check_branch
          %792 = sbr.rel (%p790) target = $region28
        $region27: #{decoder_forward.1} parent=11 // pred_region
          _
        $region28: #{decoder_forward.1} parent=11 // pred_fallthru
          _
        // Predicated region
        $region29: #{decoder_forward.1} parent=11 // pred_check
          %p793 = pneg %p178
        $region30: #{decoder_forward.1} parent=11 // pred_check_branch
          %795 = sbr.rel (%p793) target = $region32
        $region31: #{decoder_forward.1} parent=11 // pred_region
          _
        $region32: #{decoder_forward.1} parent=11 // pred_fallthru
          _
        // Predicated region
        $region33: #{decoder_forward.1} parent=11 // pred_check
          %p796 = pneg %p199
        $region34: #{decoder_forward.1} parent=11 // pred_check_branch
          %798 = sbr.rel (%p796) target = $region36
        $region35: #{decoder_forward.1} parent=11 // pred_region
          _
        $region36: #{decoder_forward.1} parent=11 // pred_fallthru
          _
        // Predicated region
        $region37: #{decoder_forward.1} parent=11 // pred_check
          %p799 = pneg %p220
        $region38: #{decoder_forward.1} parent=11 // pred_check_branch
          %801 = sbr.rel (%p799) target = $region40
        $region39: #{decoder_forward.1} parent=11 // pred_region
          _
        $region40: #{decoder_forward.1} parent=11 // pred_fallthru
          _
        // Predicated region
        $region41: #{decoder_forward.1} parent=11 // pred_check
          %p802 = pneg %p241
        $region42: #{decoder_forward.1} parent=11 // pred_check_branch
          %804 = sbr.rel (%p802) target = $region44
        $region43: #{decoder_forward.1} parent=11 // pred_region
          _
        $region44: #{decoder_forward.1} parent=11 // pred_fallthru
          _
        // Predicated region
        $region45: #{decoder_forward.1} parent=11 // pred_check
          %p805 = pneg %p262
        $region46: #{decoder_forward.1} parent=11 // pred_check_branch
          %807 = sbr.rel (%p805) target = $region48
        $region47: #{decoder_forward.1} parent=11 // pred_region
          _
        $region48: #{decoder_forward.1} parent=11 // pred_fallthru
          _
        // Predicated region
        $region49: #{decoder_forward.1} parent=11 // pred_check
          %p808 = pneg %p283
        $region50: #{decoder_forward.1} parent=11 // pred_check_branch
          %810 = sbr.rel (%p808) target = $region52
        $region51: #{decoder_forward.1} parent=11 // pred_region
          _
        $region52: #{decoder_forward.1} parent=11 // pred_fallthru
          _
        // Predicated region
        $region53: #{decoder_forward.1} parent=11 // pred_check
          %p811 = pneg %p304
        $region54: #{decoder_forward.1} parent=11 // pred_check_branch
          %813 = sbr.rel (%p811) target = $region56
        $region55: #{decoder_forward.1} parent=11 // pred_region
          _
        $region56: #{decoder_forward.1} parent=11 // pred_fallthru
          _
        // Predicated region
        $region57: #{decoder_forward.1} parent=11 // pred_check
          %p814 = pneg %p325
        $region58: #{decoder_forward.1} parent=11 // pred_check_branch
          %816 = sbr.rel (%p814) target = $region60
        $region59: #{decoder_forward.1} parent=11 // pred_region
          _
        $region60: #{decoder_forward.1} parent=11 // pred_fallthru
          _
        // Predicated region
        $region61: #{decoder_forward.1} parent=11 // pred_check
          %p817 = pneg %p346
        $region62: #{decoder_forward.1} parent=11 // pred_check_branch
          %819 = sbr.rel (%p817) target = $region64
        $region63: #{decoder_forward.1} parent=11 // pred_region
          _
        $region64: #{decoder_forward.1} parent=11 // pred_fallthru
          _
        // Predicated region
        $region65: #{decoder_forward.1} parent=11 // pred_check
          %p820 = pneg %p367
        $region66: #{decoder_forward.1} parent=11 // pred_check_branch
          %822 = sbr.rel (%p820) target = $region68
        $region67: #{decoder_forward.1} parent=11 // pred_region
          _
        $region68: #{decoder_forward.1} parent=11 // pred_fallthru
          _
        // Predicated region
        $region69: #{decoder_forward.1} parent=11 // pred_check
          %p823 = pneg %p388
        $region70: #{decoder_forward.1} parent=11 // pred_check_branch
          %825 = sbr.rel (%p823) target = $region72
        $region71: #{decoder_forward.1} parent=11 // pred_region
          _
        $region72: #{decoder_forward.1} parent=11 // pred_fallthru
          _
        // Predicated region
        $region73: #{decoder_forward.1} parent=11 // pred_check
          %p826 = pneg %p409
        $region74: #{decoder_forward.1} parent=11 // pred_check_branch
          %828 = sbr.rel (%p826) target = $region76
        $region75: #{decoder_forward.1} parent=11 // pred_region
          _
        $region76: #{decoder_forward.1} parent=11 // pred_fallthru
          _
        // Predicated region
        $region77: #{decoder_forward.1} parent=11 // pred_check
          %p829 = pneg %p430
        $region78: #{decoder_forward.1} parent=11 // pred_check_branch
          %831 = sbr.rel (%p829) target = $region80
        $region79: #{decoder_forward.1} parent=11 // pred_region
          _
        $region80: #{decoder_forward.1} parent=11 // pred_fallthru
          _
        // Predicated region
        $region81: #{decoder_forward.1} parent=11 // pred_check
          %p832 = pneg %p451
        $region82: #{decoder_forward.1} parent=11 // pred_check_branch
          %834 = sbr.rel (%p832) target = $region84
        $region83: #{decoder_forward.1} parent=11 // pred_region
          _
        $region84: #{decoder_forward.1} parent=11 // pred_fallthru
          _
        // Predicated region
        $region85: #{decoder_forward.1} parent=11 // pred_check
          %p835 = pneg %p472
        $region86: #{decoder_forward.1} parent=11 // pred_check_branch
          %837 = sbr.rel (%p835) target = $region88
        $region87: #{decoder_forward.1} parent=11 // pred_region
          _
        $region88: #{decoder_forward.1} parent=11 // pred_fallthru
          _
        // Predicated region
        $region89: #{decoder_forward.1} parent=11 // pred_check
          %p838 = pneg %p493
        $region90: #{decoder_forward.1} parent=11 // pred_check_branch
          %840 = sbr.rel (%p838) target = $region92
        $region91: #{decoder_forward.1} parent=11 // pred_region
          _
        $region92: #{decoder_forward.1} parent=11 // pred_fallthru
          _
        // Predicated region
        $region93: #{decoder_forward.1} parent=11 // pred_check
          %p841 = pneg %p514
        $region94: #{decoder_forward.1} parent=11 // pred_check_branch
          %843 = sbr.rel (%p841) target = $region96
        $region95: #{decoder_forward.1} parent=11 // pred_region
          _
        $region96: #{decoder_forward.1} parent=11 // pred_fallthru
          _
        // Predicated region
        $region97: #{decoder_forward.1} parent=11 // pred_check
          %p844 = pneg %p535
        $region98: #{decoder_forward.1} parent=11 // pred_check_branch
          %846 = sbr.rel (%p844) target = $region100
        $region99: #{decoder_forward.1} parent=11 // pred_region
          _
        $region100: #{decoder_forward.1} parent=11 // pred_fallthru
          _
        // Predicated region
        $region101: #{decoder_forward.1} parent=11 // pred_check
          %p847 = pneg %p556
        $region102: #{decoder_forward.1} parent=11 // pred_check_branch
          %849 = sbr.rel (%p847) target = $region104
        $region103: #{decoder_forward.1} parent=11 // pred_region
          _
        $region104: #{decoder_forward.1} parent=11 // pred_fallthru
          _
        // Predicated region
        $region105: #{decoder_forward.1} parent=11 // pred_check
          %p850 = pneg %p577
        $region106: #{decoder_forward.1} parent=11 // pred_check_branch
          %852 = sbr.rel (%p850) target = $region108
        $region107: #{decoder_forward.1} parent=11 // pred_region
          _
        $region108: #{decoder_forward.1} parent=11 // pred_fallthru
          _
        // Predicated region
        $region109: #{decoder_forward.1} parent=11 // pred_check
          %p853 = pneg %p598
        $region110: #{decoder_forward.1} parent=11 // pred_check_branch
          %855 = sbr.rel (%p853) target = $region112
        $region111: #{decoder_forward.1} parent=11 // pred_region
          _
        $region112: #{decoder_forward.1} parent=11 // pred_fallthru
          _
        // Predicated region
        $region113: #{decoder_forward.1} parent=11 // pred_check
          %p856 = pneg %p619
        $region114: #{decoder_forward.1} parent=11 // pred_check_branch
          %858 = sbr.rel (%p856) target = $region116
        $region115: #{decoder_forward.1} parent=11 // pred_region
          _
        $region116: #{decoder_forward.1} parent=11 // pred_fallthru
          _
        // Predicated region
        $region117: #{decoder_forward.1} parent=11 // pred_check
          %p859 = pneg %p640
        $region118: #{decoder_forward.1} parent=11 // pred_check_branch
          %861 = sbr.rel (%p859) target = $region120
        $region119: #{decoder_forward.1} parent=11 // pred_region
          _
        $region120: #{decoder_forward.1} parent=11 // pred_fallthru
          _
        // Predicated region
        $region121: #{decoder_forward.1} parent=11 // pred_check
          %p862 = pneg %p661
        $region122: #{decoder_forward.1} parent=11 // pred_check_branch
          %864 = sbr.rel (%p862) target = $region124
        $region123: #{decoder_forward.1} parent=11 // pred_region
          _
        $region124: #{decoder_forward.1} parent=11 // pred_fallthru
          _
        // Predicated region
        $region125: #{decoder_forward.1} parent=11 // pred_check
          %p865 = pneg %p682
        $region126: #{decoder_forward.1} parent=11 // pred_check_branch
          %867 = sbr.rel (%p865) target = $region128
        $region127: #{decoder_forward.1} parent=11 // pred_region
          _
        $region128: #{decoder_forward.1} parent=11 // pred_fallthru
          _
        // Predicated region
        $region129: #{decoder_forward.1} parent=11 // pred_check
          %p868 = pneg %p703
        $region130: #{decoder_forward.1} parent=11 // pred_check_branch
          %870 = sbr.rel (%p868) target = $region132
        $region131: #{decoder_forward.1} parent=11 // pred_region
          _
        $region132: #{decoder_forward.1} parent=11 // pred_fallthru
          _
        // Predicated region
        $region133: #{decoder_forward.1} parent=11 // pred_check
          %p871 = pneg %p724
        $region134: #{decoder_forward.1} parent=11 // pred_check_branch
          %873 = sbr.rel (%p871) target = $region136
        $region135: #{decoder_forward.1} parent=11 // pred_region
          _
        $region136: #{decoder_forward.1} parent=11 // pred_fallthru
          _
      $region12: #{decoder_forward.1} parent=5 // pred_fallthru
        _
      %p874 = scmp.lt.s32.totalorder %s73, 3
      // Predicated region
      $region137: #{decoder_forward.1} parent=5 // pred_check
        %p875 = pneg %p874
      $region138: #{decoder_forward.1} parent=5 // pred_check_branch
        %877 = sbr.rel (%p875) target = $region140
      $region139: #{decoder_forward.1} parent=5 // pred_region
        _
      $region140: #{decoder_forward.1} parent=5 // pred_fallthru
        _
      %p878 = scmp.le.s32.totalorder 1, %s73
      %p879 = scmp.lt.s32.totalorder %s73, 4
      %p880 = pnand %p878, %p879
      %p881 = pneg %p880
      // Predicated region
      $region141: #{decoder_forward.1} parent=5 // pred_check
        _
      $region142: #{decoder_forward.1} parent=5 // pred_check_branch
        %883 = sbr.rel (%p880) target = $region144
      $region143: #{decoder_forward.1} parent=5 // pred_region
        %s884 = ssub.s32 %s73, 1
        %p885 = pneg %p94
        %p886 = pneg %p91
        %p887 = pneg %p115
        %p888 = pneg %p112
        %p889 = pneg %p136
        %p890 = pneg %p133
        %p891 = pneg %p157
        %p892 = pneg %p154
        %p893 = pneg %p178
        %p894 = pneg %p175
        %p895 = pneg %p199
        %p896 = pneg %p196
        %p897 = pneg %p220
        %p898 = pneg %p217
        %p899 = pneg %p241
        %p900 = pneg %p238
        %p901 = pneg %p262
        %p902 = pneg %p259
        %p903 = pneg %p283
        %p904 = pneg %p280
        %p905 = pneg %p304
        %p906 = pneg %p301
        %p907 = pneg %p325
        %p908 = pneg %p322
        %p909 = pneg %p346
        %p910 = pneg %p343
        %p911 = pneg %p367
        %p912 = pneg %p364
        %p913 = pneg %p388
        %p914 = pneg %p385
        %p915 = pneg %p409
        %p916 = pneg %p406
        %p917 = pneg %p430
        %p918 = pneg %p427
        %p919 = pneg %p451
        %p920 = pneg %p448
        %p921 = pneg %p472
        %p922 = pneg %p469
        %p923 = pneg %p493
        %p924 = pneg %p490
        %p925 = pneg %p514
        %p926 = pneg %p511
        %p927 = pneg %p535
        %p928 = pneg %p532
        %p929 = pneg %p556
        %p930 = pneg %p553
        %p931 = pneg %p577
        %p932 = pneg %p574
        %p933 = pneg %p598
        %p934 = pneg %p595
        %p935 = pneg %p619
        %p936 = pneg %p616
        %p937 = pneg %p640
        %p938 = pneg %p637
        %p939 = pneg %p661
        %p940 = pneg %p658
        %p941 = pneg %p682
        %p942 = pneg %p679
        %p943 = pneg %p703
        %p944 = pneg %p700
        %p945 = pneg %p724
        %p946 = pneg %p721
        %p947 = pneg %p745
        %p948 = pneg %p742
        %p949 = pneg %p766
        %p950 = pneg %p763
        %p951 = scmp.eq.s32.totalorder %s78, 0
        // Predicated region
        $region145: #{decoder_forward.1} parent=143 // pred_check
          %p952 = pneg %p951
        $region146: #{decoder_forward.1} parent=143 // pred_check_branch
          %954 = sbr.rel (%p952) target = $region148
        $region147: #{decoder_forward.1} parent=143 // pred_region
          %v955 = vld [vmem:[%s5] sm:$0xf]
          %vm956 = vcmask 257024
          %957 = vst.msk [vmem:[#allocation2] sm:$0xf] %vm956, %v955
          %v958 = vld [vmem:[%s7] sm:$0xf]
          %959 = vst.msk [vmem:[#allocation3] sm:$0xf] %vm956, %v958
          %v960 = vld [vmem:[%s1] sm:$0xf]
          %vm961 = vcmask 11264
          %962 = vst.msk [vmem:[#allocation4] sm:$0xf] %vm961, %v960
          %v963 = vld [vmem:[%s3] sm:$0xf]
          %v964 = vld [vmem:[%s9] sm:$0x3]
          %v965 = vld [vmem:[%s11] sm:$0x1]
          %v967 = vlaneseq
          %v968 = vshrl.u32 %v967, 7
          %v969 = vsub.s32 0, %v968
          %v970 = vrot.slane %v965, %v969
          %vm972 = vcmask 15360
          %v974 = vsel %vm972, %v963, 0
          %vm976 = vcmask 1041408
          %v978 = vsel %vm976, %v964, 0
          %980 = vmatprep.subr.mxu0 0.0
          %981 = vmatpush1.msra.mxu0 0.0
          %982 = vmatprep.subr.mxu0 0.0
          %983 = vmatpush1.msra.mxu0 0.0
          %984 = vmatprep.subr.mxu0 0.0
          %985 = vmatpush1.msra.mxu0 0.0
          %986 = vmatprep.subr.mxu0 0.0
          %987 = vmatpush1.msra.mxu0 0.0
          %988 = vmatprep.subr.mxu0 0.0
          %989 = vmatpush1.msra.mxu0 0.0
          %990 = vmatprep.subr.mxu0 0.0
          %991 = vmatpush1.msra.mxu0 0.0
          %992 = vmatprep.subr.mxu0 0.0
          %993 = vmatpush1.msra.mxu0 0.0
          %994 = vmatprep.subr.mxu0 0.0
          %995 = vmatpush1.msra.mxu0 0.0
          %996 = vmatprep.subr.mxu0 0.0
          %997 = vmatpush1.msra.mxu0 0.0
          %998 = vmatprep.subr.mxu0 0.0
          %999 = vmatpush1.msra.mxu0 0.0
          %1000 = vmatprep.subr.mxu0 0.0
          %1001 = vmatpush1.msra.mxu0 0.0
          %1002 = vmatprep.subr.mxu0 0.0
          %1003 = vmatpush1.msra.mxu0 0.0
          %1004 = vmatprep.subr.mxu0 0.0
          %1005 = vmatpush1.msra.mxu0 0.0
          %1006 = vmatprep.subr.mxu0 0.0
          %1007 = vmatpush1.msra.mxu0 0.0
          %1008 = vmatprep.subr.mxu0 0.0
          %1009 = vmatpush1.msra.mxu0 0.0
          %1010 = vmatprep.subr.mxu0 0.0
          %1011 = vmatpush1.msra.mxu0 %v978
          %1012 = vmatprep.subr.mxu0 0.0
          %1013 = vmatpush2.msra.mxu0 0.0
          %1014 = vmatprep.subr.mxu0 0.0
          %1015 = vmatpush2.msra.mxu0 0.0
          %1016 = vmatprep.subr.mxu0 0.0
          %1017 = vmatpush2.msra.mxu0 0.0
          %1018 = vmatprep.subr.mxu0 0.0
          %1019 = vmatpush2.msra.mxu0 0.0
          %1020 = vmatprep.subr.mxu0 0.0
          %1021 = vmatpush2.msra.mxu0 0.0
          %1022 = vmatprep.subr.mxu0 0.0
          %1023 = vmatpush2.msra.mxu0 0.0
          %1024 = vmatprep.subr.mxu0 0.0
          %1025 = vmatpush2.msra.mxu0 0.0
          %1026 = vmatprep.subr.mxu0 0.0
          %1027 = vmatpush2.msra.mxu0 0.0
          %1028 = vmatprep.subr.mxu0 0.0
          %1029 = vmatpush2.msra.mxu0 0.0
          %1030 = vmatprep.subr.mxu0 0.0
          %1031 = vmatpush2.msra.mxu0 0.0
          %1032 = vmatprep.subr.mxu0 0.0
          %1033 = vmatpush2.msra.mxu0 0.0
          %1034 = vmatprep.subr.mxu0 0.0
          %1035 = vmatpush2.msra.mxu0 0.0
          %1036 = vmatprep.subr.mxu0 0.0
          %1037 = vmatpush2.msra.mxu0 0.0
          %1038 = vmatprep.subr.mxu0 0.0
          %1039 = vmatpush2.msra.mxu0 0.0
          %1040 = vmatprep.subr.mxu0 0.0
          %1041 = vmatpush2.msra.mxu0 0.0
          %1042 = vmatprep.subr.mxu0 0.0
          %1043 = vmatpush2.msra.mxu0 0.0
          %1044 = vmatprep.mubr.f32.mxu0 0.0
          %1045 = vmatmul.mubr.f32.gmra.mxu0 %v974
          %v1046 = vpop.f32.mrf.mxu0
          %v1047 = vadd.f32 %v970, %v1046
          %v1048 = vpop.f32.mrf.mxu0
          %1049 = vdwg.mxu0
          %1050 = vst.msk [vmem:[#allocation5] sm:$0xf] %vm956, %v1047
        $region148: #{decoder_forward.1} parent=143 // pred_fallthru
          _
        %v1051 = vld [vmem:[#allocation5] sm:$0xf]
        %v1052 = vld [vmem:[#allocation2] sm:$0xf]
        %v1053 = vld [vmem:[#allocation3] sm:$0xf]
        %v1054 = vld [vmem:[%s13] sm:$0xff]
        %v1055 = vld [vmem:[%s13 + $0x8] sm:$0xff]
        %v1056 = vld [vmem:[%s13 + $0x10] sm:$0xff]
        %v1057 = vld [vmem:[%s13 + $0x18] sm:$0xff]
        %v1058 = vld [vmem:[%s15] sm:$0xff]
        %v1059 = vld [vmem:[%s15 + $0x8] sm:$0xff]
        %v1060 = vld [vmem:[%s15 + $0x10] sm:$0xff]
        %v1061 = vld [vmem:[%s15 + $0x18] sm:$0xff]
        %vm1062 = vcmask 261120
        %v1064 = vsel %vm1062, %v1052, 0
        %1066 = vmatprep.subr.mxu0 0.0
        %1067 = vmatpush1.msra.mxu0 0.0
        %1068 = vmatprep.subr.mxu0 0.0
        %1069 = vmatpush1.msra.mxu0 0.0
        %1070 = vmatprep.subr.mxu0 0.0
        %1071 = vmatpush1.msra.mxu0 0.0
        %1072 = vmatprep.subr.mxu0 0.0
        %1073 = vmatpush1.msra.mxu0 0.0
        %1074 = vmatprep.subr.mxu0 0.0
        %1075 = vmatpush1.msra.mxu0 0.0
        %1076 = vmatprep.subr.mxu0 0.0
        %1077 = vmatpush1.msra.mxu0 0.0
        %1078 = vmatprep.subr.mxu0 0.0
        %1079 = vmatpush1.msra.mxu0 0.0
        %1080 = vmatprep.subr.mxu0 0.0
        %1081 = vmatpush1.msra.mxu0 0.0
        %1082 = vmatprep.subr.mxu0 0.0
        %1083 = vmatpush1.msra.mxu0 0.0
        %1084 = vmatprep.subr.mxu0 0.0
        %1085 = vmatpush1.msra.mxu0 0.0
        %1086 = vmatprep.subr.mxu0 0.0
        %1087 = vmatpush1.msra.mxu0 0.0
        %1088 = vmatprep.subr.mxu0 0.0
        %1089 = vmatpush1.msra.mxu0 0.0
        %1090 = vmatprep.subr.mxu0 0.0
        %1091 = vmatpush1.msra.mxu0 %v1061
        %1092 = vmatprep.subr.mxu0 0.0
        %1093 = vmatpush1.msra.mxu0 %v1060
        %1094 = vmatprep.subr.mxu0 0.0
        %1095 = vmatpush1.msra.mxu0 %v1059
        %1096 = vmatprep.subr.mxu0 0.0
        %1097 = vmatpush1.msra.mxu0 %v1058
        %1098 = vmatprep.subr.mxu0 0.0
        %1099 = vmatpush2.msra.mxu0 0.0
        %1100 = vmatprep.subr.mxu0 0.0
        %1101 = vmatpush2.msra.mxu0 0.0
        %1102 = vmatprep.subr.mxu0 0.0
        %1103 = vmatpush2.msra.mxu0 0.0
        %1104 = vmatprep.subr.mxu0 0.0
        %1105 = vmatpush2.msra.mxu0 0.0
        %1106 = vmatprep.subr.mxu0 0.0
        %1107 = vmatpush2.msra.mxu0 0.0
        %1108 = vmatprep.subr.mxu0 0.0
        %1109 = vmatpush2.msra.mxu0 0.0
        %1110 = vmatprep.subr.mxu0 0.0
        %1111 = vmatpush2.msra.mxu0 0.0
        %1112 = vmatprep.subr.mxu0 0.0
        %1113 = vmatpush2.msra.mxu0 0.0
        %1114 = vmatprep.subr.mxu0 0.0
        %1115 = vmatpush2.msra.mxu0 0.0
        %1116 = vmatprep.subr.mxu0 0.0
        %1117 = vmatpush2.msra.mxu0 0.0
        %1118 = vmatprep.subr.mxu0 0.0
        %1119 = vmatpush2.msra.mxu0 0.0
        %1120 = vmatprep.subr.mxu0 0.0
        %1121 = vmatpush2.msra.mxu0 0.0
        %1122 = vmatprep.subr.mxu0 0.0
        %1123 = vmatpush2.msra.mxu0 0.0
        %1124 = vmatprep.subr.mxu0 0.0
        %1125 = vmatpush2.msra.mxu0 0.0
        %1126 = vmatprep.subr.mxu0 0.0
        %1127 = vmatpush2.msra.mxu0 0.0
        %1128 = vmatprep.subr.mxu0 0.0
        %1129 = vmatpush2.msra.mxu0 0.0
        %1130 = vmatprep.mubr.f32.mxu0 0.0
        %1131 = vmatmul.mubr.f32.gmra.mxu0 %v1064
        %v1132 = vpop.f32.mrf.mxu0
        %v1133 = vadd.f32 0.0, %v1132
        %v1134 = vpop.f32.mrf.mxu0
        %1135 = vdwg.mxu0
        %v1137 = vsel %vm1062, %v1051, 0
        %1139 = vmatprep.subr.mxu0 0.0
        %1140 = vmatpush1.msra.mxu0 0.0
        %1141 = vmatprep.subr.mxu0 0.0
        %1142 = vmatpush1.msra.mxu0 0.0
        %1143 = vmatprep.subr.mxu0 0.0
        %1144 = vmatpush1.msra.mxu0 0.0
        %1145 = vmatprep.subr.mxu0 0.0
        %1146 = vmatpush1.msra.mxu0 0.0
        %1147 = vmatprep.subr.mxu0 0.0
        %1148 = vmatpush1.msra.mxu0 0.0
        %1149 = vmatprep.subr.mxu0 0.0
        %1150 = vmatpush1.msra.mxu0 0.0
        %1151 = vmatprep.subr.mxu0 0.0
        %1152 = vmatpush1.msra.mxu0 0.0
        %1153 = vmatprep.subr.mxu0 0.0
        %1154 = vmatpush1.msra.mxu0 0.0
        %1155 = vmatprep.subr.mxu0 0.0
        %1156 = vmatpush1.msra.mxu0 0.0
        %1157 = vmatprep.subr.mxu0 0.0
        %1158 = vmatpush1.msra.mxu0 0.0
        %1159 = vmatprep.subr.mxu0 0.0
        %1160 = vmatpush1.msra.mxu0 0.0
        %1161 = vmatprep.subr.mxu0 0.0
        %1162 = vmatpush1.msra.mxu0 0.0
        %1163 = vmatprep.subr.mxu0 0.0
        %1164 = vmatpush1.msra.mxu0 %v1057
        %1165 = vmatprep.subr.mxu0 0.0
        %1166 = vmatpush1.msra.mxu0 %v1056
        %1167 = vmatprep.subr.mxu0 0.0
        %1168 = vmatpush1.msra.mxu0 %v1055
        %1169 = vmatprep.subr.mxu0 0.0
        %1170 = vmatpush1.msra.mxu0 %v1054
        %1171 = vmatprep.subr.mxu0 0.0
        %1172 = vmatpush2.msra.mxu0 0.0
        %1173 = vmatprep.subr.mxu0 0.0
        %1174 = vmatpush2.msra.mxu0 0.0
        %1175 = vmatprep.subr.mxu0 0.0
        %1176 = vmatpush2.msra.mxu0 0.0
        %1177 = vmatprep.subr.mxu0 0.0
        %1178 = vmatpush2.msra.mxu0 0.0
        %1179 = vmatprep.subr.mxu0 0.0
        %1180 = vmatpush2.msra.mxu0 0.0
        %1181 = vmatprep.subr.mxu0 0.0
        %1182 = vmatpush2.msra.mxu0 0.0
        %1183 = vmatprep.subr.mxu0 0.0
        %1184 = vmatpush2.msra.mxu0 0.0
        %1185 = vmatprep.subr.mxu0 0.0
        %1186 = vmatpush2.msra.mxu0 0.0
        %1187 = vmatprep.subr.mxu0 0.0
        %1188 = vmatpush2.msra.mxu0 0.0
        %1189 = vmatprep.subr.mxu0 0.0
        %1190 = vmatpush2.msra.mxu0 0.0
        %1191 = vmatprep.subr.mxu0 0.0
        %1192 = vmatpush2.msra.mxu0 0.0
        %1193 = vmatprep.subr.mxu0 0.0
        %1194 = vmatpush2.msra.mxu0 0.0
        %1195 = vmatprep.subr.mxu0 0.0
        %1196 = vmatpush2.msra.mxu0 0.0
        %1197 = vmatprep.subr.mxu0 0.0
        %1198 = vmatpush2.msra.mxu0 0.0
        %1199 = vmatprep.subr.mxu0 0.0
        %1200 = vmatpush2.msra.mxu0 0.0
        %1201 = vmatprep.subr.mxu0 0.0
        %1202 = vmatpush2.msra.mxu0 0.0
        %1203 = vmatprep.mubr.f32.mxu0 0.0
        %1204 = vmatmul.mubr.f32.gmra.mxu0 %v1137
        %v1205 = vpop.f32.mrf.mxu0
        %v1206 = vadd.f32 %v1133, %v1205
        %v1207 = vpop.f32.mrf.mxu0
        %1208 = vdwg.mxu0
        %v1209 = vld [vmem:[%s17] sm:$0x1]
        %v1211 = vlaneseq
        %v1212 = vshrl.u32 %v1211, 7
        %v1213 = vsub.s32 0, %v1212
        %v1214 = vrot.slane %v1209, %v1213
        %v1216 = vadd.f32 %v1206, %v1214
        %v1217 = vxor.u32 %v1216, 2147483648
        %v1218 = vmul.f32 %v1217, 1.442695
        %v1219 = vpow.pop %v1218
        %v1220 = vadd.f32 %v1219, 1.0
        %v1221 = vrcp.pop %v1220
        %v1222 = vmul.f32 1.0, %v1221
        %s1223 = scalar_lea.vmem %s13, 32
        %v1224 = vld [vmem:[%s1223] sm:$0xff]
        %v1225 = vld [vmem:[%s1223 + $0x8] sm:$0xff]
        %v1226 = vld [vmem:[%s1223 + $0x10] sm:$0xff]
        %v1227 = vld [vmem:[%s1223 + $0x18] sm:$0xff]
        %s1228 = scalar_lea.vmem %s15, 32
        %v1229 = vld [vmem:[%s1228] sm:$0xff]
        %v1230 = vld [vmem:[%s1228 + $0x8] sm:$0xff]
        %v1231 = vld [vmem:[%s1228 + $0x10] sm:$0xff]
        %v1232 = vld [vmem:[%s1228 + $0x18] sm:$0xff]
        %1233 = vmatprep.subr.mxu0 0.0
        %1234 = vmatpush1.msra.mxu0 0.0
        %1235 = vmatprep.subr.mxu0 0.0
        %1236 = vmatpush1.msra.mxu0 0.0
        %1237 = vmatprep.subr.mxu0 0.0
        %1238 = vmatpush1.msra.mxu0 0.0
        %1239 = vmatprep.subr.mxu0 0.0
        %1240 = vmatpush1.msra.mxu0 0.0
        %1241 = vmatprep.subr.mxu0 0.0
        %1242 = vmatpush1.msra.mxu0 0.0
        %1243 = vmatprep.subr.mxu0 0.0
        %1244 = vmatpush1.msra.mxu0 0.0
        %1245 = vmatprep.subr.mxu0 0.0
        %1246 = vmatpush1.msra.mxu0 0.0
        %1247 = vmatprep.subr.mxu0 0.0
        %1248 = vmatpush1.msra.mxu0 0.0
        %1249 = vmatprep.subr.mxu0 0.0
        %1250 = vmatpush1.msra.mxu0 0.0
        %1251 = vmatprep.subr.mxu0 0.0
        %1252 = vmatpush1.msra.mxu0 0.0
        %1253 = vmatprep.subr.mxu0 0.0
        %1254 = vmatpush1.msra.mxu0 0.0
        %1255 = vmatprep.subr.mxu0 0.0
        %1256 = vmatpush1.msra.mxu0 0.0
        %1257 = vmatprep.subr.mxu0 0.0
        %1258 = vmatpush1.msra.mxu0 %v1232
        %1259 = vmatprep.subr.mxu0 0.0
        %1260 = vmatpush1.msra.mxu0 %v1231
        %1261 = vmatprep.subr.mxu0 0.0
        %1262 = vmatpush1.msra.mxu0 %v1230
        %1263 = vmatprep.subr.mxu0 0.0
        %1264 = vmatpush1.msra.mxu0 %v1229
        %1265 = vmatprep.subr.mxu0 0.0
        %1266 = vmatpush2.msra.mxu0 0.0
        %1267 = vmatprep.subr.mxu0 0.0
        %1268 = vmatpush2.msra.mxu0 0.0
        %1269 = vmatprep.subr.mxu0 0.0
        %1270 = vmatpush2.msra.mxu0 0.0
        %1271 = vmatprep.subr.mxu0 0.0
        %1272 = vmatpush2.msra.mxu0 0.0
        %1273 = vmatprep.subr.mxu0 0.0
        %1274 = vmatpush2.msra.mxu0 0.0
        %1275 = vmatprep.subr.mxu0 0.0
        %1276 = vmatpush2.msra.mxu0 0.0
        %1277 = vmatprep.subr.mxu0 0.0
        %1278 = vmatpush2.msra.mxu0 0.0
        %1279 = vmatprep.subr.mxu0 0.0
        %1280 = vmatpush2.msra.mxu0 0.0
        %1281 = vmatprep.subr.mxu0 0.0
        %1282 = vmatpush2.msra.mxu0 0.0
        %1283 = vmatprep.subr.mxu0 0.0
        %1284 = vmatpush2.msra.mxu0 0.0
        %1285 = vmatprep.subr.mxu0 0.0
        %1286 = vmatpush2.msra.mxu0 0.0
        %1287 = vmatprep.subr.mxu0 0.0
        %1288 = vmatpush2.msra.mxu0 0.0
        %1289 = vmatprep.subr.mxu0 0.0
        %1290 = vmatpush2.msra.mxu0 0.0
        %1291 = vmatprep.subr.mxu0 0.0
        %1292 = vmatpush2.msra.mxu0 0.0
        %1293 = vmatprep.subr.mxu0 0.0
        %1294 = vmatpush2.msra.mxu0 0.0
        %1295 = vmatprep.subr.mxu0 0.0
        %1296 = vmatpush2.msra.mxu0 0.0
        %1297 = vmatprep.mubr.f32.mxu0 0.0
        %1298 = vmatmul.mubr.f32.gmra.mxu0 %v1064
        %v1299 = vpop.f32.mrf.mxu0
        %v1300 = vadd.f32 0.0, %v1299
        %v1301 = vpop.f32.mrf.mxu0
        %1302 = vdwg.mxu0
        %1303 = vmatprep.subr.mxu0 0.0
        %1304 = vmatpush1.msra.mxu0 0.0
        %1305 = vmatprep.subr.mxu0 0.0
        %1306 = vmatpush1.msra.mxu0 0.0
        %1307 = vmatprep.subr.mxu0 0.0
        %1308 = vmatpush1.msra.mxu0 0.0
        %1309 = vmatprep.subr.mxu0 0.0
        %1310 = vmatpush1.msra.mxu0 0.0
        %1311 = vmatprep.subr.mxu0 0.0
        %1312 = vmatpush1.msra.mxu0 0.0
        %1313 = vmatprep.subr.mxu0 0.0
        %1314 = vmatpush1.msra.mxu0 0.0
        %1315 = vmatprep.subr.mxu0 0.0
        %1316 = vmatpush1.msra.mxu0 0.0
        %1317 = vmatprep.subr.mxu0 0.0
        %1318 = vmatpush1.msra.mxu0 0.0
        %1319 = vmatprep.subr.mxu0 0.0
        %1320 = vmatpush1.msra.mxu0 0.0
        %1321 = vmatprep.subr.mxu0 0.0
        %1322 = vmatpush1.msra.mxu0 0.0
        %1323 = vmatprep.subr.mxu0 0.0
        %1324 = vmatpush1.msra.mxu0 0.0
        %1325 = vmatprep.subr.mxu0 0.0
        %1326 = vmatpush1.msra.mxu0 0.0
        %1327 = vmatprep.subr.mxu0 0.0
        %1328 = vmatpush1.msra.mxu0 %v1227
        %1329 = vmatprep.subr.mxu0 0.0
        %1330 = vmatpush1.msra.mxu0 %v1226
        %1331 = vmatprep.subr.mxu0 0.0
        %1332 = vmatpush1.msra.mxu0 %v1225
        %1333 = vmatprep.subr.mxu0 0.0
        %1334 = vmatpush1.msra.mxu0 %v1224
        %1335 = vmatprep.subr.mxu0 0.0
        %1336 = vmatpush2.msra.mxu0 0.0
        %1337 = vmatprep.subr.mxu0 0.0
        %1338 = vmatpush2.msra.mxu0 0.0
        %1339 = vmatprep.subr.mxu0 0.0
        %1340 = vmatpush2.msra.mxu0 0.0
        %1341 = vmatprep.subr.mxu0 0.0
        %1342 = vmatpush2.msra.mxu0 0.0
        %1343 = vmatprep.subr.mxu0 0.0
        %1344 = vmatpush2.msra.mxu0 0.0
        %1345 = vmatprep.subr.mxu0 0.0
        %1346 = vmatpush2.msra.mxu0 0.0
        %1347 = vmatprep.subr.mxu0 0.0
        %1348 = vmatpush2.msra.mxu0 0.0
        %1349 = vmatprep.subr.mxu0 0.0
        %1350 = vmatpush2.msra.mxu0 0.0
        %1351 = vmatprep.subr.mxu0 0.0
        %1352 = vmatpush2.msra.mxu0 0.0
        %1353 = vmatprep.subr.mxu0 0.0
        %1354 = vmatpush2.msra.mxu0 0.0
        %1355 = vmatprep.subr.mxu0 0.0
        %1356 = vmatpush2.msra.mxu0 0.0
        %1357 = vmatprep.subr.mxu0 0.0
        %1358 = vmatpush2.msra.mxu0 0.0
        %1359 = vmatprep.subr.mxu0 0.0
        %1360 = vmatpush2.msra.mxu0 0.0
        %1361 = vmatprep.subr.mxu0 0.0
        %1362 = vmatpush2.msra.mxu0 0.0
        %1363 = vmatprep.subr.mxu0 0.0
        %1364 = vmatpush2.msra.mxu0 0.0
        %1365 = vmatprep.subr.mxu0 0.0
        %1366 = vmatpush2.msra.mxu0 0.0
        %1367 = vmatprep.mubr.f32.mxu0 0.0
        %1368 = vmatmul.mubr.f32.gmra.mxu0 %v1137
        %v1369 = vpop.f32.mrf.mxu0
        %v1370 = vadd.f32 %v1300, %v1369
        %v1371 = vpop.f32.mrf.mxu0
        %1372 = vdwg.mxu0
        %s1373 = scalar_lea.vmem %s17, 1
        %v1374 = vld [vmem:[%s1373] sm:$0x1]
        %v1376 = vlaneseq
        %v1377 = vshrl.u32 %v1376, 7
        %v1378 = vsub.s32 0, %v1377
        %v1379 = vrot.slane %v1374, %v1378
        %v1381 = vadd.f32 %v1370, %v1379
        %v1382 = vxor.u32 %v1381, 2147483648
        %v1383 = vmul.f32 %v1382, 1.442695
        %v1384 = vpow.pop %v1383
        %v1385 = vadd.f32 %v1384, 1.0
        %v1386 = vrcp.pop %v1385
        %v1387 = vmul.f32 1.0, %v1386
        %s1388 = scalar_lea.vmem %s13, 64
        %v1389 = vld [vmem:[%s1388] sm:$0xff]
        %v1390 = vld [vmem:[%s1388 + $0x8] sm:$0xff]
        %v1391 = vld [vmem:[%s1388 + $0x10] sm:$0xff]
        %v1392 = vld [vmem:[%s1388 + $0x18] sm:$0xff]
        %s1393 = scalar_lea.vmem %s15, 64
        %v1394 = vld [vmem:[%s1393] sm:$0xff]
        %v1395 = vld [vmem:[%s1393 + $0x8] sm:$0xff]
        %v1396 = vld [vmem:[%s1393 + $0x10] sm:$0xff]
        %v1397 = vld [vmem:[%s1393 + $0x18] sm:$0xff]
        %1398 = vmatprep.subr.mxu0 0.0
        %1399 = vmatpush1.msra.mxu0 0.0
        %1400 = vmatprep.subr.mxu0 0.0
        %1401 = vmatpush1.msra.mxu0 0.0
        %1402 = vmatprep.subr.mxu0 0.0
        %1403 = vmatpush1.msra.mxu0 0.0
        %1404 = vmatprep.subr.mxu0 0.0
        %1405 = vmatpush1.msra.mxu0 0.0
        %1406 = vmatprep.subr.mxu0 0.0
        %1407 = vmatpush1.msra.mxu0 0.0
        %1408 = vmatprep.subr.mxu0 0.0
        %1409 = vmatpush1.msra.mxu0 0.0
        %1410 = vmatprep.subr.mxu0 0.0
        %1411 = vmatpush1.msra.mxu0 0.0
        %1412 = vmatprep.subr.mxu0 0.0
        %1413 = vmatpush1.msra.mxu0 0.0
        %1414 = vmatprep.subr.mxu0 0.0
        %1415 = vmatpush1.msra.mxu0 0.0
        %1416 = vmatprep.subr.mxu0 0.0
        %1417 = vmatpush1.msra.mxu0 0.0
        %1418 = vmatprep.subr.mxu0 0.0
        %1419 = vmatpush1.msra.mxu0 0.0
        %1420 = vmatprep.subr.mxu0 0.0
        %1421 = vmatpush1.msra.mxu0 0.0
        %1422 = vmatprep.subr.mxu0 0.0
        %1423 = vmatpush1.msra.mxu0 %v1397
        %1424 = vmatprep.subr.mxu0 0.0
        %1425 = vmatpush1.msra.mxu0 %v1396
        %1426 = vmatprep.subr.mxu0 0.0
        %1427 = vmatpush1.msra.mxu0 %v1395
        %1428 = vmatprep.subr.mxu0 0.0
        %1429 = vmatpush1.msra.mxu0 %v1394
        %1430 = vmatprep.subr.mxu0 0.0
        %1431 = vmatpush2.msra.mxu0 0.0
        %1432 = vmatprep.subr.mxu0 0.0
        %1433 = vmatpush2.msra.mxu0 0.0
        %1434 = vmatprep.subr.mxu0 0.0
        %1435 = vmatpush2.msra.mxu0 0.0
        %1436 = vmatprep.subr.mxu0 0.0
        %1437 = vmatpush2.msra.mxu0 0.0
        %1438 = vmatprep.subr.mxu0 0.0
        %1439 = vmatpush2.msra.mxu0 0.0
        %1440 = vmatprep.subr.mxu0 0.0
        %1441 = vmatpush2.msra.mxu0 0.0
        %1442 = vmatprep.subr.mxu0 0.0
        %1443 = vmatpush2.msra.mxu0 0.0
        %1444 = vmatprep.subr.mxu0 0.0
        %1445 = vmatpush2.msra.mxu0 0.0
        %1446 = vmatprep.subr.mxu0 0.0
        %1447 = vmatpush2.msra.mxu0 0.0
        %1448 = vmatprep.subr.mxu0 0.0
        %1449 = vmatpush2.msra.mxu0 0.0
        %1450 = vmatprep.subr.mxu0 0.0
        %1451 = vmatpush2.msra.mxu0 0.0
        %1452 = vmatprep.subr.mxu0 0.0
        %1453 = vmatpush2.msra.mxu0 0.0
        %1454 = vmatprep.subr.mxu0 0.0
        %1455 = vmatpush2.msra.mxu0 0.0
        %1456 = vmatprep.subr.mxu0 0.0
        %1457 = vmatpush2.msra.mxu0 0.0
        %1458 = vmatprep.subr.mxu0 0.0
        %1459 = vmatpush2.msra.mxu0 0.0
        %1460 = vmatprep.subr.mxu0 0.0
        %1461 = vmatpush2.msra.mxu0 0.0
        %1462 = vmatprep.mubr.f32.mxu0 0.0
        %1463 = vmatmul.mubr.f32.gmra.mxu0 %v1064
        %v1464 = vpop.f32.mrf.mxu0
        %v1465 = vadd.f32 0.0, %v1464
        %v1466 = vpop.f32.mrf.mxu0
        %1467 = vdwg.mxu0
        %1468 = vmatprep.subr.mxu0 0.0
        %1469 = vmatpush1.msra.mxu0 0.0
        %1470 = vmatprep.subr.mxu0 0.0
        %1471 = vmatpush1.msra.mxu0 0.0
        %1472 = vmatprep.subr.mxu0 0.0
        %1473 = vmatpush1.msra.mxu0 0.0
        %1474 = vmatprep.subr.mxu0 0.0
        %1475 = vmatpush1.msra.mxu0 0.0
        %1476 = vmatprep.subr.mxu0 0.0
        %1477 = vmatpush1.msra.mxu0 0.0
        %1478 = vmatprep.subr.mxu0 0.0
        %1479 = vmatpush1.msra.mxu0 0.0
        %1480 = vmatprep.subr.mxu0 0.0
        %1481 = vmatpush1.msra.mxu0 0.0
        %1482 = vmatprep.subr.mxu0 0.0
        %1483 = vmatpush1.msra.mxu0 0.0
        %1484 = vmatprep.subr.mxu0 0.0
        %1485 = vmatpush1.msra.mxu0 0.0
        %1486 = vmatprep.subr.mxu0 0.0
        %1487 = vmatpush1.msra.mxu0 0.0
        %1488 = vmatprep.subr.mxu0 0.0
        %1489 = vmatpush1.msra.mxu0 0.0
        %1490 = vmatprep.subr.mxu0 0.0
        %1491 = vmatpush1.msra.mxu0 0.0
        %1492 = vmatprep.subr.mxu0 0.0
        %1493 = vmatpush1.msra.mxu0 %v1392
        %1494 = vmatprep.subr.mxu0 0.0
        %1495 = vmatpush1.msra.mxu0 %v1391
        %1496 = vmatprep.subr.mxu0 0.0
        %1497 = vmatpush1.msra.mxu0 %v1390
        %1498 = vmatprep.subr.mxu0 0.0
        %1499 = vmatpush1.msra.mxu0 %v1389
        %1500 = vmatprep.subr.mxu0 0.0
        %1501 = vmatpush2.msra.mxu0 0.0
        %1502 = vmatprep.subr.mxu0 0.0
        %1503 = vmatpush2.msra.mxu0 0.0
        %1504 = vmatprep.subr.mxu0 0.0
        %1505 = vmatpush2.msra.mxu0 0.0
        %1506 = vmatprep.subr.mxu0 0.0
        %1507 = vmatpush2.msra.mxu0 0.0
        %1508 = vmatprep.subr.mxu0 0.0
        %1509 = vmatpush2.msra.mxu0 0.0
        %1510 = vmatprep.subr.mxu0 0.0
        %1511 = vmatpush2.msra.mxu0 0.0
        %1512 = vmatprep.subr.mxu0 0.0
        %1513 = vmatpush2.msra.mxu0 0.0
        %1514 = vmatprep.subr.mxu0 0.0
        %1515 = vmatpush2.msra.mxu0 0.0
        %1516 = vmatprep.subr.mxu0 0.0
        %1517 = vmatpush2.msra.mxu0 0.0
        %1518 = vmatprep.subr.mxu0 0.0
        %1519 = vmatpush2.msra.mxu0 0.0
        %1520 = vmatprep.subr.mxu0 0.0
        %1521 = vmatpush2.msra.mxu0 0.0
        %1522 = vmatprep.subr.mxu0 0.0
        %1523 = vmatpush2.msra.mxu0 0.0
        %1524 = vmatprep.subr.mxu0 0.0
        %1525 = vmatpush2.msra.mxu0 0.0
        %1526 = vmatprep.subr.mxu0 0.0
        %1527 = vmatpush2.msra.mxu0 0.0
        %1528 = vmatprep.subr.mxu0 0.0
        %1529 = vmatpush2.msra.mxu0 0.0
        %1530 = vmatprep.subr.mxu0 0.0
        %1531 = vmatpush2.msra.mxu0 0.0
        %1532 = vmatprep.mubr.f32.mxu0 0.0
        %1533 = vmatmul.mubr.f32.gmra.mxu0 %v1137
        %v1534 = vpop.f32.mrf.mxu0
        %v1535 = vadd.f32 %v1465, %v1534
        %v1536 = vpop.f32.mrf.mxu0
        %1537 = vdwg.mxu0
        %s1538 = scalar_lea.vmem %s17, 2
        %v1539 = vld [vmem:[%s1538] sm:$0x1]
        %v1541 = vlaneseq
        %v1542 = vshrl.u32 %v1541, 7
        %v1543 = vsub.s32 0, %v1542
        %v1544 = vrot.slane %v1539, %v1543
        %v1546 = vadd.f32 %v1535, %v1544
        %v1547 = vtanh.pop %v1546
        %s1548 = scalar_lea.vmem %s13, 96
        %v1549 = vld [vmem:[%s1548] sm:$0xff]
        %v1550 = vld [vmem:[%s1548 + $0x8] sm:$0xff]
        %v1551 = vld [vmem:[%s1548 + $0x10] sm:$0xff]
        %v1552 = vld [vmem:[%s1548 + $0x18] sm:$0xff]
        %s1553 = scalar_lea.vmem %s15, 96
        %v1554 = vld [vmem:[%s1553] sm:$0xff]
        %v1555 = vld [vmem:[%s1553 + $0x8] sm:$0xff]
        %v1556 = vld [vmem:[%s1553 + $0x10] sm:$0xff]
        %v1557 = vld [vmem:[%s1553 + $0x18] sm:$0xff]
        %1558 = vmatprep.subr.mxu0 0.0
        %1559 = vmatpush1.msra.mxu0 0.0
        %1560 = vmatprep.subr.mxu0 0.0
        %1561 = vmatpush1.msra.mxu0 0.0
        %1562 = vmatprep.subr.mxu0 0.0
        %1563 = vmatpush1.msra.mxu0 0.0
        %1564 = vmatprep.subr.mxu0 0.0
        %1565 = vmatpush1.msra.mxu0 0.0
        %1566 = vmatprep.subr.mxu0 0.0
        %1567 = vmatpush1.msra.mxu0 0.0
        %1568 = vmatprep.subr.mxu0 0.0
        %1569 = vmatpush1.msra.mxu0 0.0
        %1570 = vmatprep.subr.mxu0 0.0
        %1571 = vmatpush1.msra.mxu0 0.0
        %1572 = vmatprep.subr.mxu0 0.0
        %1573 = vmatpush1.msra.mxu0 0.0
        %1574 = vmatprep.subr.mxu0 0.0
        %1575 = vmatpush1.msra.mxu0 0.0
        %1576 = vmatprep.subr.mxu0 0.0
        %1577 = vmatpush1.msra.mxu0 0.0
        %1578 = vmatprep.subr.mxu0 0.0
        %1579 = vmatpush1.msra.mxu0 0.0
        %1580 = vmatprep.subr.mxu0 0.0
        %1581 = vmatpush1.msra.mxu0 0.0
        %1582 = vmatprep.subr.mxu0 0.0
        %1583 = vmatpush1.msra.mxu0 %v1557
        %1584 = vmatprep.subr.mxu0 0.0
        %1585 = vmatpush1.msra.mxu0 %v1556
        %1586 = vmatprep.subr.mxu0 0.0
        %1587 = vmatpush1.msra.mxu0 %v1555
        %1588 = vmatprep.subr.mxu0 0.0
        %1589 = vmatpush1.msra.mxu0 %v1554
        %1590 = vmatprep.subr.mxu0 0.0
        %1591 = vmatpush2.msra.mxu0 0.0
        %1592 = vmatprep.subr.mxu0 0.0
        %1593 = vmatpush2.msra.mxu0 0.0
        %1594 = vmatprep.subr.mxu0 0.0
        %1595 = vmatpush2.msra.mxu0 0.0
        %1596 = vmatprep.subr.mxu0 0.0
        %1597 = vmatpush2.msra.mxu0 0.0
        %1598 = vmatprep.subr.mxu0 0.0
        %1599 = vmatpush2.msra.mxu0 0.0
        %1600 = vmatprep.subr.mxu0 0.0
        %1601 = vmatpush2.msra.mxu0 0.0
        %1602 = vmatprep.subr.mxu0 0.0
        %1603 = vmatpush2.msra.mxu0 0.0
        %1604 = vmatprep.subr.mxu0 0.0
        %1605 = vmatpush2.msra.mxu0 0.0
        %1606 = vmatprep.subr.mxu0 0.0
        %1607 = vmatpush2.msra.mxu0 0.0
        %1608 = vmatprep.subr.mxu0 0.0
        %1609 = vmatpush2.msra.mxu0 0.0
        %1610 = vmatprep.subr.mxu0 0.0
        %1611 = vmatpush2.msra.mxu0 0.0
        %1612 = vmatprep.subr.mxu0 0.0
        %1613 = vmatpush2.msra.mxu0 0.0
        %1614 = vmatprep.subr.mxu0 0.0
        %1615 = vmatpush2.msra.mxu0 0.0
        %1616 = vmatprep.subr.mxu0 0.0
        %1617 = vmatpush2.msra.mxu0 0.0
        %1618 = vmatprep.subr.mxu0 0.0
        %1619 = vmatpush2.msra.mxu0 0.0
        %1620 = vmatprep.subr.mxu0 0.0
        %1621 = vmatpush2.msra.mxu0 0.0
        %1622 = vmatprep.mubr.f32.mxu0 0.0
        %1623 = vmatmul.mubr.f32.gmra.mxu0 %v1064
        %v1624 = vpop.f32.mrf.mxu0
        %v1625 = vadd.f32 0.0, %v1624
        %v1626 = vpop.f32.mrf.mxu0
        %1627 = vdwg.mxu0
        %1628 = vmatprep.subr.mxu0 0.0
        %1629 = vmatpush1.msra.mxu0 0.0
        %1630 = vmatprep.subr.mxu0 0.0
        %1631 = vmatpush1.msra.mxu0 0.0
        %1632 = vmatprep.subr.mxu0 0.0
        %1633 = vmatpush1.msra.mxu0 0.0
        %1634 = vmatprep.subr.mxu0 0.0
        %1635 = vmatpush1.msra.mxu0 0.0
        %1636 = vmatprep.subr.mxu0 0.0
        %1637 = vmatpush1.msra.mxu0 0.0
        %1638 = vmatprep.subr.mxu0 0.0
        %1639 = vmatpush1.msra.mxu0 0.0
        %1640 = vmatprep.subr.mxu0 0.0
        %1641 = vmatpush1.msra.mxu0 0.0
        %1642 = vmatprep.subr.mxu0 0.0
        %1643 = vmatpush1.msra.mxu0 0.0
        %1644 = vmatprep.subr.mxu0 0.0
        %1645 = vmatpush1.msra.mxu0 0.0
        %1646 = vmatprep.subr.mxu0 0.0
        %1647 = vmatpush1.msra.mxu0 0.0
        %1648 = vmatprep.subr.mxu0 0.0
        %1649 = vmatpush1.msra.mxu0 0.0
        %1650 = vmatprep.subr.mxu0 0.0
        %1651 = vmatpush1.msra.mxu0 0.0
        %1652 = vmatprep.subr.mxu0 0.0
        %1653 = vmatpush1.msra.mxu0 %v1552
        %1654 = vmatprep.subr.mxu0 0.0
        %1655 = vmatpush1.msra.mxu0 %v1551
        %1656 = vmatprep.subr.mxu0 0.0
        %1657 = vmatpush1.msra.mxu0 %v1550
        %1658 = vmatprep.subr.mxu0 0.0
        %1659 = vmatpush1.msra.mxu0 %v1549
        %1660 = vmatprep.subr.mxu0 0.0
        %1661 = vmatpush2.msra.mxu0 0.0
        %1662 = vmatprep.subr.mxu0 0.0
        %1663 = vmatpush2.msra.mxu0 0.0
        %1664 = vmatprep.subr.mxu0 0.0
        %1665 = vmatpush2.msra.mxu0 0.0
        %1666 = vmatprep.subr.mxu0 0.0
        %1667 = vmatpush2.msra.mxu0 0.0
        %1668 = vmatprep.subr.mxu0 0.0
        %1669 = vmatpush2.msra.mxu0 0.0
        %1670 = vmatprep.subr.mxu0 0.0
        %1671 = vmatpush2.msra.mxu0 0.0
        %1672 = vmatprep.subr.mxu0 0.0
        %1673 = vmatpush2.msra.mxu0 0.0
        %1674 = vmatprep.subr.mxu0 0.0
        %1675 = vmatpush2.msra.mxu0 0.0
        %1676 = vmatprep.subr.mxu0 0.0
        %1677 = vmatpush2.msra.mxu0 0.0
        %1678 = vmatprep.subr.mxu0 0.0
        %1679 = vmatpush2.msra.mxu0 0.0
        %1680 = vmatprep.subr.mxu0 0.0
        %1681 = vmatpush2.msra.mxu0 0.0
        %1682 = vmatprep.subr.mxu0 0.0
        %1683 = vmatpush2.msra.mxu0 0.0
        %1684 = vmatprep.subr.mxu0 0.0
        %1685 = vmatpush2.msra.mxu0 0.0
        %1686 = vmatprep.subr.mxu0 0.0
        %1687 = vmatpush2.msra.mxu0 0.0
        %1688 = vmatprep.subr.mxu0 0.0
        %1689 = vmatpush2.msra.mxu0 0.0
        %1690 = vmatprep.subr.mxu0 0.0
        %1691 = vmatpush2.msra.mxu0 0.0
        %1692 = vmatprep.mubr.f32.mxu0 0.0
        %1693 = vmatmul.mubr.f32.gmra.mxu0 %v1137
        %v1694 = vpop.f32.mrf.mxu0
        %v1695 = vadd.f32 %v1625, %v1694
        %v1696 = vpop.f32.mrf.mxu0
        %1697 = vdwg.mxu0
        %s1698 = scalar_lea.vmem %s17, 3
        %v1699 = vld [vmem:[%s1698] sm:$0x1]
        %v1701 = vlaneseq
        %v1702 = vshrl.u32 %v1701, 7
        %v1703 = vsub.s32 0, %v1702
        %v1704 = vrot.slane %v1699, %v1703
        %v1706 = vadd.f32 %v1695, %v1704
        %v1707 = vxor.u32 %v1706, 2147483648
        %v1708 = vmul.f32 %v1707, 1.442695
        %v1709 = vpow.pop %v1708
        %v1710 = vadd.f32 %v1709, 1.0
        %v1711 = vrcp.pop %v1710
        %v1712 = vmul.f32 1.0, %v1711
        %v1713 = vmul.f32 %v1387, %v1053
        %v1714 = vmul.f32 %v1222, %v1547
        %v1715 = vadd.f32 %v1713, %v1714
        %v1716 = vtanh.pop %v1715
        %v1717 = vmul.f32 %v1712, %v1716
        %vm1718 = vcmask 257024
        %1719 = vst.msk [vmem:[#allocation3] sm:$0xf] %vm1718, %v1715
        %v1720 = vld [vmem:[%s19] sm:$0xff]
        %v1721 = vld [vmem:[%s19 + $0x8] sm:$0xff]
        %v1722 = vld [vmem:[%s19 + $0x10] sm:$0xff]
        %v1723 = vld [vmem:[%s19 + $0x18] sm:$0xff]
        %v1724 = vld [vmem:[%s21] sm:$0x1]
        %v1726 = vlaneseq
        %v1727 = vshrl.u32 %v1726, 7
        %v1728 = vsub.s32 0, %v1727
        %v1729 = vrot.slane %v1724, %v1728
        %v1732 = vsel %vm1062, %v1717, 0
        %1734 = vmatprep.subr.mxu0 0.0
        %1735 = vmatpush1.msra.mxu0 0.0
        %1736 = vmatprep.subr.mxu0 0.0
        %1737 = vmatpush1.msra.mxu0 0.0
        %1738 = vmatprep.subr.mxu0 0.0
        %1739 = vmatpush1.msra.mxu0 0.0
        %1740 = vmatprep.subr.mxu0 0.0
        %1741 = vmatpush1.msra.mxu0 0.0
        %1742 = vmatprep.subr.mxu0 0.0
        %1743 = vmatpush1.msra.mxu0 0.0
        %1744 = vmatprep.subr.mxu0 0.0
        %1745 = vmatpush1.msra.mxu0 0.0
        %1746 = vmatprep.subr.mxu0 0.0
        %1747 = vmatpush1.msra.mxu0 0.0
        %1748 = vmatprep.subr.mxu0 0.0
        %1749 = vmatpush1.msra.mxu0 0.0
        %1750 = vmatprep.subr.mxu0 0.0
        %1751 = vmatpush1.msra.mxu0 0.0
        %1752 = vmatprep.subr.mxu0 0.0
        %1753 = vmatpush1.msra.mxu0 0.0
        %1754 = vmatprep.subr.mxu0 0.0
        %1755 = vmatpush1.msra.mxu0 0.0
        %1756 = vmatprep.subr.mxu0 0.0
        %1757 = vmatpush1.msra.mxu0 0.0
        %1758 = vmatprep.subr.mxu0 0.0
        %1759 = vmatpush1.msra.mxu0 %v1723
        %1760 = vmatprep.subr.mxu0 0.0
        %1761 = vmatpush1.msra.mxu0 %v1722
        %1762 = vmatprep.subr.mxu0 0.0
        %1763 = vmatpush1.msra.mxu0 %v1721
        %1764 = vmatprep.subr.mxu0 0.0
        %1765 = vmatpush1.msra.mxu0 %v1720
        %1766 = vmatprep.subr.mxu0 0.0
        %1767 = vmatpush2.msra.mxu0 0.0
        %1768 = vmatprep.subr.mxu0 0.0
        %1769 = vmatpush2.msra.mxu0 0.0
        %1770 = vmatprep.subr.mxu0 0.0
        %1771 = vmatpush2.msra.mxu0 0.0
        %1772 = vmatprep.subr.mxu0 0.0
        %1773 = vmatpush2.msra.mxu0 0.0
        %1774 = vmatprep.subr.mxu0 0.0
        %1775 = vmatpush2.msra.mxu0 0.0
        %1776 = vmatprep.subr.mxu0 0.0
        %1777 = vmatpush2.msra.mxu0 0.0
        %1778 = vmatprep.subr.mxu0 0.0
        %1779 = vmatpush2.msra.mxu0 0.0
        %1780 = vmatprep.subr.mxu0 0.0
        %1781 = vmatpush2.msra.mxu0 0.0
        %1782 = vmatprep.subr.mxu0 0.0
        %1783 = vmatpush2.msra.mxu0 0.0
        %1784 = vmatprep.subr.mxu0 0.0
        %1785 = vmatpush2.msra.mxu0 0.0
        %1786 = vmatprep.subr.mxu0 0.0
        %1787 = vmatpush2.msra.mxu0 0.0
        %1788 = vmatprep.subr.mxu0 0.0
        %1789 = vmatpush2.msra.mxu0 0.0
        %1790 = vmatprep.subr.mxu0 0.0
        %1791 = vmatpush2.msra.mxu0 0.0
        %1792 = vmatprep.subr.mxu0 0.0
        %1793 = vmatpush2.msra.mxu0 0.0
        %1794 = vmatprep.subr.mxu0 0.0
        %1795 = vmatpush2.msra.mxu0 0.0
        %1796 = vmatprep.subr.mxu0 0.0
        %1797 = vmatpush2.msra.mxu0 0.0
        %1798 = vmatprep.mubr.f32.mxu0 0.0
        %1799 = vmatmul.mubr.f32.gmra.mxu0 %v1732
        %v1800 = vpop.f32.mrf.mxu0
        %v1801 = vadd.f32 %v1729, %v1800
        %v1802 = vpop.f32.mrf.mxu0
        %1803 = vdwg.mxu0
        %v1804 = vld [vmem:[#allocation4] sm:$0xf]
        %v1805 = vadd.f32 %v1801, %v1804
        %v1806 = vlaneseq
        %v1807 = vshrl.u32 %v1806, 7
        %v1808 = vsub.s32 0, %v1807
        %v1809 = vrot.slane %v1805, %v1808
        %v1810 = vsub.f32 %v1805, %v1809
        %vm1811 = vcmask 9216
        %1812 = vst.msk [vmem:[#allocation6] sm:$0x3] %vm1811, %v1810
        %vm1813 = vcmask 254976
        %1814 = vst.msk [vmem:[#allocation7] sm:$0x3] %vm1813, %v1717
        %v1815 = vlaneseq
        %v1816 = vshrl.u32 %v1815, 7
        %v1817 = vsub.s32 1, %v1816
        %v1818 = vrot.slane %v1805, %v1817
        %v1819 = vsub.f32 %v1805, %v1818
        %1820 = vst.msk [vmem:[#allocation6 + $0x2] sm:$0x3] %vm1811, %v1819
        %1821 = vst.msk [vmem:[#allocation7 + $0x2] sm:$0x3] %vm1813, %v1717
        %v1822 = vld [vmem:[#allocation6] sm:$0xf]
        %v1823 = vld [vmem:[#allocation7] sm:$0xf]
        %v1824 = vld [vmem:[%s23] sm:$0x3]
        %v1825 = vld [vmem:[%s25] sm:$0x1]
        %v1827 = vlaneseq
        %v1828 = vshrl.u32 %v1827, 7
        %v1829 = vsub.s32 0, %v1828
        %v1830 = vrot.slane %v1825, %v1829
        %vm1832 = vcmask 15360
        %v1834 = vsel %vm1832, %v1822, 0
        %vm1836 = vcmask 1041408
        %v1838 = vsel %vm1836, %v1824, 0
        %1840 = vmatprep.subr.mxu0 0.0
        %1841 = vmatpush1.msra.mxu0 0.0
        %1842 = vmatprep.subr.mxu0 0.0
        %1843 = vmatpush1.msra.mxu0 0.0
        %1844 = vmatprep.subr.mxu0 0.0
        %1845 = vmatpush1.msra.mxu0 0.0
        %1846 = vmatprep.subr.mxu0 0.0
        %1847 = vmatpush1.msra.mxu0 0.0
        %1848 = vmatprep.subr.mxu0 0.0
        %1849 = vmatpush1.msra.mxu0 0.0
        %1850 = vmatprep.subr.mxu0 0.0
        %1851 = vmatpush1.msra.mxu0 0.0
        %1852 = vmatprep.subr.mxu0 0.0
        %1853 = vmatpush1.msra.mxu0 0.0
        %1854 = vmatprep.subr.mxu0 0.0
        %1855 = vmatpush1.msra.mxu0 0.0
        %1856 = vmatprep.subr.mxu0 0.0
        %1857 = vmatpush1.msra.mxu0 0.0
        %1858 = vmatprep.subr.mxu0 0.0
        %1859 = vmatpush1.msra.mxu0 0.0
        %1860 = vmatprep.subr.mxu0 0.0
        %1861 = vmatpush1.msra.mxu0 0.0
        %1862 = vmatprep.subr.mxu0 0.0
        %1863 = vmatpush1.msra.mxu0 0.0
        %1864 = vmatprep.subr.mxu0 0.0
        %1865 = vmatpush1.msra.mxu0 0.0
        %1866 = vmatprep.subr.mxu0 0.0
        %1867 = vmatpush1.msra.mxu0 0.0
        %1868 = vmatprep.subr.mxu0 0.0
        %1869 = vmatpush1.msra.mxu0 0.0
        %1870 = vmatprep.subr.mxu0 0.0
        %1871 = vmatpush1.msra.mxu0 %v1838
        %1872 = vmatprep.subr.mxu0 0.0
        %1873 = vmatpush2.msra.mxu0 0.0
        %1874 = vmatprep.subr.mxu0 0.0
        %1875 = vmatpush2.msra.mxu0 0.0
        %1876 = vmatprep.subr.mxu0 0.0
        %1877 = vmatpush2.msra.mxu0 0.0
        %1878 = vmatprep.subr.mxu0 0.0
        %1879 = vmatpush2.msra.mxu0 0.0
        %1880 = vmatprep.subr.mxu0 0.0
        %1881 = vmatpush2.msra.mxu0 0.0
        %1882 = vmatprep.subr.mxu0 0.0
        %1883 = vmatpush2.msra.mxu0 0.0
        %1884 = vmatprep.subr.mxu0 0.0
        %1885 = vmatpush2.msra.mxu0 0.0
        %1886 = vmatprep.subr.mxu0 0.0
        %1887 = vmatpush2.msra.mxu0 0.0
        %1888 = vmatprep.subr.mxu0 0.0
        %1889 = vmatpush2.msra.mxu0 0.0
        %1890 = vmatprep.subr.mxu0 0.0
        %1891 = vmatpush2.msra.mxu0 0.0
        %1892 = vmatprep.subr.mxu0 0.0
        %1893 = vmatpush2.msra.mxu0 0.0
        %1894 = vmatprep.subr.mxu0 0.0
        %1895 = vmatpush2.msra.mxu0 0.0
        %1896 = vmatprep.subr.mxu0 0.0
        %1897 = vmatpush2.msra.mxu0 0.0
        %1898 = vmatprep.subr.mxu0 0.0
        %1899 = vmatpush2.msra.mxu0 0.0
        %1900 = vmatprep.subr.mxu0 0.0
        %1901 = vmatpush2.msra.mxu0 0.0
        %1902 = vmatprep.subr.mxu0 0.0
        %1903 = vmatpush2.msra.mxu0 0.0
        %1904 = vmatprep.mubr.f32.mxu0 0.0
        %1905 = vmatmul.mubr.f32.gmra.mxu0 %v1834
        %v1906 = vpop.f32.mrf.mxu0
        %v1907 = vadd.f32 %v1830, %v1906
        %v1908 = vpop.f32.mrf.mxu0
        %1909 = vdwg.mxu0
        %v1910 = vld [vmem:[%s27] sm:$0xff]
        %v1911 = vld [vmem:[%s27 + $0x8] sm:$0xff]
        %v1912 = vld [vmem:[%s27 + $0x10] sm:$0xff]
        %v1913 = vld [vmem:[%s27 + $0x18] sm:$0xff]
        %v1914 = vld [vmem:[%s27 + $0x20] sm:$0xff]
        %v1915 = vld [vmem:[%s27 + $0x28] sm:$0xff]
        %v1916 = vld [vmem:[%s27 + $0x30] sm:$0xff]
        %v1917 = vld [vmem:[%s27 + $0x38] sm:$0xff]
        %v1918 = vld [vmem:[%s27 + $0x40] sm:$0xff]
        %v1919 = vld [vmem:[%s27 + $0x48] sm:$0xff]
        %v1920 = vld [vmem:[%s27 + $0x50] sm:$0xff]
        %v1921 = vld [vmem:[%s27 + $0x58] sm:$0xff]
        %v1922 = vld [vmem:[%s27 + $0x60] sm:$0xff]
        %v1923 = vld [vmem:[%s27 + $0x68] sm:$0xff]
        %v1924 = vld [vmem:[%s27 + $0x70] sm:$0xff]
        %v1925 = vld [vmem:[%s27 + $0x78] sm:$0xff]
        %v1926 = vld [vmem:[%s29] sm:$0xff]
        %v1927 = vld [vmem:[%s29 + $0x8] sm:$0xff]
        %v1928 = vld [vmem:[%s29 + $0x10] sm:$0xff]
        %v1929 = vld [vmem:[%s29 + $0x18] sm:$0xff]
        %v1930 = vld [vmem:[%s29 + $0x20] sm:$0xff]
        %v1931 = vld [vmem:[%s29 + $0x28] sm:$0xff]
        %v1932 = vld [vmem:[%s29 + $0x30] sm:$0xff]
        %v1933 = vld [vmem:[%s29 + $0x38] sm:$0xff]
        %v1934 = vld [vmem:[%s29 + $0x40] sm:$0xff]
        %v1935 = vld [vmem:[%s29 + $0x48] sm:$0xff]
        %v1936 = vld [vmem:[%s29 + $0x50] sm:$0xff]
        %v1937 = vld [vmem:[%s29 + $0x58] sm:$0xff]
        %v1938 = vld [vmem:[%s29 + $0x60] sm:$0xff]
        %v1939 = vld [vmem:[%s29 + $0x68] sm:$0xff]
        %v1940 = vld [vmem:[%s29 + $0x70] sm:$0xff]
        %v1941 = vld [vmem:[%s29 + $0x78] sm:$0xff]
        %v1943 = vsel %vm1062, %v1823, 0
        %1945 = vmatprep.subr.mxu0 0.0
        %1946 = vmatpush1.msra.mxu0 0.0
        %1947 = vmatprep.subr.mxu0 0.0
        %1948 = vmatpush1.msra.mxu0 0.0
        %1949 = vmatprep.subr.mxu0 0.0
        %1950 = vmatpush1.msra.mxu0 0.0
        %1951 = vmatprep.subr.mxu0 0.0
        %1952 = vmatpush1.msra.mxu0 0.0
        %1953 = vmatprep.subr.mxu0 0.0
        %1954 = vmatpush1.msra.mxu0 0.0
        %1955 = vmatprep.subr.mxu0 0.0
        %1956 = vmatpush1.msra.mxu0 0.0
        %1957 = vmatprep.subr.mxu0 0.0
        %1958 = vmatpush1.msra.mxu0 0.0
        %1959 = vmatprep.subr.mxu0 0.0
        %1960 = vmatpush1.msra.mxu0 0.0
        %1961 = vmatprep.subr.mxu0 0.0
        %1962 = vmatpush1.msra.mxu0 0.0
        %1963 = vmatprep.subr.mxu0 0.0
        %1964 = vmatpush1.msra.mxu0 0.0
        %1965 = vmatprep.subr.mxu0 0.0
        %1966 = vmatpush1.msra.mxu0 0.0
        %1967 = vmatprep.subr.mxu0 0.0
        %1968 = vmatpush1.msra.mxu0 0.0
        %1969 = vmatprep.subr.mxu0 %v1939
        %1970 = vmatpush1.msra.mxu0 %v1938
        %1971 = vmatprep.subr.mxu0 %v1935
        %1972 = vmatpush1.msra.mxu0 %v1934
        %1973 = vmatprep.subr.mxu0 %v1931
        %1974 = vmatpush1.msra.mxu0 %v1930
        %1975 = vmatprep.subr.mxu0 %v1927
        %1976 = vmatpush1.msra.mxu0 %v1926
        %1977 = vmatprep.subr.mxu0 0.0
        %1978 = vmatpush2.msra.mxu0 0.0
        %1979 = vmatprep.subr.mxu0 0.0
        %1980 = vmatpush2.msra.mxu0 0.0
        %1981 = vmatprep.subr.mxu0 0.0
        %1982 = vmatpush2.msra.mxu0 0.0
        %1983 = vmatprep.subr.mxu0 0.0
        %1984 = vmatpush2.msra.mxu0 0.0
        %1985 = vmatprep.subr.mxu0 0.0
        %1986 = vmatpush2.msra.mxu0 0.0
        %1987 = vmatprep.subr.mxu0 0.0
        %1988 = vmatpush2.msra.mxu0 0.0
        %1989 = vmatprep.subr.mxu0 0.0
        %1990 = vmatpush2.msra.mxu0 0.0
        %1991 = vmatprep.subr.mxu0 0.0
        %1992 = vmatpush2.msra.mxu0 0.0
        %1993 = vmatprep.subr.mxu0 0.0
        %1994 = vmatpush2.msra.mxu0 0.0
        %1995 = vmatprep.subr.mxu0 0.0
        %1996 = vmatpush2.msra.mxu0 0.0
        %1997 = vmatprep.subr.mxu0 0.0
        %1998 = vmatpush2.msra.mxu0 0.0
        %1999 = vmatprep.subr.mxu0 0.0
        %2000 = vmatpush2.msra.mxu0 0.0
        %2001 = vmatprep.subr.mxu0 0.0
        %2002 = vmatpush2.msra.mxu0 0.0
        %2003 = vmatprep.subr.mxu0 0.0
        %2004 = vmatpush2.msra.mxu0 0.0
        %2005 = vmatprep.subr.mxu0 0.0
        %2006 = vmatpush2.msra.mxu0 0.0
        %2007 = vmatprep.subr.mxu0 0.0
        %2008 = vmatpush2.msra.mxu0 0.0
        %2009 = vmatprep.mubr.f32.mxu0 0.0
        %2010 = vmatmul.mubr.f32.gmra.mxu0 %v1943
        %v2011 = vpop.f32.mrf.mxu0
        %v2012 = vadd.f32 0.0, %v2011
        %v2013 = vpop.f32.mrf.mxu0
        %v2014 = vadd.f32 0.0, %v2013
        %2015 = vdwg.mxu0
        %2016 = vmatprep.subr.mxu0 0.0
        %2017 = vmatpush1.msra.mxu0 0.0
        %2018 = vmatprep.subr.mxu0 0.0
        %2019 = vmatpush1.msra.mxu0 0.0
        %2020 = vmatprep.subr.mxu0 0.0
        %2021 = vmatpush1.msra.mxu0 0.0
        %2022 = vmatprep.subr.mxu0 0.0
        %2023 = vmatpush1.msra.mxu0 0.0
        %2024 = vmatprep.subr.mxu0 0.0
        %2025 = vmatpush1.msra.mxu0 0.0
        %2026 = vmatprep.subr.mxu0 0.0
        %2027 = vmatpush1.msra.mxu0 0.0
        %2028 = vmatprep.subr.mxu0 0.0
        %2029 = vmatpush1.msra.mxu0 0.0
        %2030 = vmatprep.subr.mxu0 0.0
        %2031 = vmatpush1.msra.mxu0 0.0
        %2032 = vmatprep.subr.mxu0 0.0
        %2033 = vmatpush1.msra.mxu0 0.0
        %2034 = vmatprep.subr.mxu0 0.0
        %2035 = vmatpush1.msra.mxu0 0.0
        %2036 = vmatprep.subr.mxu0 0.0
        %2037 = vmatpush1.msra.mxu0 0.0
        %2038 = vmatprep.subr.mxu0 0.0
        %2039 = vmatpush1.msra.mxu0 0.0
        %2040 = vmatprep.subr.mxu0 %v1941
        %2041 = vmatpush1.msra.mxu0 %v1940
        %2042 = vmatprep.subr.mxu0 %v1937
        %2043 = vmatpush1.msra.mxu0 %v1936
        %2044 = vmatprep.subr.mxu0 %v1933
        %2045 = vmatpush1.msra.mxu0 %v1932
        %2046 = vmatprep.subr.mxu0 %v1929
        %2047 = vmatpush1.msra.mxu0 %v1928
        %2048 = vmatprep.subr.mxu0 0.0
        %2049 = vmatpush2.msra.mxu0 0.0
        %2050 = vmatprep.subr.mxu0 0.0
        %2051 = vmatpush2.msra.mxu0 0.0
        %2052 = vmatprep.subr.mxu0 0.0
        %2053 = vmatpush2.msra.mxu0 0.0
        %2054 = vmatprep.subr.mxu0 0.0
        %2055 = vmatpush2.msra.mxu0 0.0
        %2056 = vmatprep.subr.mxu0 0.0
        %2057 = vmatpush2.msra.mxu0 0.0
        %2058 = vmatprep.subr.mxu0 0.0
        %2059 = vmatpush2.msra.mxu0 0.0
        %2060 = vmatprep.subr.mxu0 0.0
        %2061 = vmatpush2.msra.mxu0 0.0
        %2062 = vmatprep.subr.mxu0 0.0
        %2063 = vmatpush2.msra.mxu0 0.0
        %2064 = vmatprep.subr.mxu0 0.0
        %2065 = vmatpush2.msra.mxu0 0.0
        %2066 = vmatprep.subr.mxu0 0.0
        %2067 = vmatpush2.msra.mxu0 0.0
        %2068 = vmatprep.subr.mxu0 0.0
        %2069 = vmatpush2.msra.mxu0 0.0
        %2070 = vmatprep.subr.mxu0 0.0
        %2071 = vmatpush2.msra.mxu0 0.0
        %2072 = vmatprep.subr.mxu0 0.0
        %2073 = vmatpush2.msra.mxu0 0.0
        %2074 = vmatprep.subr.mxu0 0.0
        %2075 = vmatpush2.msra.mxu0 0.0
        %2076 = vmatprep.subr.mxu0 0.0
        %2077 = vmatpush2.msra.mxu0 0.0
        %2078 = vmatprep.subr.mxu0 0.0
        %2079 = vmatpush2.msra.mxu0 0.0
        %2080 = vmatprep.mubr.f32.mxu0 0.0
        %2081 = vmatmul.mubr.f32.gmra.mxu0 %v1943
        %v2082 = vpop.f32.mrf.mxu0
        %v2083 = vadd.f32 0.0, %v2082
        %v2084 = vpop.f32.mrf.mxu0
        %v2085 = vadd.f32 0.0, %v2084
        %2086 = vdwg.mxu0
        %v2088 = vsel %vm1062, %v1907, 0
        %2090 = vmatprep.subr.mxu0 0.0
        %2091 = vmatpush1.msra.mxu0 0.0
        %2092 = vmatprep.subr.mxu0 0.0
        %2093 = vmatpush1.msra.mxu0 0.0
        %2094 = vmatprep.subr.mxu0 0.0
        %2095 = vmatpush1.msra.mxu0 0.0
        %2096 = vmatprep.subr.mxu0 0.0
        %2097 = vmatpush1.msra.mxu0 0.0
        %2098 = vmatprep.subr.mxu0 0.0
        %2099 = vmatpush1.msra.mxu0 0.0
        %2100 = vmatprep.subr.mxu0 0.0
        %2101 = vmatpush1.msra.mxu0 0.0
        %2102 = vmatprep.subr.mxu0 0.0
        %2103 = vmatpush1.msra.mxu0 0.0
        %2104 = vmatprep.subr.mxu0 0.0
        %2105 = vmatpush1.msra.mxu0 0.0
        %2106 = vmatprep.subr.mxu0 0.0
        %2107 = vmatpush1.msra.mxu0 0.0
        %2108 = vmatprep.subr.mxu0 0.0
        %2109 = vmatpush1.msra.mxu0 0.0
        %2110 = vmatprep.subr.mxu0 0.0
        %2111 = vmatpush1.msra.mxu0 0.0
        %2112 = vmatprep.subr.mxu0 0.0
        %2113 = vmatpush1.msra.mxu0 0.0
        %2114 = vmatprep.subr.mxu0 %v1923
        %2115 = vmatpush1.msra.mxu0 %v1922
        %2116 = vmatprep.subr.mxu0 %v1919
        %2117 = vmatpush1.msra.mxu0 %v1918
        %2118 = vmatprep.subr.mxu0 %v1915
        %2119 = vmatpush1.msra.mxu0 %v1914
        %2120 = vmatprep.subr.mxu0 %v1911
        %2121 = vmatpush1.msra.mxu0 %v1910
        %2122 = vmatprep.subr.mxu0 0.0
        %2123 = vmatpush2.msra.mxu0 0.0
        %2124 = vmatprep.subr.mxu0 0.0
        %2125 = vmatpush2.msra.mxu0 0.0
        %2126 = vmatprep.subr.mxu0 0.0
        %2127 = vmatpush2.msra.mxu0 0.0
        %2128 = vmatprep.subr.mxu0 0.0
        %2129 = vmatpush2.msra.mxu0 0.0
        %2130 = vmatprep.subr.mxu0 0.0
        %2131 = vmatpush2.msra.mxu0 0.0
        %2132 = vmatprep.subr.mxu0 0.0
        %2133 = vmatpush2.msra.mxu0 0.0
        %2134 = vmatprep.subr.mxu0 0.0
        %2135 = vmatpush2.msra.mxu0 0.0
        %2136 = vmatprep.subr.mxu0 0.0
        %2137 = vmatpush2.msra.mxu0 0.0
        %2138 = vmatprep.subr.mxu0 0.0
        %2139 = vmatpush2.msra.mxu0 0.0
        %2140 = vmatprep.subr.mxu0 0.0
        %2141 = vmatpush2.msra.mxu0 0.0
        %2142 = vmatprep.subr.mxu0 0.0
        %2143 = vmatpush2.msra.mxu0 0.0
        %2144 = vmatprep.subr.mxu0 0.0
        %2145 = vmatpush2.msra.mxu0 0.0
        %2146 = vmatprep.subr.mxu0 0.0
        %2147 = vmatpush2.msra.mxu0 0.0
        %2148 = vmatprep.subr.mxu0 0.0
        %2149 = vmatpush2.msra.mxu0 0.0
        %2150 = vmatprep.subr.mxu0 0.0
        %2151 = vmatpush2.msra.mxu0 0.0
        %2152 = vmatprep.subr.mxu0 0.0
        %2153 = vmatpush2.msra.mxu0 0.0
        %2154 = vmatprep.mubr.f32.mxu0 0.0
        %2155 = vmatmul.mubr.f32.gmra.mxu0 %v2088
        %v2156 = vpop.f32.mrf.mxu0
        %v2157 = vadd.f32 %v2012, %v2156
        %v2158 = vpop.f32.mrf.mxu0
        %v2159 = vadd.f32 %v2014, %v2158
        %2160 = vdwg.mxu0
        %2161 = vmatprep.subr.mxu0 0.0
        %2162 = vmatpush1.msra.mxu0 0.0
        %2163 = vmatprep.subr.mxu0 0.0
        %2164 = vmatpush1.msra.mxu0 0.0
        %2165 = vmatprep.subr.mxu0 0.0
        %2166 = vmatpush1.msra.mxu0 0.0
        %2167 = vmatprep.subr.mxu0 0.0
        %2168 = vmatpush1.msra.mxu0 0.0
        %2169 = vmatprep.subr.mxu0 0.0
        %2170 = vmatpush1.msra.mxu0 0.0
        %2171 = vmatprep.subr.mxu0 0.0
        %2172 = vmatpush1.msra.mxu0 0.0
        %2173 = vmatprep.subr.mxu0 0.0
        %2174 = vmatpush1.msra.mxu0 0.0
        %2175 = vmatprep.subr.mxu0 0.0
        %2176 = vmatpush1.msra.mxu0 0.0
        %2177 = vmatprep.subr.mxu0 0.0
        %2178 = vmatpush1.msra.mxu0 0.0
        %2179 = vmatprep.subr.mxu0 0.0
        %2180 = vmatpush1.msra.mxu0 0.0
        %2181 = vmatprep.subr.mxu0 0.0
        %2182 = vmatpush1.msra.mxu0 0.0
        %2183 = vmatprep.subr.mxu0 0.0
        %2184 = vmatpush1.msra.mxu0 0.0
        %2185 = vmatprep.subr.mxu0 %v1925
        %2186 = vmatpush1.msra.mxu0 %v1924
        %2187 = vmatprep.subr.mxu0 %v1921
        %2188 = vmatpush1.msra.mxu0 %v1920
        %2189 = vmatprep.subr.mxu0 %v1917
        %2190 = vmatpush1.msra.mxu0 %v1916
        %2191 = vmatprep.subr.mxu0 %v1913
        %2192 = vmatpush1.msra.mxu0 %v1912
        %2193 = vmatprep.subr.mxu0 0.0
        %2194 = vmatpush2.msra.mxu0 0.0
        %2195 = vmatprep.subr.mxu0 0.0
        %2196 = vmatpush2.msra.mxu0 0.0
        %2197 = vmatprep.subr.mxu0 0.0
        %2198 = vmatpush2.msra.mxu0 0.0
        %2199 = vmatprep.subr.mxu0 0.0
        %2200 = vmatpush2.msra.mxu0 0.0
        %2201 = vmatprep.subr.mxu0 0.0
        %2202 = vmatpush2.msra.mxu0 0.0
        %2203 = vmatprep.subr.mxu0 0.0
        %2204 = vmatpush2.msra.mxu0 0.0
        %2205 = vmatprep.subr.mxu0 0.0
        %2206 = vmatpush2.msra.mxu0 0.0
        %2207 = vmatprep.subr.mxu0 0.0
        %2208 = vmatpush2.msra.mxu0 0.0
        %2209 = vmatprep.subr.mxu0 0.0
        %2210 = vmatpush2.msra.mxu0 0.0
        %2211 = vmatprep.subr.mxu0 0.0
        %2212 = vmatpush2.msra.mxu0 0.0
        %2213 = vmatprep.subr.mxu0 0.0
        %2214 = vmatpush2.msra.mxu0 0.0
        %2215 = vmatprep.subr.mxu0 0.0
        %2216 = vmatpush2.msra.mxu0 0.0
        %2217 = vmatprep.subr.mxu0 0.0
        %2218 = vmatpush2.msra.mxu0 0.0
        %2219 = vmatprep.subr.mxu0 0.0
        %2220 = vmatpush2.msra.mxu0 0.0
        %2221 = vmatprep.subr.mxu0 0.0
        %2222 = vmatpush2.msra.mxu0 0.0
        %2223 = vmatprep.subr.mxu0 0.0
        %2224 = vmatpush2.msra.mxu0 0.0
        %2225 = vmatprep.mubr.f32.mxu0 0.0
        %2226 = vmatmul.mubr.f32.gmra.mxu0 %v2088
        %v2227 = vpop.f32.mrf.mxu0
        %v2228 = vadd.f32 %v2083, %v2227
        %v2229 = vpop.f32.mrf.mxu0
        %v2230 = vadd.f32 %v2085, %v2229
        %2231 = vdwg.mxu0
        %v2232 = vld [vmem:[%s31] sm:$0xf]
        %v2234 = vlaneseq
        %v2235 = vshrl.u32 %v2234, 7
        %v2236 = vsub.s32 0, %v2235
        %v2237 = vrot.slane %v2232, %v2236
        %v2238 = vlaneseq
        %v2239 = vshrl.u32 %v2238, 7
        %v2240 = vsub.s32 1, %v2239
        %v2241 = vrot.slane %v2232, %v2240
        %v2242 = vlaneseq
        %v2243 = vshrl.u32 %v2242, 7
        %v2244 = vsub.s32 2, %v2243
        %v2245 = vrot.slane %v2232, %v2244
        %v2246 = vlaneseq
        %v2247 = vshrl.u32 %v2246, 7
        %v2248 = vsub.s32 3, %v2247
        %v2249 = vrot.slane %v2232, %v2248
        %v2254 = vadd.f32 %v2157, %v2237
        %v2255 = vadd.f32 %v2159, %v2241
        %v2256 = vadd.f32 %v2228, %v2245
        %v2257 = vadd.f32 %v2230, %v2249
        %v2258 = vld [vmem:[%s33] sm:$0xf]
        %v2259 = vld [vmem:[%s35] sm:$0xf]
        %vm2260 = vcmask 1043456
        %v2261 = vsel %vm2260, %v2254, 0.0
        %v2262 = vrot.slane %v2261, 4
        %v2263 = vadd.f32 %v2261, %v2262
        %v2264 = vrot.slane %v2263, 2
        %v2265 = vadd.f32 %v2263, %v2264
        %v2266 = vrot.slane %v2265, 1
        %v2267 = vadd.f32 %v2265, %v2266
        %v2268 = vsel %vm2260, %v2255, 0.0
        %v2269 = vrot.slane %v2268, 4
        %v2270 = vadd.f32 %v2268, %v2269
        %v2271 = vrot.slane %v2270, 2
        %v2272 = vadd.f32 %v2270, %v2271
        %v2273 = vrot.slane %v2272, 1
        %v2274 = vadd.f32 %v2272, %v2273
        %v2275 = vsel %vm2260, %v2256, 0.0
        %v2276 = vrot.slane %v2275, 4
        %v2277 = vadd.f32 %v2275, %v2276
        %v2278 = vrot.slane %v2277, 2
        %v2279 = vadd.f32 %v2277, %v2278
        %v2280 = vrot.slane %v2279, 1
        %v2281 = vadd.f32 %v2279, %v2280
        %v2282 = vsel %vm2260, %v2257, 0.0
        %v2283 = vrot.slane %v2282, 4
        %v2284 = vadd.f32 %v2282, %v2283
        %v2285 = vrot.slane %v2284, 2
        %v2286 = vadd.f32 %v2284, %v2285
        %v2287 = vrot.slane %v2286, 1
        %v2288 = vadd.f32 %v2286, %v2287
        %v2289 = vrcp.pop 4.0
        %v2290 = vmul.f32 %v2267, %v2289
        %v2291 = vmul.f32 %v2274, %v2289
        %v2292 = vmul.f32 %v2281, %v2289
        %v2293 = vmul.f32 %v2288, %v2289
        %v2294 = vsub.f32 %v2254, %v2290
        %v2295 = vsub.f32 %v2255, %v2291
        %v2296 = vsub.f32 %v2256, %v2292
        %v2297 = vsub.f32 %v2257, %v2293
        %v2298 = vmul.f32 %v2294, %v2294
        %v2299 = vmul.f32 %v2295, %v2295
        %v2300 = vmul.f32 %v2296, %v2296
        %v2301 = vmul.f32 %v2297, %v2297
        %v2302 = vsel %vm2260, %v2298, 0.0
        %v2303 = vrot.slane %v2302, 4
        %v2304 = vadd.f32 %v2302, %v2303
        %v2305 = vrot.slane %v2304, 2
        %v2306 = vadd.f32 %v2304, %v2305
        %v2307 = vrot.slane %v2306, 1
        %v2308 = vadd.f32 %v2306, %v2307
        %v2309 = vsel %vm2260, %v2299, 0.0
        %v2310 = vrot.slane %v2309, 4
        %v2311 = vadd.f32 %v2309, %v2310
        %v2312 = vrot.slane %v2311, 2
        %v2313 = vadd.f32 %v2311, %v2312
        %v2314 = vrot.slane %v2313, 1
        %v2315 = vadd.f32 %v2313, %v2314
        %v2316 = vsel %vm2260, %v2300, 0.0
        %v2317 = vrot.slane %v2316, 4
        %v2318 = vadd.f32 %v2316, %v2317
        %v2319 = vrot.slane %v2318, 2
        %v2320 = vadd.f32 %v2318, %v2319
        %v2321 = vrot.slane %v2320, 1
        %v2322 = vadd.f32 %v2320, %v2321
        %v2323 = vsel %vm2260, %v2301, 0.0
        %v2324 = vrot.slane %v2323, 4
        %v2325 = vadd.f32 %v2323, %v2324
        %v2326 = vrot.slane %v2325, 2
        %v2327 = vadd.f32 %v2325, %v2326
        %v2328 = vrot.slane %v2327, 1
        %v2329 = vadd.f32 %v2327, %v2328
        %v2330 = vmul.f32 %v2308, %v2289
        %v2331 = vmul.f32 %v2315, %v2289
        %v2332 = vmul.f32 %v2322, %v2289
        %v2333 = vmul.f32 %v2329, %v2289
        %v2334 = vadd.f32 %v2330, 1e-05
        %v2335 = vadd.f32 %v2331, 1e-05
        %v2336 = vadd.f32 %v2332, 1e-05
        %v2337 = vadd.f32 %v2333, 1e-05
        %v2338 = vrsqrt.pop %v2334
        %v2339 = vrsqrt.pop %v2335
        %v2340 = vrsqrt.pop %v2336
        %v2341 = vrsqrt.pop %v2337
        %v2342 = vmul.f32 %v2294, %v2338
        %v2343 = vmul.f32 %v2295, %v2339
        %v2344 = vmul.f32 %v2296, %v2340
        %v2345 = vmul.f32 %v2297, %v2341
        %v2347 = vlaneseq
        %v2348 = vshrl.u32 %v2347, 7
        %v2349 = vsub.s32 0, %v2348
        %v2350 = vrot.slane %v2258, %v2349
        %v2351 = vlaneseq
        %v2352 = vshrl.u32 %v2351, 7
        %v2353 = vsub.s32 1, %v2352
        %v2354 = vrot.slane %v2258, %v2353
        %v2355 = vlaneseq
        %v2356 = vshrl.u32 %v2355, 7
        %v2357 = vsub.s32 2, %v2356
        %v2358 = vrot.slane %v2258, %v2357
        %v2359 = vlaneseq
        %v2360 = vshrl.u32 %v2359, 7
        %v2361 = vsub.s32 3, %v2360
        %v2362 = vrot.slane %v2258, %v2361
        %v2367 = vmul.f32 %v2342, %v2350
        %v2368 = vmul.f32 %v2343, %v2354
        %v2369 = vmul.f32 %v2344, %v2358
        %v2370 = vmul.f32 %v2345, %v2362
        %v2372 = vlaneseq
        %v2373 = vshrl.u32 %v2372, 7
        %v2374 = vsub.s32 0, %v2373
        %v2375 = vrot.slane %v2259, %v2374
        %v2376 = vlaneseq
        %v2377 = vshrl.u32 %v2376, 7
        %v2378 = vsub.s32 1, %v2377
        %v2379 = vrot.slane %v2259, %v2378
        %v2380 = vlaneseq
        %v2381 = vshrl.u32 %v2380, 7
        %v2382 = vsub.s32 2, %v2381
        %v2383 = vrot.slane %v2259, %v2382
        %v2384 = vlaneseq
        %v2385 = vshrl.u32 %v2384, 7
        %v2386 = vsub.s32 3, %v2385
        %v2387 = vrot.slane %v2259, %v2386
        %v2392 = vadd.f32 %v2367, %v2375
        %v2393 = vadd.f32 %v2368, %v2379
        %v2394 = vadd.f32 %v2369, %v2383
        %v2395 = vadd.f32 %v2370, %v2387
        %v2396 = vmax.f32 %v2392, 0.0
        %v2397 = vmax.f32 %v2393, 0.0
        %v2398 = vmax.f32 %v2394, 0.0
        %v2399 = vmax.f32 %v2395, 0.0
        %v2400 = vld [vmem:[%s37] sm:$0xff]
        %v2401 = vld [vmem:[%s37 + $0x8] sm:$0xff]
        %v2402 = vld [vmem:[%s37 + $0x10] sm:$0xff]
        %v2403 = vld [vmem:[%s37 + $0x18] sm:$0xff]
        %v2404 = vld [vmem:[%s37 + $0x20] sm:$0xff]
        %v2405 = vld [vmem:[%s37 + $0x28] sm:$0xff]
        %v2406 = vld [vmem:[%s37 + $0x30] sm:$0xff]
        %v2407 = vld [vmem:[%s37 + $0x38] sm:$0xff]
        %v2408 = vld [vmem:[%s37 + $0x40] sm:$0xff]
        %v2409 = vld [vmem:[%s37 + $0x48] sm:$0xff]
        %v2410 = vld [vmem:[%s37 + $0x50] sm:$0xff]
        %v2411 = vld [vmem:[%s37 + $0x58] sm:$0xff]
        %v2412 = vld [vmem:[%s37 + $0x60] sm:$0xff]
        %v2413 = vld [vmem:[%s37 + $0x68] sm:$0xff]
        %v2414 = vld [vmem:[%s37 + $0x70] sm:$0xff]
        %v2415 = vld [vmem:[%s37 + $0x78] sm:$0xff]
        %v2416 = vld [vmem:[%s37 + $0x80] sm:$0xff]
        %v2417 = vld [vmem:[%s37 + $0x88] sm:$0xff]
        %v2418 = vld [vmem:[%s37 + $0x90] sm:$0xff]
        %v2419 = vld [vmem:[%s37 + $0x98] sm:$0xff]
        %v2420 = vld [vmem:[%s37 + $0xa0] sm:$0xff]
        %v2421 = vld [vmem:[%s37 + $0xa8] sm:$0xff]
        %v2422 = vld [vmem:[%s37 + $0xb0] sm:$0xff]
        %v2423 = vld [vmem:[%s37 + $0xb8] sm:$0xff]
        %v2424 = vld [vmem:[%s37 + $0xc0] sm:$0xff]
        %v2425 = vld [vmem:[%s37 + $0xc8] sm:$0xff]
        %v2426 = vld [vmem:[%s37 + $0xd0] sm:$0xff]
        %v2427 = vld [vmem:[%s37 + $0xd8] sm:$0xff]
        %v2428 = vld [vmem:[%s37 + $0xe0] sm:$0xff]
        %v2429 = vld [vmem:[%s37 + $0xe8] sm:$0xff]
        %v2430 = vld [vmem:[%s37 + $0xf0] sm:$0xff]
        %v2431 = vld [vmem:[%s37 + $0xf8] sm:$0xff]
        %v2432 = vld [vmem:[%s37 + $0x100] sm:$0xff]
        %v2433 = vld [vmem:[%s37 + $0x108] sm:$0xff]
        %v2434 = vld [vmem:[%s37 + $0x110] sm:$0xff]
        %v2435 = vld [vmem:[%s37 + $0x118] sm:$0xff]
        %v2436 = vld [vmem:[%s37 + $0x120] sm:$0xff]
        %v2437 = vld [vmem:[%s37 + $0x128] sm:$0xff]
        %v2438 = vld [vmem:[%s37 + $0x130] sm:$0xff]
        %v2439 = vld [vmem:[%s37 + $0x138] sm:$0xff]
        %v2440 = vld [vmem:[%s37 + $0x140] sm:$0xff]
        %v2441 = vld [vmem:[%s37 + $0x148] sm:$0xff]
        %v2442 = vld [vmem:[%s37 + $0x150] sm:$0xff]
        %v2443 = vld [vmem:[%s37 + $0x158] sm:$0xff]
        %v2444 = vld [vmem:[%s37 + $0x160] sm:$0xff]
        %v2445 = vld [vmem:[%s37 + $0x168] sm:$0xff]
        %v2446 = vld [vmem:[%s37 + $0x170] sm:$0xff]
        %v2447 = vld [vmem:[%s37 + $0x178] sm:$0xff]
        %v2448 = vld [vmem:[%s37 + $0x180] sm:$0xff]
        %v2449 = vld [vmem:[%s37 + $0x188] sm:$0xff]
        %v2450 = vld [vmem:[%s37 + $0x190] sm:$0xff]
        %v2451 = vld [vmem:[%s37 + $0x198] sm:$0xff]
        %v2452 = vld [vmem:[%s37 + $0x1a0] sm:$0xff]
        %v2453 = vld [vmem:[%s37 + $0x1a8] sm:$0xff]
        %v2454 = vld [vmem:[%s37 + $0x1b0] sm:$0xff]
        %v2455 = vld [vmem:[%s37 + $0x1b8] sm:$0xff]
        %v2456 = vld [vmem:[%s37 + $0x1c0] sm:$0xff]
        %v2457 = vld [vmem:[%s37 + $0x1c8] sm:$0xff]
        %v2458 = vld [vmem:[%s37 + $0x1d0] sm:$0xff]
        %v2459 = vld [vmem:[%s37 + $0x1d8] sm:$0xff]
        %v2460 = vld [vmem:[%s37 + $0x1e0] sm:$0xff]
        %v2461 = vld [vmem:[%s37 + $0x1e8] sm:$0xff]
        %v2462 = vld [vmem:[%s37 + $0x1f0] sm:$0xff]
        %v2463 = vld [vmem:[%s37 + $0x1f8] sm:$0xff]
        %v2464 = vld [vmem:[%s39] sm:$0x1]
        %v2466 = vlaneseq
        %v2467 = vshrl.u32 %v2466, 7
        %v2468 = vsub.s32 0, %v2467
        %v2469 = vrot.slane %v2464, %v2468
        %2471 = vmatprep.subr.mxu0 0.0
        %2472 = vmatpush1.msra.mxu0 %v2415
        %2473 = vmatprep.subr.mxu0 0.0
        %2474 = vmatpush1.msra.mxu0 %v2414
        %2475 = vmatprep.subr.mxu0 0.0
        %2476 = vmatpush1.msra.mxu0 %v2413
        %2477 = vmatprep.subr.mxu0 0.0
        %2478 = vmatpush1.msra.mxu0 %v2412
        %2479 = vmatprep.subr.mxu0 0.0
        %2480 = vmatpush1.msra.mxu0 %v2411
        %2481 = vmatprep.subr.mxu0 0.0
        %2482 = vmatpush1.msra.mxu0 %v2410
        %2483 = vmatprep.subr.mxu0 0.0
        %2484 = vmatpush1.msra.mxu0 %v2409
        %2485 = vmatprep.subr.mxu0 0.0
        %2486 = vmatpush1.msra.mxu0 %v2408
        %2487 = vmatprep.subr.mxu0 0.0
        %2488 = vmatpush1.msra.mxu0 %v2407
        %2489 = vmatprep.subr.mxu0 0.0
        %2490 = vmatpush1.msra.mxu0 %v2406
        %2491 = vmatprep.subr.mxu0 0.0
        %2492 = vmatpush1.msra.mxu0 %v2405
        %2493 = vmatprep.subr.mxu0 0.0
        %2494 = vmatpush1.msra.mxu0 %v2404
        %2495 = vmatprep.subr.mxu0 0.0
        %2496 = vmatpush1.msra.mxu0 %v2403
        %2497 = vmatprep.subr.mxu0 0.0
        %2498 = vmatpush1.msra.mxu0 %v2402
        %2499 = vmatprep.subr.mxu0 0.0
        %2500 = vmatpush1.msra.mxu0 %v2401
        %2501 = vmatprep.subr.mxu0 0.0
        %2502 = vmatpush1.msra.mxu0 %v2400
        %2503 = vmatprep.subr.mxu0 0.0
        %2504 = vmatpush2.msra.mxu0 %v2431
        %2505 = vmatprep.subr.mxu0 0.0
        %2506 = vmatpush2.msra.mxu0 %v2430
        %2507 = vmatprep.subr.mxu0 0.0
        %2508 = vmatpush2.msra.mxu0 %v2429
        %2509 = vmatprep.subr.mxu0 0.0
        %2510 = vmatpush2.msra.mxu0 %v2428
        %2511 = vmatprep.subr.mxu0 0.0
        %2512 = vmatpush2.msra.mxu0 %v2427
        %2513 = vmatprep.subr.mxu0 0.0
        %2514 = vmatpush2.msra.mxu0 %v2426
        %2515 = vmatprep.subr.mxu0 0.0
        %2516 = vmatpush2.msra.mxu0 %v2425
        %2517 = vmatprep.subr.mxu0 0.0
        %2518 = vmatpush2.msra.mxu0 %v2424
        %2519 = vmatprep.subr.mxu0 0.0
        %2520 = vmatpush2.msra.mxu0 %v2423
        %2521 = vmatprep.subr.mxu0 0.0
        %2522 = vmatpush2.msra.mxu0 %v2422
        %2523 = vmatprep.subr.mxu0 0.0
        %2524 = vmatpush2.msra.mxu0 %v2421
        %2525 = vmatprep.subr.mxu0 0.0
        %2526 = vmatpush2.msra.mxu0 %v2420
        %2527 = vmatprep.subr.mxu0 0.0
        %2528 = vmatpush2.msra.mxu0 %v2419
        %2529 = vmatprep.subr.mxu0 0.0
        %2530 = vmatpush2.msra.mxu0 %v2418
        %2531 = vmatprep.subr.mxu0 0.0
        %2532 = vmatpush2.msra.mxu0 %v2417
        %2533 = vmatprep.subr.mxu0 0.0
        %2534 = vmatpush2.msra.mxu0 %v2416
        %2535 = vmatprep.mubr.f32.mxu0 %v2397
        %2536 = vmatmul.mubr.f32.gmra.mxu0 %v2396
        %v2537 = vpop.f32.mrf.mxu0
        %v2538 = vadd.f32 %v2469, %v2537
        %v2539 = vpop.f32.mrf.mxu0
        %2540 = vdwg.mxu0
        %2541 = vmatprep.subr.mxu0 0.0
        %2542 = vmatpush1.msra.mxu0 %v2447
        %2543 = vmatprep.subr.mxu0 0.0
        %2544 = vmatpush1.msra.mxu0 %v2446
        %2545 = vmatprep.subr.mxu0 0.0
        %2546 = vmatpush1.msra.mxu0 %v2445
        %2547 = vmatprep.subr.mxu0 0.0
        %2548 = vmatpush1.msra.mxu0 %v2444
        %2549 = vmatprep.subr.mxu0 0.0
        %2550 = vmatpush1.msra.mxu0 %v2443
        %2551 = vmatprep.subr.mxu0 0.0
        %2552 = vmatpush1.msra.mxu0 %v2442
        %2553 = vmatprep.subr.mxu0 0.0
        %2554 = vmatpush1.msra.mxu0 %v2441
        %2555 = vmatprep.subr.mxu0 0.0
        %2556 = vmatpush1.msra.mxu0 %v2440
        %2557 = vmatprep.subr.mxu0 0.0
        %2558 = vmatpush1.msra.mxu0 %v2439
        %2559 = vmatprep.subr.mxu0 0.0
        %2560 = vmatpush1.msra.mxu0 %v2438
        %2561 = vmatprep.subr.mxu0 0.0
        %2562 = vmatpush1.msra.mxu0 %v2437
        %2563 = vmatprep.subr.mxu0 0.0
        %2564 = vmatpush1.msra.mxu0 %v2436
        %2565 = vmatprep.subr.mxu0 0.0
        %2566 = vmatpush1.msra.mxu0 %v2435
        %2567 = vmatprep.subr.mxu0 0.0
        %2568 = vmatpush1.msra.mxu0 %v2434
        %2569 = vmatprep.subr.mxu0 0.0
        %2570 = vmatpush1.msra.mxu0 %v2433
        %2571 = vmatprep.subr.mxu0 0.0
        %2572 = vmatpush1.msra.mxu0 %v2432
        %2573 = vmatprep.subr.mxu0 0.0
        %2574 = vmatpush2.msra.mxu0 %v2463
        %2575 = vmatprep.subr.mxu0 0.0
        %2576 = vmatpush2.msra.mxu0 %v2462
        %2577 = vmatprep.subr.mxu0 0.0
        %2578 = vmatpush2.msra.mxu0 %v2461
        %2579 = vmatprep.subr.mxu0 0.0
        %2580 = vmatpush2.msra.mxu0 %v2460
        %2581 = vmatprep.subr.mxu0 0.0
        %2582 = vmatpush2.msra.mxu0 %v2459
        %2583 = vmatprep.subr.mxu0 0.0
        %2584 = vmatpush2.msra.mxu0 %v2458
        %2585 = vmatprep.subr.mxu0 0.0
        %2586 = vmatpush2.msra.mxu0 %v2457
        %2587 = vmatprep.subr.mxu0 0.0
        %2588 = vmatpush2.msra.mxu0 %v2456
        %2589 = vmatprep.subr.mxu0 0.0
        %2590 = vmatpush2.msra.mxu0 %v2455
        %2591 = vmatprep.subr.mxu0 0.0
        %2592 = vmatpush2.msra.mxu0 %v2454
        %2593 = vmatprep.subr.mxu0 0.0
        %2594 = vmatpush2.msra.mxu0 %v2453
        %2595 = vmatprep.subr.mxu0 0.0
        %2596 = vmatpush2.msra.mxu0 %v2452
        %2597 = vmatprep.subr.mxu0 0.0
        %2598 = vmatpush2.msra.mxu0 %v2451
        %2599 = vmatprep.subr.mxu0 0.0
        %2600 = vmatpush2.msra.mxu0 %v2450
        %2601 = vmatprep.subr.mxu0 0.0
        %2602 = vmatpush2.msra.mxu0 %v2449
        %2603 = vmatprep.subr.mxu0 0.0
        %2604 = vmatpush2.msra.mxu0 %v2448
        %2605 = vmatprep.mubr.f32.mxu0 %v2399
        %2606 = vmatmul.mubr.f32.gmra.mxu0 %v2398
        %v2607 = vpop.f32.mrf.mxu0
        %v2608 = vadd.f32 %v2538, %v2607
        %v2609 = vpop.f32.mrf.mxu0
        %2610 = vdwg.mxu0
        %v2611 = vld [vmem:[%s41] sm:$0x1]
        %v2612 = vld [vmem:[%s43] sm:$0x1]
        %vm2613 = vcmask 519168
        %v2614 = vsel %vm2613, %v2608, 0.0
        %v2615 = vrot.slane %v2614, 4
        %v2616 = vadd.f32 %v2614, %v2615
        %v2617 = vrot.slane %v2616, 2
        %v2618 = vadd.f32 %v2616, %v2617
        %v2619 = vrot.slane %v2618, 1
        %v2620 = vadd.f32 %v2618, %v2619
        %v2621 = vmul.f32 %v2620, %v2289
        %v2622 = vsub.f32 %v2608, %v2621
        %v2623 = vmul.f32 %v2622, %v2622
        %v2624 = vsel %vm2613, %v2623, 0.0
        %v2625 = vrot.slane %v2624, 4
        %v2626 = vadd.f32 %v2624, %v2625
        %v2627 = vrot.slane %v2626, 2
        %v2628 = vadd.f32 %v2626, %v2627
        %v2629 = vrot.slane %v2628, 1
        %v2630 = vadd.f32 %v2628, %v2629
        %v2631 = vmul.f32 %v2630, %v2289
        %v2632 = vadd.f32 %v2631, 1e-05
        %v2633 = vrsqrt.pop %v2632
        %v2634 = vmul.f32 %v2622, %v2633
        %v2636 = vlaneseq
        %v2637 = vshrl.u32 %v2636, 7
        %v2638 = vsub.s32 0, %v2637
        %v2639 = vrot.slane %v2611, %v2638
        %v2641 = vmul.f32 %v2634, %v2639
        %v2643 = vlaneseq
        %v2644 = vshrl.u32 %v2643, 7
        %v2645 = vsub.s32 0, %v2644
        %v2646 = vrot.slane %v2612, %v2645
        %v2648 = vadd.f32 %v2641, %v2646
        %v2649 = vmax.f32 %v2648, 0.0
        %vm2650 = vcmask 517120
        %v2651 = vsel %vm2650, %v2649, -inf
        %v2652 = vrot.slane %v2651, 4
        %v2653 = vmax.f32 %v2651, %v2652
        %v2654 = vrot.slane %v2653, 2
        %v2655 = vmax.f32 %v2653, %v2654
        %v2656 = vrot.slane %v2655, 1
        %v2657 = vmax.f32 %v2655, %v2656
        %vm2658 = vcmask 516096
        %2659 = vst.msk [vmem:[#allocation8] sm:$0x1] %vm2658, %v2657
        %vm2660 = vcmask 519170
        %v2661 = vsel %vm2660, %v2649, -inf
        %v2662 = vrot.slane %v2661, 4
        %v2663 = vmax.f32 %v2661, %v2662
        %v2664 = vrot.slane %v2663, 2
        %v2665 = vmax.f32 %v2663, %v2664
        %v2666 = vrot.slane %v2665, 1
        %v2667 = vmax.f32 %v2665, %v2666
        %2668 = vst.msk [vmem:[#allocation8 + $0x1] sm:$0x1] %vm2658, %v2667
        %v2669 = vlaneseq
        %v2670 = vshrl.u32 %v2669, 7
        %v2671 = vsub.s32 2, %v2670
        %v2672 = vrot.slane %v1805, %v2671
        %v2673 = vsub.f32 %v1805, %v2672
        %vm2674 = vcmask 11266
        %2675 = vst.msk [vmem:[#allocation6 - $0x2] sm:$0xc] %vm2674, %v2673
        %vm2676 = vcmask 257026
        %2677 = vst.msk [vmem:[#allocation7 - $0x2] sm:$0xc] %vm2676, %v1717
        %v2678 = vlaneseq
        %v2679 = vshrl.u32 %v2678, 7
        %v2680 = vsub.s32 3, %v2679
        %v2681 = vrot.slane %v1805, %v2680
        %v2682 = vsub.f32 %v1805, %v2681
        %2683 = vst.msk [vmem:[#allocation6] sm:$0xc] %vm2674, %v2682
        %2684 = vst.msk [vmem:[#allocation7] sm:$0xc] %vm2676, %v1717
        %v2685 = vld [vmem:[#allocation6] sm:$0xf]
        %v2686 = vld [vmem:[#allocation7] sm:$0xf]
        %v2687 = vld [vmem:[%s23] sm:$0x3]
        %v2688 = vld [vmem:[%s25] sm:$0x1]
        %v2690 = vlaneseq
        %v2691 = vshrl.u32 %v2690, 7
        %v2692 = vsub.s32 0, %v2691
        %v2693 = vrot.slane %v2688, %v2692
        %v2696 = vsel %vm1832, %v2685, 0
        %v2699 = vsel %vm1836, %v2687, 0
        %2701 = vmatprep.subr.mxu0 0.0
        %2702 = vmatpush1.msra.mxu0 0.0
        %2703 = vmatprep.subr.mxu0 0.0
        %2704 = vmatpush1.msra.mxu0 0.0
        %2705 = vmatprep.subr.mxu0 0.0
        %2706 = vmatpush1.msra.mxu0 0.0
        %2707 = vmatprep.subr.mxu0 0.0
        %2708 = vmatpush1.msra.mxu0 0.0
        %2709 = vmatprep.subr.mxu0 0.0
        %2710 = vmatpush1.msra.mxu0 0.0
        %2711 = vmatprep.subr.mxu0 0.0
        %2712 = vmatpush1.msra.mxu0 0.0
        %2713 = vmatprep.subr.mxu0 0.0
        %2714 = vmatpush1.msra.mxu0 0.0
        %2715 = vmatprep.subr.mxu0 0.0
        %2716 = vmatpush1.msra.mxu0 0.0
        %2717 = vmatprep.subr.mxu0 0.0
        %2718 = vmatpush1.msra.mxu0 0.0
        %2719 = vmatprep.subr.mxu0 0.0
        %2720 = vmatpush1.msra.mxu0 0.0
        %2721 = vmatprep.subr.mxu0 0.0
        %2722 = vmatpush1.msra.mxu0 0.0
        %2723 = vmatprep.subr.mxu0 0.0
        %2724 = vmatpush1.msra.mxu0 0.0
        %2725 = vmatprep.subr.mxu0 0.0
        %2726 = vmatpush1.msra.mxu0 0.0
        %2727 = vmatprep.subr.mxu0 0.0
        %2728 = vmatpush1.msra.mxu0 0.0
        %2729 = vmatprep.subr.mxu0 0.0
        %2730 = vmatpush1.msra.mxu0 0.0
        %2731 = vmatprep.subr.mxu0 0.0
        %2732 = vmatpush1.msra.mxu0 %v2699
        %2733 = vmatprep.subr.mxu0 0.0
        %2734 = vmatpush2.msra.mxu0 0.0
        %2735 = vmatprep.subr.mxu0 0.0
        %2736 = vmatpush2.msra.mxu0 0.0
        %2737 = vmatprep.subr.mxu0 0.0
        %2738 = vmatpush2.msra.mxu0 0.0
        %2739 = vmatprep.subr.mxu0 0.0
        %2740 = vmatpush2.msra.mxu0 0.0
        %2741 = vmatprep.subr.mxu0 0.0
        %2742 = vmatpush2.msra.mxu0 0.0
        %2743 = vmatprep.subr.mxu0 0.0
        %2744 = vmatpush2.msra.mxu0 0.0
        %2745 = vmatprep.subr.mxu0 0.0
        %2746 = vmatpush2.msra.mxu0 0.0
        %2747 = vmatprep.subr.mxu0 0.0
        %2748 = vmatpush2.msra.mxu0 0.0
        %2749 = vmatprep.subr.mxu0 0.0
        %2750 = vmatpush2.msra.mxu0 0.0
        %2751 = vmatprep.subr.mxu0 0.0
        %2752 = vmatpush2.msra.mxu0 0.0
        %2753 = vmatprep.subr.mxu0 0.0
        %2754 = vmatpush2.msra.mxu0 0.0
        %2755 = vmatprep.subr.mxu0 0.0
        %2756 = vmatpush2.msra.mxu0 0.0
        %2757 = vmatprep.subr.mxu0 0.0
        %2758 = vmatpush2.msra.mxu0 0.0
        %2759 = vmatprep.subr.mxu0 0.0
        %2760 = vmatpush2.msra.mxu0 0.0
        %2761 = vmatprep.subr.mxu0 0.0
        %2762 = vmatpush2.msra.mxu0 0.0
        %2763 = vmatprep.subr.mxu0 0.0
        %2764 = vmatpush2.msra.mxu0 0.0
        %2765 = vmatprep.mubr.f32.mxu0 0.0
        %2766 = vmatmul.mubr.f32.gmra.mxu0 %v2696
        %v2767 = vpop.f32.mrf.mxu0
        %v2768 = vadd.f32 %v2693, %v2767
        %v2769 = vpop.f32.mrf.mxu0
        %2770 = vdwg.mxu0
        %v2771 = vld [vmem:[%s27] sm:$0xff]
        %v2772 = vld [vmem:[%s27 + $0x8] sm:$0xff]
        %v2773 = vld [vmem:[%s27 + $0x10] sm:$0xff]
        %v2774 = vld [vmem:[%s27 + $0x18] sm:$0xff]
        %v2775 = vld [vmem:[%s27 + $0x20] sm:$0xff]
        %v2776 = vld [vmem:[%s27 + $0x28] sm:$0xff]
        %v2777 = vld [vmem:[%s27 + $0x30] sm:$0xff]
        %v2778 = vld [vmem:[%s27 + $0x38] sm:$0xff]
        %v2779 = vld [vmem:[%s27 + $0x40] sm:$0xff]
        %v2780 = vld [vmem:[%s27 + $0x48] sm:$0xff]
        %v2781 = vld [vmem:[%s27 + $0x50] sm:$0xff]
        %v2782 = vld [vmem:[%s27 + $0x58] sm:$0xff]
        %v2783 = vld [vmem:[%s27 + $0x60] sm:$0xff]
        %v2784 = vld [vmem:[%s27 + $0x68] sm:$0xff]
        %v2785 = vld [vmem:[%s27 + $0x70] sm:$0xff]
        %v2786 = vld [vmem:[%s27 + $0x78] sm:$0xff]
        %v2787 = vld [vmem:[%s29] sm:$0xff]
        %v2788 = vld [vmem:[%s29 + $0x8] sm:$0xff]
        %v2789 = vld [vmem:[%s29 + $0x10] sm:$0xff]
        %v2790 = vld [vmem:[%s29 + $0x18] sm:$0xff]
        %v2791 = vld [vmem:[%s29 + $0x20] sm:$0xff]
        %v2792 = vld [vmem:[%s29 + $0x28] sm:$0xff]
        %v2793 = vld [vmem:[%s29 + $0x30] sm:$0xff]
        %v2794 = vld [vmem:[%s29 + $0x38] sm:$0xff]
        %v2795 = vld [vmem:[%s29 + $0x40] sm:$0xff]
        %v2796 = vld [vmem:[%s29 + $0x48] sm:$0xff]
        %v2797 = vld [vmem:[%s29 + $0x50] sm:$0xff]
        %v2798 = vld [vmem:[%s29 + $0x58] sm:$0xff]
        %v2799 = vld [vmem:[%s29 + $0x60] sm:$0xff]
        %v2800 = vld [vmem:[%s29 + $0x68] sm:$0xff]
        %v2801 = vld [vmem:[%s29 + $0x70] sm:$0xff]
        %v2802 = vld [vmem:[%s29 + $0x78] sm:$0xff]
        %v2804 = vsel %vm1062, %v2686, 0
        %2806 = vmatprep.subr.mxu0 0.0
        %2807 = vmatpush1.msra.mxu0 0.0
        %2808 = vmatprep.subr.mxu0 0.0
        %2809 = vmatpush1.msra.mxu0 0.0
        %2810 = vmatprep.subr.mxu0 0.0
        %2811 = vmatpush1.msra.mxu0 0.0
        %2812 = vmatprep.subr.mxu0 0.0
        %2813 = vmatpush1.msra.mxu0 0.0
        %2814 = vmatprep.subr.mxu0 0.0
        %2815 = vmatpush1.msra.mxu0 0.0
        %2816 = vmatprep.subr.mxu0 0.0
        %2817 = vmatpush1.msra.mxu0 0.0
        %2818 = vmatprep.subr.mxu0 0.0
        %2819 = vmatpush1.msra.mxu0 0.0
        %2820 = vmatprep.subr.mxu0 0.0
        %2821 = vmatpush1.msra.mxu0 0.0
        %2822 = vmatprep.subr.mxu0 0.0
        %2823 = vmatpush1.msra.mxu0 0.0
        %2824 = vmatprep.subr.mxu0 0.0
        %2825 = vmatpush1.msra.mxu0 0.0
        %2826 = vmatprep.subr.mxu0 0.0
        %2827 = vmatpush1.msra.mxu0 0.0
        %2828 = vmatprep.subr.mxu0 0.0
        %2829 = vmatpush1.msra.mxu0 0.0
        %2830 = vmatprep.subr.mxu0 %v2800
        %2831 = vmatpush1.msra.mxu0 %v2799
        %2832 = vmatprep.subr.mxu0 %v2796
        %2833 = vmatpush1.msra.mxu0 %v2795
        %2834 = vmatprep.subr.mxu0 %v2792
        %2835 = vmatpush1.msra.mxu0 %v2791
        %2836 = vmatprep.subr.mxu0 %v2788
        %2837 = vmatpush1.msra.mxu0 %v2787
        %2838 = vmatprep.subr.mxu0 0.0
        %2839 = vmatpush2.msra.mxu0 0.0
        %2840 = vmatprep.subr.mxu0 0.0
        %2841 = vmatpush2.msra.mxu0 0.0
        %2842 = vmatprep.subr.mxu0 0.0
        %2843 = vmatpush2.msra.mxu0 0.0
        %2844 = vmatprep.subr.mxu0 0.0
        %2845 = vmatpush2.msra.mxu0 0.0
        %2846 = vmatprep.subr.mxu0 0.0
        %2847 = vmatpush2.msra.mxu0 0.0
        %2848 = vmatprep.subr.mxu0 0.0
        %2849 = vmatpush2.msra.mxu0 0.0
        %2850 = vmatprep.subr.mxu0 0.0
        %2851 = vmatpush2.msra.mxu0 0.0
        %2852 = vmatprep.subr.mxu0 0.0
        %2853 = vmatpush2.msra.mxu0 0.0
        %2854 = vmatprep.subr.mxu0 0.0
        %2855 = vmatpush2.msra.mxu0 0.0
        %2856 = vmatprep.subr.mxu0 0.0
        %2857 = vmatpush2.msra.mxu0 0.0
        %2858 = vmatprep.subr.mxu0 0.0
        %2859 = vmatpush2.msra.mxu0 0.0
        %2860 = vmatprep.subr.mxu0 0.0
        %2861 = vmatpush2.msra.mxu0 0.0
        %2862 = vmatprep.subr.mxu0 0.0
        %2863 = vmatpush2.msra.mxu0 0.0
        %2864 = vmatprep.subr.mxu0 0.0
        %2865 = vmatpush2.msra.mxu0 0.0
        %2866 = vmatprep.subr.mxu0 0.0
        %2867 = vmatpush2.msra.mxu0 0.0
        %2868 = vmatprep.subr.mxu0 0.0
        %2869 = vmatpush2.msra.mxu0 0.0
        %2870 = vmatprep.mubr.f32.mxu0 0.0
        %2871 = vmatmul.mubr.f32.gmra.mxu0 %v2804
        %v2872 = vpop.f32.mrf.mxu0
        %v2873 = vadd.f32 0.0, %v2872
        %v2874 = vpop.f32.mrf.mxu0
        %v2875 = vadd.f32 0.0, %v2874
        %2876 = vdwg.mxu0
        %2877 = vmatprep.subr.mxu0 0.0
        %2878 = vmatpush1.msra.mxu0 0.0
        %2879 = vmatprep.subr.mxu0 0.0
        %2880 = vmatpush1.msra.mxu0 0.0
        %2881 = vmatprep.subr.mxu0 0.0
        %2882 = vmatpush1.msra.mxu0 0.0
        %2883 = vmatprep.subr.mxu0 0.0
        %2884 = vmatpush1.msra.mxu0 0.0
        %2885 = vmatprep.subr.mxu0 0.0
        %2886 = vmatpush1.msra.mxu0 0.0
        %2887 = vmatprep.subr.mxu0 0.0
        %2888 = vmatpush1.msra.mxu0 0.0
        %2889 = vmatprep.subr.mxu0 0.0
        %2890 = vmatpush1.msra.mxu0 0.0
        %2891 = vmatprep.subr.mxu0 0.0
        %2892 = vmatpush1.msra.mxu0 0.0
        %2893 = vmatprep.subr.mxu0 0.0
        %2894 = vmatpush1.msra.mxu0 0.0
        %2895 = vmatprep.subr.mxu0 0.0
        %2896 = vmatpush1.msra.mxu0 0.0
        %2897 = vmatprep.subr.mxu0 0.0
        %2898 = vmatpush1.msra.mxu0 0.0
        %2899 = vmatprep.subr.mxu0 0.0
        %2900 = vmatpush1.msra.mxu0 0.0
        %2901 = vmatprep.subr.mxu0 %v2802
        %2902 = vmatpush1.msra.mxu0 %v2801
        %2903 = vmatprep.subr.mxu0 %v2798
        %2904 = vmatpush1.msra.mxu0 %v2797
        %2905 = vmatprep.subr.mxu0 %v2794
        %2906 = vmatpush1.msra.mxu0 %v2793
        %2907 = vmatprep.subr.mxu0 %v2790
        %2908 = vmatpush1.msra.mxu0 %v2789
        %2909 = vmatprep.subr.mxu0 0.0
        %2910 = vmatpush2.msra.mxu0 0.0
        %2911 = vmatprep.subr.mxu0 0.0
        %2912 = vmatpush2.msra.mxu0 0.0
        %2913 = vmatprep.subr.mxu0 0.0
        %2914 = vmatpush2.msra.mxu0 0.0
        %2915 = vmatprep.subr.mxu0 0.0
        %2916 = vmatpush2.msra.mxu0 0.0
        %2917 = vmatprep.subr.mxu0 0.0
        %2918 = vmatpush2.msra.mxu0 0.0
        %2919 = vmatprep.subr.mxu0 0.0
        %2920 = vmatpush2.msra.mxu0 0.0
        %2921 = vmatprep.subr.mxu0 0.0
        %2922 = vmatpush2.msra.mxu0 0.0
        %2923 = vmatprep.subr.mxu0 0.0
        %2924 = vmatpush2.msra.mxu0 0.0
        %2925 = vmatprep.subr.mxu0 0.0
        %2926 = vmatpush2.msra.mxu0 0.0
        %2927 = vmatprep.subr.mxu0 0.0
        %2928 = vmatpush2.msra.mxu0 0.0
        %2929 = vmatprep.subr.mxu0 0.0
        %2930 = vmatpush2.msra.mxu0 0.0
        %2931 = vmatprep.subr.mxu0 0.0
        %2932 = vmatpush2.msra.mxu0 0.0
        %2933 = vmatprep.subr.mxu0 0.0
        %2934 = vmatpush2.msra.mxu0 0.0
        %2935 = vmatprep.subr.mxu0 0.0
        %2936 = vmatpush2.msra.mxu0 0.0
        %2937 = vmatprep.subr.mxu0 0.0
        %2938 = vmatpush2.msra.mxu0 0.0
        %2939 = vmatprep.subr.mxu0 0.0
        %2940 = vmatpush2.msra.mxu0 0.0
        %2941 = vmatprep.mubr.f32.mxu0 0.0
        %2942 = vmatmul.mubr.f32.gmra.mxu0 %v2804
        %v2943 = vpop.f32.mrf.mxu0
        %v2944 = vadd.f32 0.0, %v2943
        %v2945 = vpop.f32.mrf.mxu0
        %v2946 = vadd.f32 0.0, %v2945
        %2947 = vdwg.mxu0
        %v2949 = vsel %vm1062, %v2768, 0
        %2951 = vmatprep.subr.mxu0 0.0
        %2952 = vmatpush1.msra.mxu0 0.0
        %2953 = vmatprep.subr.mxu0 0.0
        %2954 = vmatpush1.msra.mxu0 0.0
        %2955 = vmatprep.subr.mxu0 0.0
        %2956 = vmatpush1.msra.mxu0 0.0
        %2957 = vmatprep.subr.mxu0 0.0
        %2958 = vmatpush1.msra.mxu0 0.0
        %2959 = vmatprep.subr.mxu0 0.0
        %2960 = vmatpush1.msra.mxu0 0.0
        %2961 = vmatprep.subr.mxu0 0.0
        %2962 = vmatpush1.msra.mxu0 0.0
        %2963 = vmatprep.subr.mxu0 0.0
        %2964 = vmatpush1.msra.mxu0 0.0
        %2965 = vmatprep.subr.mxu0 0.0
        %2966 = vmatpush1.msra.mxu0 0.0
        %2967 = vmatprep.subr.mxu0 0.0
        %2968 = vmatpush1.msra.mxu0 0.0
        %2969 = vmatprep.subr.mxu0 0.0
        %2970 = vmatpush1.msra.mxu0 0.0
        %2971 = vmatprep.subr.mxu0 0.0
        %2972 = vmatpush1.msra.mxu0 0.0
        %2973 = vmatprep.subr.mxu0 0.0
        %2974 = vmatpush1.msra.mxu0 0.0
        %2975 = vmatprep.subr.mxu0 %v2784
        %2976 = vmatpush1.msra.mxu0 %v2783
        %2977 = vmatprep.subr.mxu0 %v2780
        %2978 = vmatpush1.msra.mxu0 %v2779
        %2979 = vmatprep.subr.mxu0 %v2776
        %2980 = vmatpush1.msra.mxu0 %v2775
        %2981 = vmatprep.subr.mxu0 %v2772
        %2982 = vmatpush1.msra.mxu0 %v2771
        %2983 = vmatprep.subr.mxu0 0.0
        %2984 = vmatpush2.msra.mxu0 0.0
        %2985 = vmatprep.subr.mxu0 0.0
        %2986 = vmatpush2.msra.mxu0 0.0
        %2987 = vmatprep.subr.mxu0 0.0
        %2988 = vmatpush2.msra.mxu0 0.0
        %2989 = vmatprep.subr.mxu0 0.0
        %2990 = vmatpush2.msra.mxu0 0.0
        %2991 = vmatprep.subr.mxu0 0.0
        %2992 = vmatpush2.msra.mxu0 0.0
        %2993 = vmatprep.subr.mxu0 0.0
        %2994 = vmatpush2.msra.mxu0 0.0
        %2995 = vmatprep.subr.mxu0 0.0
        %2996 = vmatpush2.msra.mxu0 0.0
        %2997 = vmatprep.subr.mxu0 0.0
        %2998 = vmatpush2.msra.mxu0 0.0
        %2999 = vmatprep.subr.mxu0 0.0
        %3000 = vmatpush2.msra.mxu0 0.0
        %3001 = vmatprep.subr.mxu0 0.0
        %3002 = vmatpush2.msra.mxu0 0.0
        %3003 = vmatprep.subr.mxu0 0.0
        %3004 = vmatpush2.msra.mxu0 0.0
        %3005 = vmatprep.subr.mxu0 0.0
        %3006 = vmatpush2.msra.mxu0 0.0
        %3007 = vmatprep.subr.mxu0 0.0
        %3008 = vmatpush2.msra.mxu0 0.0
        %3009 = vmatprep.subr.mxu0 0.0
        %3010 = vmatpush2.msra.mxu0 0.0
        %3011 = vmatprep.subr.mxu0 0.0
        %3012 = vmatpush2.msra.mxu0 0.0
        %3013 = vmatprep.subr.mxu0 0.0
        %3014 = vmatpush2.msra.mxu0 0.0
        %3015 = vmatprep.mubr.f32.mxu0 0.0
        %3016 = vmatmul.mubr.f32.gmra.mxu0 %v2949
        %v3017 = vpop.f32.mrf.mxu0
        %v3018 = vadd.f32 %v2873, %v3017
        %v3019 = vpop.f32.mrf.mxu0
        %v3020 = vadd.f32 %v2875, %v3019
        %3021 = vdwg.mxu0
        %3022 = vmatprep.subr.mxu0 0.0
        %3023 = vmatpush1.msra.mxu0 0.0
        %3024 = vmatprep.subr.mxu0 0.0
        %3025 = vmatpush1.msra.mxu0 0.0
        %3026 = vmatprep.subr.mxu0 0.0
        %3027 = vmatpush1.msra.mxu0 0.0
        %3028 = vmatprep.subr.mxu0 0.0
        %3029 = vmatpush1.msra.mxu0 0.0
        %3030 = vmatprep.subr.mxu0 0.0
        %3031 = vmatpush1.msra.mxu0 0.0
        %3032 = vmatprep.subr.mxu0 0.0
        %3033 = vmatpush1.msra.mxu0 0.0
        %3034 = vmatprep.subr.mxu0 0.0
        %3035 = vmatpush1.msra.mxu0 0.0
        %3036 = vmatprep.subr.mxu0 0.0
        %3037 = vmatpush1.msra.mxu0 0.0
        %3038 = vmatprep.subr.mxu0 0.0
        %3039 = vmatpush1.msra.mxu0 0.0
        %3040 = vmatprep.subr.mxu0 0.0
        %3041 = vmatpush1.msra.mxu0 0.0
        %3042 = vmatprep.subr.mxu0 0.0
        %3043 = vmatpush1.msra.mxu0 0.0
        %3044 = vmatprep.subr.mxu0 0.0
        %3045 = vmatpush1.msra.mxu0 0.0
        %3046 = vmatprep.subr.mxu0 %v2786
        %3047 = vmatpush1.msra.mxu0 %v2785
        %3048 = vmatprep.subr.mxu0 %v2782
        %3049 = vmatpush1.msra.mxu0 %v2781
        %3050 = vmatprep.subr.mxu0 %v2778
        %3051 = vmatpush1.msra.mxu0 %v2777
        %3052 = vmatprep.subr.mxu0 %v2774
        %3053 = vmatpush1.msra.mxu0 %v2773
        %3054 = vmatprep.subr.mxu0 0.0
        %3055 = vmatpush2.msra.mxu0 0.0
        %3056 = vmatprep.subr.mxu0 0.0
        %3057 = vmatpush2.msra.mxu0 0.0
        %3058 = vmatprep.subr.mxu0 0.0
        %3059 = vmatpush2.msra.mxu0 0.0
        %3060 = vmatprep.subr.mxu0 0.0
        %3061 = vmatpush2.msra.mxu0 0.0
        %3062 = vmatprep.subr.mxu0 0.0
        %3063 = vmatpush2.msra.mxu0 0.0
        %3064 = vmatprep.subr.mxu0 0.0
        %3065 = vmatpush2.msra.mxu0 0.0
        %3066 = vmatprep.subr.mxu0 0.0
        %3067 = vmatpush2.msra.mxu0 0.0
        %3068 = vmatprep.subr.mxu0 0.0
        %3069 = vmatpush2.msra.mxu0 0.0
        %3070 = vmatprep.subr.mxu0 0.0
        %3071 = vmatpush2.msra.mxu0 0.0
        %3072 = vmatprep.subr.mxu0 0.0
        %3073 = vmatpush2.msra.mxu0 0.0
        %3074 = vmatprep.subr.mxu0 0.0
        %3075 = vmatpush2.msra.mxu0 0.0
        %3076 = vmatprep.subr.mxu0 0.0
        %3077 = vmatpush2.msra.mxu0 0.0
        %3078 = vmatprep.subr.mxu0 0.0
        %3079 = vmatpush2.msra.mxu0 0.0
        %3080 = vmatprep.subr.mxu0 0.0
        %3081 = vmatpush2.msra.mxu0 0.0
        %3082 = vmatprep.subr.mxu0 0.0
        %3083 = vmatpush2.msra.mxu0 0.0
        %3084 = vmatprep.subr.mxu0 0.0
        %3085 = vmatpush2.msra.mxu0 0.0
        %3086 = vmatprep.mubr.f32.mxu0 0.0
        %3087 = vmatmul.mubr.f32.gmra.mxu0 %v2949
        %v3088 = vpop.f32.mrf.mxu0
        %v3089 = vadd.f32 %v2944, %v3088
        %v3090 = vpop.f32.mrf.mxu0
        %v3091 = vadd.f32 %v2946, %v3090
        %3092 = vdwg.mxu0
        %v3093 = vld [vmem:[%s31] sm:$0xf]
        %v3095 = vlaneseq
        %v3096 = vshrl.u32 %v3095, 7
        %v3097 = vsub.s32 0, %v3096
        %v3098 = vrot.slane %v3093, %v3097
        %v3099 = vlaneseq
        %v3100 = vshrl.u32 %v3099, 7
        %v3101 = vsub.s32 1, %v3100
        %v3102 = vrot.slane %v3093, %v3101
        %v3103 = vlaneseq
        %v3104 = vshrl.u32 %v3103, 7
        %v3105 = vsub.s32 2, %v3104
        %v3106 = vrot.slane %v3093, %v3105
        %v3107 = vlaneseq
        %v3108 = vshrl.u32 %v3107, 7
        %v3109 = vsub.s32 3, %v3108
        %v3110 = vrot.slane %v3093, %v3109
        %v3115 = vadd.f32 %v3018, %v3098
        %v3116 = vadd.f32 %v3020, %v3102
        %v3117 = vadd.f32 %v3089, %v3106
        %v3118 = vadd.f32 %v3091, %v3110
        %v3119 = vld [vmem:[%s33] sm:$0xf]
        %v3120 = vld [vmem:[%s35] sm:$0xf]
        %v3121 = vsel %vm2260, %v3115, 0.0
        %v3122 = vrot.slane %v3121, 4
        %v3123 = vadd.f32 %v3121, %v3122
        %v3124 = vrot.slane %v3123, 2
        %v3125 = vadd.f32 %v3123, %v3124
        %v3126 = vrot.slane %v3125, 1
        %v3127 = vadd.f32 %v3125, %v3126
        %v3128 = vsel %vm2260, %v3116, 0.0
        %v3129 = vrot.slane %v3128, 4
        %v3130 = vadd.f32 %v3128, %v3129
        %v3131 = vrot.slane %v3130, 2
        %v3132 = vadd.f32 %v3130, %v3131
        %v3133 = vrot.slane %v3132, 1
        %v3134 = vadd.f32 %v3132, %v3133
        %v3135 = vsel %vm2260, %v3117, 0.0
        %v3136 = vrot.slane %v3135, 4
        %v3137 = vadd.f32 %v3135, %v3136
        %v3138 = vrot.slane %v3137, 2
        %v3139 = vadd.f32 %v3137, %v3138
        %v3140 = vrot.slane %v3139, 1
        %v3141 = vadd.f32 %v3139, %v3140
        %v3142 = vsel %vm2260, %v3118, 0.0
        %v3143 = vrot.slane %v3142, 4
        %v3144 = vadd.f32 %v3142, %v3143
        %v3145 = vrot.slane %v3144, 2
        %v3146 = vadd.f32 %v3144, %v3145
        %v3147 = vrot.slane %v3146, 1
        %v3148 = vadd.f32 %v3146, %v3147
        %v3149 = vmul.f32 %v3127, %v2289
        %v3150 = vmul.f32 %v3134, %v2289
        %v3151 = vmul.f32 %v3141, %v2289
        %v3152 = vmul.f32 %v3148, %v2289
        %v3153 = vsub.f32 %v3115, %v3149
        %v3154 = vsub.f32 %v3116, %v3150
        %v3155 = vsub.f32 %v3117, %v3151
        %v3156 = vsub.f32 %v3118, %v3152
        %v3157 = vmul.f32 %v3153, %v3153
        %v3158 = vmul.f32 %v3154, %v3154
        %v3159 = vmul.f32 %v3155, %v3155
        %v3160 = vmul.f32 %v3156, %v3156
        %v3161 = vsel %vm2260, %v3157, 0.0
        %v3162 = vrot.slane %v3161, 4
        %v3163 = vadd.f32 %v3161, %v3162
        %v3164 = vrot.slane %v3163, 2
        %v3165 = vadd.f32 %v3163, %v3164
        %v3166 = vrot.slane %v3165, 1
        %v3167 = vadd.f32 %v3165, %v3166
        %v3168 = vsel %vm2260, %v3158, 0.0
        %v3169 = vrot.slane %v3168, 4
        %v3170 = vadd.f32 %v3168, %v3169
        %v3171 = vrot.slane %v3170, 2
        %v3172 = vadd.f32 %v3170, %v3171
        %v3173 = vrot.slane %v3172, 1
        %v3174 = vadd.f32 %v3172, %v3173
        %v3175 = vsel %vm2260, %v3159, 0.0
        %v3176 = vrot.slane %v3175, 4
        %v3177 = vadd.f32 %v3175, %v3176
        %v3178 = vrot.slane %v3177, 2
        %v3179 = vadd.f32 %v3177, %v3178
        %v3180 = vrot.slane %v3179, 1
        %v3181 = vadd.f32 %v3179, %v3180
        %v3182 = vsel %vm2260, %v3160, 0.0
        %v3183 = vrot.slane %v3182, 4
        %v3184 = vadd.f32 %v3182, %v3183
        %v3185 = vrot.slane %v3184, 2
        %v3186 = vadd.f32 %v3184, %v3185
        %v3187 = vrot.slane %v3186, 1
        %v3188 = vadd.f32 %v3186, %v3187
        %v3189 = vmul.f32 %v3167, %v2289
        %v3190 = vmul.f32 %v3174, %v2289
        %v3191 = vmul.f32 %v3181, %v2289
        %v3192 = vmul.f32 %v3188, %v2289
        %v3193 = vadd.f32 %v3189, 1e-05
        %v3194 = vadd.f32 %v3190, 1e-05
        %v3195 = vadd.f32 %v3191, 1e-05
        %v3196 = vadd.f32 %v3192, 1e-05
        %v3197 = vrsqrt.pop %v3193
        %v3198 = vrsqrt.pop %v3194
        %v3199 = vrsqrt.pop %v3195
        %v3200 = vrsqrt.pop %v3196
        %v3201 = vmul.f32 %v3153, %v3197
        %v3202 = vmul.f32 %v3154, %v3198
        %v3203 = vmul.f32 %v3155, %v3199
        %v3204 = vmul.f32 %v3156, %v3200
        %v3206 = vlaneseq
        %v3207 = vshrl.u32 %v3206, 7
        %v3208 = vsub.s32 0, %v3207
        %v3209 = vrot.slane %v3119, %v3208
        %v3210 = vlaneseq
        %v3211 = vshrl.u32 %v3210, 7
        %v3212 = vsub.s32 1, %v3211
        %v3213 = vrot.slane %v3119, %v3212
        %v3214 = vlaneseq
        %v3215 = vshrl.u32 %v3214, 7
        %v3216 = vsub.s32 2, %v3215
        %v3217 = vrot.slane %v3119, %v3216
        %v3218 = vlaneseq
        %v3219 = vshrl.u32 %v3218, 7
        %v3220 = vsub.s32 3, %v3219
        %v3221 = vrot.slane %v3119, %v3220
        %v3226 = vmul.f32 %v3201, %v3209
        %v3227 = vmul.f32 %v3202, %v3213
        %v3228 = vmul.f32 %v3203, %v3217
        %v3229 = vmul.f32 %v3204, %v3221
        %v3231 = vlaneseq
        %v3232 = vshrl.u32 %v3231, 7
        %v3233 = vsub.s32 0, %v3232
        %v3234 = vrot.slane %v3120, %v3233
        %v3235 = vlaneseq
        %v3236 = vshrl.u32 %v3235, 7
        %v3237 = vsub.s32 1, %v3236
        %v3238 = vrot.slane %v3120, %v3237
        %v3239 = vlaneseq
        %v3240 = vshrl.u32 %v3239, 7
        %v3241 = vsub.s32 2, %v3240
        %v3242 = vrot.slane %v3120, %v3241
        %v3243 = vlaneseq
        %v3244 = vshrl.u32 %v3243, 7
        %v3245 = vsub.s32 3, %v3244
        %v3246 = vrot.slane %v3120, %v3245
        %v3251 = vadd.f32 %v3226, %v3234
        %v3252 = vadd.f32 %v3227, %v3238
        %v3253 = vadd.f32 %v3228, %v3242
        %v3254 = vadd.f32 %v3229, %v3246
        %v3255 = vmax.f32 %v3251, 0.0
        %v3256 = vmax.f32 %v3252, 0.0
        %v3257 = vmax.f32 %v3253, 0.0
        %v3258 = vmax.f32 %v3254, 0.0
        %v3259 = vld [vmem:[%s37] sm:$0xff]
        %v3260 = vld [vmem:[%s37 + $0x8] sm:$0xff]
        %v3261 = vld [vmem:[%s37 + $0x10] sm:$0xff]
        %v3262 = vld [vmem:[%s37 + $0x18] sm:$0xff]
        %v3263 = vld [vmem:[%s37 + $0x20] sm:$0xff]
        %v3264 = vld [vmem:[%s37 + $0x28] sm:$0xff]
        %v3265 = vld [vmem:[%s37 + $0x30] sm:$0xff]
        %v3266 = vld [vmem:[%s37 + $0x38] sm:$0xff]
        %v3267 = vld [vmem:[%s37 + $0x40] sm:$0xff]
        %v3268 = vld [vmem:[%s37 + $0x48] sm:$0xff]
        %v3269 = vld [vmem:[%s37 + $0x50] sm:$0xff]
        %v3270 = vld [vmem:[%s37 + $0x58] sm:$0xff]
        %v3271 = vld [vmem:[%s37 + $0x60] sm:$0xff]
        %v3272 = vld [vmem:[%s37 + $0x68] sm:$0xff]
        %v3273 = vld [vmem:[%s37 + $0x70] sm:$0xff]
        %v3274 = vld [vmem:[%s37 + $0x78] sm:$0xff]
        %v3275 = vld [vmem:[%s37 + $0x80] sm:$0xff]
        %v3276 = vld [vmem:[%s37 + $0x88] sm:$0xff]
        %v3277 = vld [vmem:[%s37 + $0x90] sm:$0xff]
        %v3278 = vld [vmem:[%s37 + $0x98] sm:$0xff]
        %v3279 = vld [vmem:[%s37 + $0xa0] sm:$0xff]
        %v3280 = vld [vmem:[%s37 + $0xa8] sm:$0xff]
        %v3281 = vld [vmem:[%s37 + $0xb0] sm:$0xff]
        %v3282 = vld [vmem:[%s37 + $0xb8] sm:$0xff]
        %v3283 = vld [vmem:[%s37 + $0xc0] sm:$0xff]
        %v3284 = vld [vmem:[%s37 + $0xc8] sm:$0xff]
        %v3285 = vld [vmem:[%s37 + $0xd0] sm:$0xff]
        %v3286 = vld [vmem:[%s37 + $0xd8] sm:$0xff]
        %v3287 = vld [vmem:[%s37 + $0xe0] sm:$0xff]
        %v3288 = vld [vmem:[%s37 + $0xe8] sm:$0xff]
        %v3289 = vld [vmem:[%s37 + $0xf0] sm:$0xff]
        %v3290 = vld [vmem:[%s37 + $0xf8] sm:$0xff]
        %v3291 = vld [vmem:[%s37 + $0x100] sm:$0xff]
        %v3292 = vld [vmem:[%s37 + $0x108] sm:$0xff]
        %v3293 = vld [vmem:[%s37 + $0x110] sm:$0xff]
        %v3294 = vld [vmem:[%s37 + $0x118] sm:$0xff]
        %v3295 = vld [vmem:[%s37 + $0x120] sm:$0xff]
        %v3296 = vld [vmem:[%s37 + $0x128] sm:$0xff]
        %v3297 = vld [vmem:[%s37 + $0x130] sm:$0xff]
        %v3298 = vld [vmem:[%s37 + $0x138] sm:$0xff]
        %v3299 = vld [vmem:[%s37 + $0x140] sm:$0xff]
        %v3300 = vld [vmem:[%s37 + $0x148] sm:$0xff]
        %v3301 = vld [vmem:[%s37 + $0x150] sm:$0xff]
        %v3302 = vld [vmem:[%s37 + $0x158] sm:$0xff]
        %v3303 = vld [vmem:[%s37 + $0x160] sm:$0xff]
        %v3304 = vld [vmem:[%s37 + $0x168] sm:$0xff]
        %v3305 = vld [vmem:[%s37 + $0x170] sm:$0xff]
        %v3306 = vld [vmem:[%s37 + $0x178] sm:$0xff]
        %v3307 = vld [vmem:[%s37 + $0x180] sm:$0xff]
        %v3308 = vld [vmem:[%s37 + $0x188] sm:$0xff]
        %v3309 = vld [vmem:[%s37 + $0x190] sm:$0xff]
        %v3310 = vld [vmem:[%s37 + $0x198] sm:$0xff]
        %v3311 = vld [vmem:[%s37 + $0x1a0] sm:$0xff]
        %v3312 = vld [vmem:[%s37 + $0x1a8] sm:$0xff]
        %v3313 = vld [vmem:[%s37 + $0x1b0] sm:$0xff]
        %v3314 = vld [vmem:[%s37 + $0x1b8] sm:$0xff]
        %v3315 = vld [vmem:[%s37 + $0x1c0] sm:$0xff]
        %v3316 = vld [vmem:[%s37 + $0x1c8] sm:$0xff]
        %v3317 = vld [vmem:[%s37 + $0x1d0] sm:$0xff]
        %v3318 = vld [vmem:[%s37 + $0x1d8] sm:$0xff]
        %v3319 = vld [vmem:[%s37 + $0x1e0] sm:$0xff]
        %v3320 = vld [vmem:[%s37 + $0x1e8] sm:$0xff]
        %v3321 = vld [vmem:[%s37 + $0x1f0] sm:$0xff]
        %v3322 = vld [vmem:[%s37 + $0x1f8] sm:$0xff]
        %v3323 = vld [vmem:[%s39] sm:$0x1]
        %v3325 = vlaneseq
        %v3326 = vshrl.u32 %v3325, 7
        %v3327 = vsub.s32 0, %v3326
        %v3328 = vrot.slane %v3323, %v3327
        %3330 = vmatprep.subr.mxu0 0.0
        %3331 = vmatpush1.msra.mxu0 %v3274
        %3332 = vmatprep.subr.mxu0 0.0
        %3333 = vmatpush1.msra.mxu0 %v3273
        %3334 = vmatprep.subr.mxu0 0.0
        %3335 = vmatpush1.msra.mxu0 %v3272
        %3336 = vmatprep.subr.mxu0 0.0
        %3337 = vmatpush1.msra.mxu0 %v3271
        %3338 = vmatprep.subr.mxu0 0.0
        %3339 = vmatpush1.msra.mxu0 %v3270
        %3340 = vmatprep.subr.mxu0 0.0
        %3341 = vmatpush1.msra.mxu0 %v3269
        %3342 = vmatprep.subr.mxu0 0.0
        %3343 = vmatpush1.msra.mxu0 %v3268
        %3344 = vmatprep.subr.mxu0 0.0
        %3345 = vmatpush1.msra.mxu0 %v3267
        %3346 = vmatprep.subr.mxu0 0.0
        %3347 = vmatpush1.msra.mxu0 %v3266
        %3348 = vmatprep.subr.mxu0 0.0
        %3349 = vmatpush1.msra.mxu0 %v3265
        %3350 = vmatprep.subr.mxu0 0.0
        %3351 = vmatpush1.msra.mxu0 %v3264
        %3352 = vmatprep.subr.mxu0 0.0
        %3353 = vmatpush1.msra.mxu0 %v3263
        %3354 = vmatprep.subr.mxu0 0.0
        %3355 = vmatpush1.msra.mxu0 %v3262
        %3356 = vmatprep.subr.mxu0 0.0
        %3357 = vmatpush1.msra.mxu0 %v3261
        %3358 = vmatprep.subr.mxu0 0.0
        %3359 = vmatpush1.msra.mxu0 %v3260
        %3360 = vmatprep.subr.mxu0 0.0
        %3361 = vmatpush1.msra.mxu0 %v3259
        %3362 = vmatprep.subr.mxu0 0.0
        %3363 = vmatpush2.msra.mxu0 %v3290
        %3364 = vmatprep.subr.mxu0 0.0
        %3365 = vmatpush2.msra.mxu0 %v3289
        %3366 = vmatprep.subr.mxu0 0.0
        %3367 = vmatpush2.msra.mxu0 %v3288
        %3368 = vmatprep.subr.mxu0 0.0
        %3369 = vmatpush2.msra.mxu0 %v3287
        %3370 = vmatprep.subr.mxu0 0.0
        %3371 = vmatpush2.msra.mxu0 %v3286
        %3372 = vmatprep.subr.mxu0 0.0
        %3373 = vmatpush2.msra.mxu0 %v3285
        %3374 = vmatprep.subr.mxu0 0.0
        %3375 = vmatpush2.msra.mxu0 %v3284
        %3376 = vmatprep.subr.mxu0 0.0
        %3377 = vmatpush2.msra.mxu0 %v3283
        %3378 = vmatprep.subr.mxu0 0.0
        %3379 = vmatpush2.msra.mxu0 %v3282
        %3380 = vmatprep.subr.mxu0 0.0
        %3381 = vmatpush2.msra.mxu0 %v3281
        %3382 = vmatprep.subr.mxu0 0.0
        %3383 = vmatpush2.msra.mxu0 %v3280
        %3384 = vmatprep.subr.mxu0 0.0
        %3385 = vmatpush2.msra.mxu0 %v3279
        %3386 = vmatprep.subr.mxu0 0.0
        %3387 = vmatpush2.msra.mxu0 %v3278
        %3388 = vmatprep.subr.mxu0 0.0
        %3389 = vmatpush2.msra.mxu0 %v3277
        %3390 = vmatprep.subr.mxu0 0.0
        %3391 = vmatpush2.msra.mxu0 %v3276
        %3392 = vmatprep.subr.mxu0 0.0
        %3393 = vmatpush2.msra.mxu0 %v3275
        %3394 = vmatprep.mubr.f32.mxu0 %v3256
        %3395 = vmatmul.mubr.f32.gmra.mxu0 %v3255
        %v3396 = vpop.f32.mrf.mxu0
        %v3397 = vadd.f32 %v3328, %v3396
        %v3398 = vpop.f32.mrf.mxu0
        %3399 = vdwg.mxu0
        %3400 = vmatprep.subr.mxu0 0.0
        %3401 = vmatpush1.msra.mxu0 %v3306
        %3402 = vmatprep.subr.mxu0 0.0
        %3403 = vmatpush1.msra.mxu0 %v3305
        %3404 = vmatprep.subr.mxu0 0.0
        %3405 = vmatpush1.msra.mxu0 %v3304
        %3406 = vmatprep.subr.mxu0 0.0
        %3407 = vmatpush1.msra.mxu0 %v3303
        %3408 = vmatprep.subr.mxu0 0.0
        %3409 = vmatpush1.msra.mxu0 %v3302
        %3410 = vmatprep.subr.mxu0 0.0
        %3411 = vmatpush1.msra.mxu0 %v3301
        %3412 = vmatprep.subr.mxu0 0.0
        %3413 = vmatpush1.msra.mxu0 %v3300
        %3414 = vmatprep.subr.mxu0 0.0
        %3415 = vmatpush1.msra.mxu0 %v3299
        %3416 = vmatprep.subr.mxu0 0.0
        %3417 = vmatpush1.msra.mxu0 %v3298
        %3418 = vmatprep.subr.mxu0 0.0
        %3419 = vmatpush1.msra.mxu0 %v3297
        %3420 = vmatprep.subr.mxu0 0.0
        %3421 = vmatpush1.msra.mxu0 %v3296
        %3422 = vmatprep.subr.mxu0 0.0
        %3423 = vmatpush1.msra.mxu0 %v3295
        %3424 = vmatprep.subr.mxu0 0.0
        %3425 = vmatpush1.msra.mxu0 %v3294
        %3426 = vmatprep.subr.mxu0 0.0
        %3427 = vmatpush1.msra.mxu0 %v3293
        %3428 = vmatprep.subr.mxu0 0.0
        %3429 = vmatpush1.msra.mxu0 %v3292
        %3430 = vmatprep.subr.mxu0 0.0
        %3431 = vmatpush1.msra.mxu0 %v3291
        %3432 = vmatprep.subr.mxu0 0.0
        %3433 = vmatpush2.msra.mxu0 %v3322
        %3434 = vmatprep.subr.mxu0 0.0
        %3435 = vmatpush2.msra.mxu0 %v3321
        %3436 = vmatprep.subr.mxu0 0.0
        %3437 = vmatpush2.msra.mxu0 %v3320
        %3438 = vmatprep.subr.mxu0 0.0
        %3439 = vmatpush2.msra.mxu0 %v3319
        %3440 = vmatprep.subr.mxu0 0.0
        %3441 = vmatpush2.msra.mxu0 %v3318
        %3442 = vmatprep.subr.mxu0 0.0
        %3443 = vmatpush2.msra.mxu0 %v3317
        %3444 = vmatprep.subr.mxu0 0.0
        %3445 = vmatpush2.msra.mxu0 %v3316
        %3446 = vmatprep.subr.mxu0 0.0
        %3447 = vmatpush2.msra.mxu0 %v3315
        %3448 = vmatprep.subr.mxu0 0.0
        %3449 = vmatpush2.msra.mxu0 %v3314
        %3450 = vmatprep.subr.mxu0 0.0
        %3451 = vmatpush2.msra.mxu0 %v3313
        %3452 = vmatprep.subr.mxu0 0.0
        %3453 = vmatpush2.msra.mxu0 %v3312
        %3454 = vmatprep.subr.mxu0 0.0
        %3455 = vmatpush2.msra.mxu0 %v3311
        %3456 = vmatprep.subr.mxu0 0.0
        %3457 = vmatpush2.msra.mxu0 %v3310
        %3458 = vmatprep.subr.mxu0 0.0
        %3459 = vmatpush2.msra.mxu0 %v3309
        %3460 = vmatprep.subr.mxu0 0.0
        %3461 = vmatpush2.msra.mxu0 %v3308
        %3462 = vmatprep.subr.mxu0 0.0
        %3463 = vmatpush2.msra.mxu0 %v3307
        %3464 = vmatprep.mubr.f32.mxu0 %v3258
        %3465 = vmatmul.mubr.f32.gmra.mxu0 %v3257
        %v3466 = vpop.f32.mrf.mxu0
        %v3467 = vadd.f32 %v3397, %v3466
        %v3468 = vpop.f32.mrf.mxu0
        %3469 = vdwg.mxu0
        %v3470 = vld [vmem:[%s41] sm:$0x1]
        %v3471 = vld [vmem:[%s43] sm:$0x1]
        %v3472 = vsel %vm2613, %v3467, 0.0
        %v3473 = vrot.slane %v3472, 4
        %v3474 = vadd.f32 %v3472, %v3473
        %v3475 = vrot.slane %v3474, 2
        %v3476 = vadd.f32 %v3474, %v3475
        %v3477 = vrot.slane %v3476, 1
        %v3478 = vadd.f32 %v3476, %v3477
        %v3479 = vmul.f32 %v3478, %v2289
        %v3480 = vsub.f32 %v3467, %v3479
        %v3481 = vmul.f32 %v3480, %v3480
        %v3482 = vsel %vm2613, %v3481, 0.0
        %v3483 = vrot.slane %v3482, 4
        %v3484 = vadd.f32 %v3482, %v3483
        %v3485 = vrot.slane %v3484, 2
        %v3486 = vadd.f32 %v3484, %v3485
        %v3487 = vrot.slane %v3486, 1
        %v3488 = vadd.f32 %v3486, %v3487
        %v3489 = vmul.f32 %v3488, %v2289
        %v3490 = vadd.f32 %v3489, 1e-05
        %v3491 = vrsqrt.pop %v3490
        %v3492 = vmul.f32 %v3480, %v3491
        %v3494 = vlaneseq
        %v3495 = vshrl.u32 %v3494, 7
        %v3496 = vsub.s32 0, %v3495
        %v3497 = vrot.slane %v3470, %v3496
        %v3499 = vmul.f32 %v3492, %v3497
        %v3501 = vlaneseq
        %v3502 = vshrl.u32 %v3501, 7
        %v3503 = vsub.s32 0, %v3502
        %v3504 = vrot.slane %v3471, %v3503
        %v3506 = vadd.f32 %v3499, %v3504
        %v3507 = vmax.f32 %v3506, 0.0
        %v3508 = vsel %vm2650, %v3507, -inf
        %v3509 = vrot.slane %v3508, 4
        %v3510 = vmax.f32 %v3508, %v3509
        %v3511 = vrot.slane %v3510, 2
        %v3512 = vmax.f32 %v3510, %v3511
        %v3513 = vrot.slane %v3512, 1
        %v3514 = vmax.f32 %v3512, %v3513
        %3515 = vst.msk [vmem:[#allocation8 + $0x2] sm:$0x1] %vm2658, %v3514
        %v3516 = vsel %vm2660, %v3507, -inf
        %v3517 = vrot.slane %v3516, 4
        %v3518 = vmax.f32 %v3516, %v3517
        %v3519 = vrot.slane %v3518, 2
        %v3520 = vmax.f32 %v3518, %v3519
        %v3521 = vrot.slane %v3520, 1
        %v3522 = vmax.f32 %v3520, %v3521
        %3523 = vst.msk [vmem:[#allocation8 + $0x3] sm:$0x1] %vm2658, %v3522
        %v3524 = vld [vmem:[#allocation8] sm:$0xf]
        %v3525 = vld [vmem:[%s45] sm:$0xff]
        %v3526 = vld [vmem:[%s45 + $0x8] sm:$0xff]
        %v3527 = vld [vmem:[%s45 + $0x10] sm:$0xff]
        %v3528 = vld [vmem:[%s45 + $0x18] sm:$0xff]
        %v3529 = vld [vmem:[%s47] sm:$0xff]
        %v3530 = vld [vmem:[%s47 + $0x8] sm:$0xff]
        %v3531 = vld [vmem:[%s47 + $0x10] sm:$0xff]
        %v3532 = vld [vmem:[%s47 + $0x18] sm:$0xff]
        %v3533 = vld [vmem:[%s47 + $0x20] sm:$0xff]
        %v3534 = vld [vmem:[%s47 + $0x28] sm:$0xff]
        %v3535 = vld [vmem:[%s47 + $0x30] sm:$0xff]
        %v3536 = vld [vmem:[%s47 + $0x38] sm:$0xff]
        %vm3537 = vcmask 523264
        %v3539 = vsel %vm3537, %v3524, 0
        %3541 = vmatprep.subr.mxu0 0.0
        %3542 = vmatpush1.msra.mxu0 0.0
        %3543 = vmatprep.subr.mxu0 0.0
        %3544 = vmatpush1.msra.mxu0 0.0
        %3545 = vmatprep.subr.mxu0 0.0
        %3546 = vmatpush1.msra.mxu0 0.0
        %3547 = vmatprep.subr.mxu0 0.0
        %3548 = vmatpush1.msra.mxu0 0.0
        %3549 = vmatprep.subr.mxu0 0.0
        %3550 = vmatpush1.msra.mxu0 0.0
        %3551 = vmatprep.subr.mxu0 0.0
        %3552 = vmatpush1.msra.mxu0 0.0
        %3553 = vmatprep.subr.mxu0 0.0
        %3554 = vmatpush1.msra.mxu0 0.0
        %3555 = vmatprep.subr.mxu0 0.0
        %3556 = vmatpush1.msra.mxu0 0.0
        %3557 = vmatprep.subr.mxu0 0.0
        %3558 = vmatpush1.msra.mxu0 %v3536
        %3559 = vmatprep.subr.mxu0 0.0
        %3560 = vmatpush1.msra.mxu0 %v3535
        %3561 = vmatprep.subr.mxu0 0.0
        %3562 = vmatpush1.msra.mxu0 %v3534
        %3563 = vmatprep.subr.mxu0 0.0
        %3564 = vmatpush1.msra.mxu0 %v3533
        %3565 = vmatprep.subr.mxu0 0.0
        %3566 = vmatpush1.msra.mxu0 %v3532
        %3567 = vmatprep.subr.mxu0 0.0
        %3568 = vmatpush1.msra.mxu0 %v3531
        %3569 = vmatprep.subr.mxu0 0.0
        %3570 = vmatpush1.msra.mxu0 %v3530
        %3571 = vmatprep.subr.mxu0 0.0
        %3572 = vmatpush1.msra.mxu0 %v3529
        %3573 = vmatprep.subr.mxu0 0.0
        %3574 = vmatpush2.msra.mxu0 0.0
        %3575 = vmatprep.subr.mxu0 0.0
        %3576 = vmatpush2.msra.mxu0 0.0
        %3577 = vmatprep.subr.mxu0 0.0
        %3578 = vmatpush2.msra.mxu0 0.0
        %3579 = vmatprep.subr.mxu0 0.0
        %3580 = vmatpush2.msra.mxu0 0.0
        %3581 = vmatprep.subr.mxu0 0.0
        %3582 = vmatpush2.msra.mxu0 0.0
        %3583 = vmatprep.subr.mxu0 0.0
        %3584 = vmatpush2.msra.mxu0 0.0
        %3585 = vmatprep.subr.mxu0 0.0
        %3586 = vmatpush2.msra.mxu0 0.0
        %3587 = vmatprep.subr.mxu0 0.0
        %3588 = vmatpush2.msra.mxu0 0.0
        %3589 = vmatprep.subr.mxu0 0.0
        %3590 = vmatpush2.msra.mxu0 0.0
        %3591 = vmatprep.subr.mxu0 0.0
        %3592 = vmatpush2.msra.mxu0 0.0
        %3593 = vmatprep.subr.mxu0 0.0
        %3594 = vmatpush2.msra.mxu0 0.0
        %3595 = vmatprep.subr.mxu0 0.0
        %3596 = vmatpush2.msra.mxu0 0.0
        %3597 = vmatprep.subr.mxu0 0.0
        %3598 = vmatpush2.msra.mxu0 0.0
        %3599 = vmatprep.subr.mxu0 0.0
        %3600 = vmatpush2.msra.mxu0 0.0
        %3601 = vmatprep.subr.mxu0 0.0
        %3602 = vmatpush2.msra.mxu0 0.0
        %3603 = vmatprep.subr.mxu0 0.0
        %3604 = vmatpush2.msra.mxu0 0.0
        %3605 = vmatprep.mubr.f32.mxu0 0.0
        %3606 = vmatmul.mubr.f32.gmra.mxu0 %v3539
        %v3607 = vpop.f32.mrf.mxu0
        %v3608 = vadd.f32 0.0, %v3607
        %v3609 = vpop.f32.mrf.mxu0
        %3610 = vdwg.mxu0
        %3611 = vmatprep.subr.mxu0 0.0
        %3612 = vmatpush1.msra.mxu0 0.0
        %3613 = vmatprep.subr.mxu0 0.0
        %3614 = vmatpush1.msra.mxu0 0.0
        %3615 = vmatprep.subr.mxu0 0.0
        %3616 = vmatpush1.msra.mxu0 0.0
        %3617 = vmatprep.subr.mxu0 0.0
        %3618 = vmatpush1.msra.mxu0 0.0
        %3619 = vmatprep.subr.mxu0 0.0
        %3620 = vmatpush1.msra.mxu0 0.0
        %3621 = vmatprep.subr.mxu0 0.0
        %3622 = vmatpush1.msra.mxu0 0.0
        %3623 = vmatprep.subr.mxu0 0.0
        %3624 = vmatpush1.msra.mxu0 0.0
        %3625 = vmatprep.subr.mxu0 0.0
        %3626 = vmatpush1.msra.mxu0 0.0
        %3627 = vmatprep.subr.mxu0 0.0
        %3628 = vmatpush1.msra.mxu0 0.0
        %3629 = vmatprep.subr.mxu0 0.0
        %3630 = vmatpush1.msra.mxu0 0.0
        %3631 = vmatprep.subr.mxu0 0.0
        %3632 = vmatpush1.msra.mxu0 0.0
        %3633 = vmatprep.subr.mxu0 0.0
        %3634 = vmatpush1.msra.mxu0 0.0
        %3635 = vmatprep.subr.mxu0 0.0
        %3636 = vmatpush1.msra.mxu0 %v3528
        %3637 = vmatprep.subr.mxu0 0.0
        %3638 = vmatpush1.msra.mxu0 %v3527
        %3639 = vmatprep.subr.mxu0 0.0
        %3640 = vmatpush1.msra.mxu0 %v3526
        %3641 = vmatprep.subr.mxu0 0.0
        %3642 = vmatpush1.msra.mxu0 %v3525
        %3643 = vmatprep.subr.mxu0 0.0
        %3644 = vmatpush2.msra.mxu0 0.0
        %3645 = vmatprep.subr.mxu0 0.0
        %3646 = vmatpush2.msra.mxu0 0.0
        %3647 = vmatprep.subr.mxu0 0.0
        %3648 = vmatpush2.msra.mxu0 0.0
        %3649 = vmatprep.subr.mxu0 0.0
        %3650 = vmatpush2.msra.mxu0 0.0
        %3651 = vmatprep.subr.mxu0 0.0
        %3652 = vmatpush2.msra.mxu0 0.0
        %3653 = vmatprep.subr.mxu0 0.0
        %3654 = vmatpush2.msra.mxu0 0.0
        %3655 = vmatprep.subr.mxu0 0.0
        %3656 = vmatpush2.msra.mxu0 0.0
        %3657 = vmatprep.subr.mxu0 0.0
        %3658 = vmatpush2.msra.mxu0 0.0
        %3659 = vmatprep.subr.mxu0 0.0
        %3660 = vmatpush2.msra.mxu0 0.0
        %3661 = vmatprep.subr.mxu0 0.0
        %3662 = vmatpush2.msra.mxu0 0.0
        %3663 = vmatprep.subr.mxu0 0.0
        %3664 = vmatpush2.msra.mxu0 0.0
        %3665 = vmatprep.subr.mxu0 0.0
        %3666 = vmatpush2.msra.mxu0 0.0
        %3667 = vmatprep.subr.mxu0 0.0
        %3668 = vmatpush2.msra.mxu0 0.0
        %3669 = vmatprep.subr.mxu0 0.0
        %3670 = vmatpush2.msra.mxu0 0.0
        %3671 = vmatprep.subr.mxu0 0.0
        %3672 = vmatpush2.msra.mxu0 0.0
        %3673 = vmatprep.subr.mxu0 0.0
        %3674 = vmatpush2.msra.mxu0 0.0
        %3675 = vmatprep.mubr.f32.mxu0 0.0
        %3676 = vmatmul.mubr.f32.gmra.mxu0 %v1732
        %v3677 = vpop.f32.mrf.mxu0
        %v3678 = vadd.f32 %v3608, %v3677
        %v3679 = vpop.f32.mrf.mxu0
        %3680 = vdwg.mxu0
        %v3681 = vld [vmem:[%s49] sm:$0x1]
        %v3683 = vlaneseq
        %v3684 = vshrl.u32 %v3683, 7
        %v3685 = vsub.s32 0, %v3684
        %v3686 = vrot.slane %v3681, %v3685
        %v3688 = vadd.f32 %v3678, %v3686
        %v3689 = vld [vmem:[%s51] sm:$0x1]
        %v3690 = vld [vmem:[%s53] sm:$0x1]
        %v3691 = vsel %vm2613, %v3688, 0.0
        %v3692 = vrot.slane %v3691, 4
        %v3693 = vadd.f32 %v3691, %v3692
        %v3694 = vrot.slane %v3693, 2
        %v3695 = vadd.f32 %v3693, %v3694
        %v3696 = vrot.slane %v3695, 1
        %v3697 = vadd.f32 %v3695, %v3696
        %v3698 = vmul.f32 %v3697, %v2289
        %v3699 = vsub.f32 %v3688, %v3698
        %v3700 = vmul.f32 %v3699, %v3699
        %v3701 = vsel %vm2613, %v3700, 0.0
        %v3702 = vrot.slane %v3701, 4
        %v3703 = vadd.f32 %v3701, %v3702
        %v3704 = vrot.slane %v3703, 2
        %v3705 = vadd.f32 %v3703, %v3704
        %v3706 = vrot.slane %v3705, 1
        %v3707 = vadd.f32 %v3705, %v3706
        %v3708 = vmul.f32 %v3707, %v2289
        %v3709 = vadd.f32 %v3708, 1e-05
        %v3710 = vrsqrt.pop %v3709
        %v3711 = vmul.f32 %v3699, %v3710
        %v3713 = vlaneseq
        %v3714 = vshrl.u32 %v3713, 7
        %v3715 = vsub.s32 0, %v3714
        %v3716 = vrot.slane %v3689, %v3715
        %v3718 = vmul.f32 %v3711, %v3716
        %v3720 = vlaneseq
        %v3721 = vshrl.u32 %v3720, 7
        %v3722 = vsub.s32 0, %v3721
        %v3723 = vrot.slane %v3690, %v3722
        %v3725 = vadd.f32 %v3718, %v3723
        %v3726 = vmax.f32 %v3725, 0.0
        %v3727 = vld [vmem:[%s55] sm:$0xff]
        %v3728 = vld [vmem:[%s55 + $0x8] sm:$0xff]
        %v3729 = vld [vmem:[%s55 + $0x10] sm:$0xff]
        %v3730 = vld [vmem:[%s55 + $0x18] sm:$0xff]
        %v3731 = vld [vmem:[%s55 + $0x20] sm:$0xff]
        %v3732 = vld [vmem:[%s55 + $0x28] sm:$0xff]
        %v3733 = vld [vmem:[%s55 + $0x30] sm:$0xff]
        %v3734 = vld [vmem:[%s55 + $0x38] sm:$0xff]
        %v3735 = vld [vmem:[%s57] sm:$0x1]
        %v3737 = vlaneseq
        %v3738 = vshrl.u32 %v3737, 7
        %v3739 = vsub.s32 0, %v3738
        %v3740 = vrot.slane %v3735, %v3739
        %v3743 = vsel %vm3537, %v3726, 0
        %3745 = vmatprep.subr.mxu0 0.0
        %3746 = vmatpush1.msra.mxu0 0.0
        %3747 = vmatprep.subr.mxu0 0.0
        %3748 = vmatpush1.msra.mxu0 0.0
        %3749 = vmatprep.subr.mxu0 0.0
        %3750 = vmatpush1.msra.mxu0 0.0
        %3751 = vmatprep.subr.mxu0 0.0
        %3752 = vmatpush1.msra.mxu0 0.0
        %3753 = vmatprep.subr.mxu0 0.0
        %3754 = vmatpush1.msra.mxu0 0.0
        %3755 = vmatprep.subr.mxu0 0.0
        %3756 = vmatpush1.msra.mxu0 0.0
        %3757 = vmatprep.subr.mxu0 0.0
        %3758 = vmatpush1.msra.mxu0 0.0
        %3759 = vmatprep.subr.mxu0 0.0
        %3760 = vmatpush1.msra.mxu0 0.0
        %3761 = vmatprep.subr.mxu0 0.0
        %3762 = vmatpush1.msra.mxu0 %v3734
        %3763 = vmatprep.subr.mxu0 0.0
        %3764 = vmatpush1.msra.mxu0 %v3733
        %3765 = vmatprep.subr.mxu0 0.0
        %3766 = vmatpush1.msra.mxu0 %v3732
        %3767 = vmatprep.subr.mxu0 0.0
        %3768 = vmatpush1.msra.mxu0 %v3731
        %3769 = vmatprep.subr.mxu0 0.0
        %3770 = vmatpush1.msra.mxu0 %v3730
        %3771 = vmatprep.subr.mxu0 0.0
        %3772 = vmatpush1.msra.mxu0 %v3729
        %3773 = vmatprep.subr.mxu0 0.0
        %3774 = vmatpush1.msra.mxu0 %v3728
        %3775 = vmatprep.subr.mxu0 0.0
        %3776 = vmatpush1.msra.mxu0 %v3727
        %3777 = vmatprep.subr.mxu0 0.0
        %3778 = vmatpush2.msra.mxu0 0.0
        %3779 = vmatprep.subr.mxu0 0.0
        %3780 = vmatpush2.msra.mxu0 0.0
        %3781 = vmatprep.subr.mxu0 0.0
        %3782 = vmatpush2.msra.mxu0 0.0
        %3783 = vmatprep.subr.mxu0 0.0
        %3784 = vmatpush2.msra.mxu0 0.0
        %3785 = vmatprep.subr.mxu0 0.0
        %3786 = vmatpush2.msra.mxu0 0.0
        %3787 = vmatprep.subr.mxu0 0.0
        %3788 = vmatpush2.msra.mxu0 0.0
        %3789 = vmatprep.subr.mxu0 0.0
        %3790 = vmatpush2.msra.mxu0 0.0
        %3791 = vmatprep.subr.mxu0 0.0
        %3792 = vmatpush2.msra.mxu0 0.0
        %3793 = vmatprep.subr.mxu0 0.0
        %3794 = vmatpush2.msra.mxu0 0.0
        %3795 = vmatprep.subr.mxu0 0.0
        %3796 = vmatpush2.msra.mxu0 0.0
        %3797 = vmatprep.subr.mxu0 0.0
        %3798 = vmatpush2.msra.mxu0 0.0
        %3799 = vmatprep.subr.mxu0 0.0
        %3800 = vmatpush2.msra.mxu0 0.0
        %3801 = vmatprep.subr.mxu0 0.0
        %3802 = vmatpush2.msra.mxu0 0.0
        %3803 = vmatprep.subr.mxu0 0.0
        %3804 = vmatpush2.msra.mxu0 0.0
        %3805 = vmatprep.subr.mxu0 0.0
        %3806 = vmatpush2.msra.mxu0 0.0
        %3807 = vmatprep.subr.mxu0 0.0
        %3808 = vmatpush2.msra.mxu0 0.0
        %3809 = vmatprep.mubr.f32.mxu0 0.0
        %3810 = vmatmul.mubr.f32.gmra.mxu0 %v3743
        %v3811 = vpop.f32.mrf.mxu0
        %v3812 = vadd.f32 %v3740, %v3811
        %v3813 = vpop.f32.mrf.mxu0
        %3814 = vdwg.mxu0
        %v3815 = vld [vmem:[%s59] sm:$0x1]
        %v3816 = vld [vmem:[%s61] sm:$0x1]
        %v3817 = vsel %vm1718, %v3812, 0.0
        %v3818 = vrot.slane %v3817, 4
        %v3819 = vadd.f32 %v3817, %v3818
        %v3820 = vrot.slane %v3819, 2
        %v3821 = vadd.f32 %v3819, %v3820
        %v3822 = vrot.slane %v3821, 1
        %v3823 = vadd.f32 %v3821, %v3822
        %v3824 = vmul.f32 %v3823, %v2289
        %v3825 = vsub.f32 %v3812, %v3824
        %v3826 = vmul.f32 %v3825, %v3825
        %v3827 = vsel %vm1718, %v3826, 0.0
        %v3828 = vrot.slane %v3827, 4
        %v3829 = vadd.f32 %v3827, %v3828
        %v3830 = vrot.slane %v3829, 2
        %v3831 = vadd.f32 %v3829, %v3830
        %v3832 = vrot.slane %v3831, 1
        %v3833 = vadd.f32 %v3831, %v3832
        %v3834 = vmul.f32 %v3833, %v2289
        %v3835 = vadd.f32 %v3834, 1e-05
        %v3836 = vrsqrt.pop %v3835
        %v3837 = vmul.f32 %v3825, %v3836
        %v3839 = vlaneseq
        %v3840 = vshrl.u32 %v3839, 7
        %v3841 = vsub.s32 0, %v3840
        %v3842 = vrot.slane %v3815, %v3841
        %v3844 = vmul.f32 %v3837, %v3842
        %v3846 = vlaneseq
        %v3847 = vshrl.u32 %v3846, 7
        %v3848 = vsub.s32 0, %v3847
        %v3849 = vrot.slane %v3816, %v3848
        %v3851 = vadd.f32 %v3844, %v3849
        %v3852 = vmax.f32 %v3851, 0.0
        %3853 = vst.msk [vmem:[#allocation2] sm:$0xf] %vm1718, %v3852
        %vm3854 = vcmask 11264
        %3855 = vst.msk [vmem:[#allocation4] sm:$0xf] %vm3854, %v1805
        %v3856 = vld [vmem:[%s9] sm:$0x3]
        %v3857 = vld [vmem:[%s11] sm:$0x1]
        %v3859 = vlaneseq
        %v3860 = vshrl.u32 %v3859, 7
        %v3861 = vsub.s32 0, %v3860
        %v3862 = vrot.slane %v3857, %v3861
        %v3865 = vsel %vm1832, %v1801, 0
        %v3868 = vsel %vm1836, %v3856, 0
        %3870 = vmatprep.subr.mxu0 0.0
        %3871 = vmatpush1.msra.mxu0 0.0
        %3872 = vmatprep.subr.mxu0 0.0
        %3873 = vmatpush1.msra.mxu0 0.0
        %3874 = vmatprep.subr.mxu0 0.0
        %3875 = vmatpush1.msra.mxu0 0.0
        %3876 = vmatprep.subr.mxu0 0.0
        %3877 = vmatpush1.msra.mxu0 0.0
        %3878 = vmatprep.subr.mxu0 0.0
        %3879 = vmatpush1.msra.mxu0 0.0
        %3880 = vmatprep.subr.mxu0 0.0
        %3881 = vmatpush1.msra.mxu0 0.0
        %3882 = vmatprep.subr.mxu0 0.0
        %3883 = vmatpush1.msra.mxu0 0.0
        %3884 = vmatprep.subr.mxu0 0.0
        %3885 = vmatpush1.msra.mxu0 0.0
        %3886 = vmatprep.subr.mxu0 0.0
        %3887 = vmatpush1.msra.mxu0 0.0
        %3888 = vmatprep.subr.mxu0 0.0
        %3889 = vmatpush1.msra.mxu0 0.0
        %3890 = vmatprep.subr.mxu0 0.0
        %3891 = vmatpush1.msra.mxu0 0.0
        %3892 = vmatprep.subr.mxu0 0.0
        %3893 = vmatpush1.msra.mxu0 0.0
        %3894 = vmatprep.subr.mxu0 0.0
        %3895 = vmatpush1.msra.mxu0 0.0
        %3896 = vmatprep.subr.mxu0 0.0
        %3897 = vmatpush1.msra.mxu0 0.0
        %3898 = vmatprep.subr.mxu0 0.0
        %3899 = vmatpush1.msra.mxu0 0.0
        %3900 = vmatprep.subr.mxu0 0.0
        %3901 = vmatpush1.msra.mxu0 %v3868
        %3902 = vmatprep.subr.mxu0 0.0
        %3903 = vmatpush2.msra.mxu0 0.0
        %3904 = vmatprep.subr.mxu0 0.0
        %3905 = vmatpush2.msra.mxu0 0.0
        %3906 = vmatprep.subr.mxu0 0.0
        %3907 = vmatpush2.msra.mxu0 0.0
        %3908 = vmatprep.subr.mxu0 0.0
        %3909 = vmatpush2.msra.mxu0 0.0
        %3910 = vmatprep.subr.mxu0 0.0
        %3911 = vmatpush2.msra.mxu0 0.0
        %3912 = vmatprep.subr.mxu0 0.0
        %3913 = vmatpush2.msra.mxu0 0.0
        %3914 = vmatprep.subr.mxu0 0.0
        %3915 = vmatpush2.msra.mxu0 0.0
        %3916 = vmatprep.subr.mxu0 0.0
        %3917 = vmatpush2.msra.mxu0 0.0
        %3918 = vmatprep.subr.mxu0 0.0
        %3919 = vmatpush2.msra.mxu0 0.0
        %3920 = vmatprep.subr.mxu0 0.0
        %3921 = vmatpush2.msra.mxu0 0.0
        %3922 = vmatprep.subr.mxu0 0.0
        %3923 = vmatpush2.msra.mxu0 0.0
        %3924 = vmatprep.subr.mxu0 0.0
        %3925 = vmatpush2.msra.mxu0 0.0
        %3926 = vmatprep.subr.mxu0 0.0
        %3927 = vmatpush2.msra.mxu0 0.0
        %3928 = vmatprep.subr.mxu0 0.0
        %3929 = vmatpush2.msra.mxu0 0.0
        %3930 = vmatprep.subr.mxu0 0.0
        %3931 = vmatpush2.msra.mxu0 0.0
        %3932 = vmatprep.subr.mxu0 0.0
        %3933 = vmatpush2.msra.mxu0 0.0
        %3934 = vmatprep.mubr.f32.mxu0 0.0
        %3935 = vmatmul.mubr.f32.gmra.mxu0 %v3865
        %v3936 = vpop.f32.mrf.mxu0
        %v3937 = vadd.f32 %v3862, %v3936
        %v3938 = vpop.f32.mrf.mxu0
        %3939 = vdwg.mxu0
        %3940 = vst.msk [vmem:[#allocation5] sm:$0xf] %vm1718, %v3937
        %s3941 = smul.u32 %s78, 4
        %s3942 = scalar_lea.vmem %s63, %s3941
        %3943 = vst.msk [vmem:[%s3942] sm:$0xf] %vm3854, %v1801
        %3944 = vst.msk [vmem:[#allocation9] sm:$0xf] %vm1718, %v3852
        // Predicated region
        $region149: #{decoder_forward.1} parent=143 // pred_check
          %p3945 = pneg %p742
        $region150: #{decoder_forward.1} parent=143 // pred_check_branch
          %3947 = sbr.rel (%p3945) target = $region152
        $region151: #{decoder_forward.1} parent=143 // pred_region
          _
        $region152: #{decoder_forward.1} parent=143 // pred_fallthru
          _
        // Predicated region
        $region153: #{decoder_forward.1} parent=143 // pred_check
          %p3948 = pneg %p763
        $region154: #{decoder_forward.1} parent=143 // pred_check_branch
          %3950 = sbr.rel (%p3948) target = $region156
        $region155: #{decoder_forward.1} parent=143 // pred_region
          %s3952 = ssub.s32 64, 64
          %3953 = vsyncadd [#allocation10], %s3952
          %s3955 = sshll.u32 [#allocation9], 4
          %s3956 = int_to_ptr.vmem [resolvable:$true] %s3955
          %3958 = dma.vmem_to_hbm [thread:$0]  %s3956, 64, %s65, [#allocation10]
        $region156: #{decoder_forward.1} parent=143 // pred_fallthru
          _
        // Predicated region
        $region157: #{decoder_forward.1} parent=143 // pred_check
          %p3959 = pneg %p742
        $region158: #{decoder_forward.1} parent=143 // pred_check_branch
          %3961 = sbr.rel (%p3959) target = $region160
        $region159: #{decoder_forward.1} parent=143 // pred_region
          _
        $region160: #{decoder_forward.1} parent=143 // pred_fallthru
          _
        // Predicated region
        $region161: #{decoder_forward.1} parent=143 // pred_check
          %p3962 = pneg %p763
        $region162: #{decoder_forward.1} parent=143 // pred_check_branch
          %3964 = sbr.rel (%p3962) target = $region164
        $region163: #{decoder_forward.1} parent=143 // pred_region
          %3965 = dma.done [#allocation10], 64
        $region164: #{decoder_forward.1} parent=143 // pred_fallthru
          _
      $region144: #{decoder_forward.1} parent=5 // pred_fallthru
        _
      %p3966 = scmp.le.s32.totalorder 2, %s73
      // Predicated region
      $region165: #{decoder_forward.1} parent=5 // pred_check
        %p3967 = pneg %p3966
      $region166: #{decoder_forward.1} parent=5 // pred_check_branch
        %3969 = sbr.rel (%p3967) target = $region168
      $region167: #{decoder_forward.1} parent=5 // pred_region
        %s3970 = ssub.s32 %s73, 2
      $region168: #{decoder_forward.1} parent=5 // pred_fallthru
        _
    $region6: #{decoder_forward.1} parent=1 // loop_footer
      %s77 = sadd.s32 1, %s73
    $region7: #{decoder_forward.1} parent=1 // loop_footer_branch
      %72 = sbr.rel target = $region3
    $region8: #{decoder_forward.1} parent=1 // loop_exit
      _
    %3971 = vsyncpa [#allocation10], 1
    %s3972 = scalar_lea.sflag [#allocation10], 1
    %3973 = vsyncpa %s3972, 1

</llo_original>
